<compile_context>
chip_gen: v6e
topology: v6e:2x2x1
jax: 0.10.0
libtpu: 0.0.40
codegen_flags: <defaults>
</compile_context>

<pallas_src>
import functools
import math

import jax
import jax.numpy as jnp
from jax.experimental import pallas as pl
from jax.experimental.pallas import tpu as pltpu

# ---- "config" values (synthetic, small) ------------------------------------
N_MEL_CHANNELS = 16          # config.n_mel_channels
POSTNET_EMBEDDING_DIM = 32   # config.postnet_embedding_dim
POSTNET_KERNEL_SIZE = 5      # config.postnet_kernel_size
POSTNET_N_CONVOLUTIONS = 5   # config.postnet_n_convolutions
BATCH = 2
SEQ_LEN = 16
BN_EPS = 1e-5

PAD = (POSTNET_KERNEL_SIZE - 1) // 2      # 2
OFF = 8                                   # 8-aligned start of valid time window


def _round_up(a, m):
    return (a + m - 1) // m * m


def _layer_channels():
    chans = []
    cin = N_MEL_CHANNELS
    for i in range(POSTNET_N_CONVOLUTIONS):
        cout = (POSTNET_EMBEDDING_DIM
                if i < POSTNET_N_CONVOLUTIONS - 1 else N_MEL_CHANNELS)
        chans.append((cin, cout))
        cin = cout
    return chans


# ---------------------------------------------------------------------------
# Fused Pallas kernel: all 5 conv+BN(+tanh) layers, whole batch, one step.
# ---------------------------------------------------------------------------
def _postnet_fused_kernel(x_ref, w_ref, b_ref, o_ref, buf_a, buf_b, *,
                          n_layers, K, T, B, seg, off, pad, c0):
    # Rows per tap matmul: covers all batch segments in one MXU op.  The rows
    # that fall between batch segments are garbage and are simply never stored;
    # the zero pad rows around each valid window make the stored rows exact.
    n_rows = (B - 1) * seg + T
    start = off - pad

    # One-time zero (single grid step): provides the conv "same" padding and
    # guards against uninitialized (possibly NaN) scratch VMEM.  Interior rows
    # are fully rewritten by each layer; pad rows are never written again.
    buf_a[...] = jnp.zeros_like(buf_a)
    buf_b[...] = jnp.zeros_like(buf_b)

    # Stage the input (channels on lanes, time on sublanes) into the 8-aligned
    # valid window of every batch segment of buffer A.
    for b in range(B):
        buf_a[b * seg + off:b * seg + off + T, :c0] = x_ref[b]

    bufs = (buf_a, buf_b)
    src = 0
    for li in range(n_layers):
        is_last = li == n_layers - 1
        src_buf, dst_buf = bufs[src], bufs[1 - src]

        # Conv1d as K shifted (n_rows, Cmax) @ (Cmax, Cmax) MXU matmuls.
        # Weights are zero-padded to Cmax and have the BN scale pre-folded, so
        # every layer is the same uniform matmul shape and only a bias add
        # remains on the VPU.  Single accumulator chain (MRB accumulation).
        acc = jnp.dot(src_buf[start:start + n_rows, :], w_ref[li, 0],
                      preferred_element_type=jnp.float32)
        for k in range(1, K):
            acc = acc + jnp.dot(src_buf[start + k:start + k + n_rows, :],
                                w_ref[li, k],
                                preferred_element_type=jnp.float32)
        y = acc + b_ref[li]                    # conv bias + folded BN shift

        for b in range(B):                     # store only the valid rows
            yb = y[b * seg:b * seg + T, :]
            if is_last:
                o_ref[b] = yb[:, :c0].astype(o_ref.dtype)
            else:
                dst_buf[b * seg + off:b * seg + off + T, :] = jnp.tanh(yb)
        src = 1 - src


# ---------------------------------------------------------------------------
# Wrapper: one pallas_call, single grid step, for the whole Postnet.
# ---------------------------------------------------------------------------
def postnet_forward(x, packed_w, packed_b):
    """x: (B, n_mel, T) float32  ->  (B, n_mel, T) float32 (PyTorch layout)."""
    B, c0, T = x.shape
    chans = _layer_channels()
    L = len(chans)
    K = POSTNET_KERNEL_SIZE
    cmax = packed_w.shape[-1]
    off = OFF
    seg = _round_up(off + T + PAD, 8)

    # Channels on lanes, time on sublanes.  At these toy shapes the wrapper
    # transposes are negligible; at production lengths fold them in-kernel.
    x_btc = jnp.transpose(x, (0, 2, 1))                        # (B, T, C0)

    kernel = functools.partial(
        _postnet_fused_kernel, n_layers=L, K=K, T=T, B=B,
        seg=seg, off=off, pad=PAD, c0=c0)

    out_btc = pl.pallas_call(
        kernel,
        out_shape=jax.ShapeDtypeStruct((B, T, c0), jnp.float32),
        grid=(1,),                           # collapsed grid (v5e/v6e); on v7x
                                             # use grid=(B,) + "parallel".
        in_specs=[
            pl.BlockSpec((B, T, c0), lambda i: (0, 0, 0)),
            pl.BlockSpec((L, K, cmax, cmax), lambda i: (0, 0, 0, 0)),
            pl.BlockSpec((L, 1, cmax), lambda i: (0, 0, 0)),
        ],
        out_specs=pl.BlockSpec((B, T, c0), lambda i: (0, 0, 0)),
        scratch_shapes=[pltpu.VMEM((B * seg, cmax), jnp.float32),
                        pltpu.VMEM((B * seg, cmax), jnp.float32)],
        compiler_params=pltpu.CompilerParams(
            dimension_semantics=("arbitrary",)),
    )(x_btc, packed_w, packed_b)

    return jnp.transpose(out_btc, (0, 2, 1))                   # (B, n_mel, T)


# ---------------------------------------------------------------------------
# Parameter init: PyTorch-style Conv1d (xavier_uniform) + BatchNorm1d (eval).
# Returns raw params (for the reference) and the packed/folded kernel params.
# ---------------------------------------------------------------------------
def init_params(key):
    chans = _layer_channels()
    L = len(chans)
    K = POSTNET_KERNEL_SIZE
    cmax = max(max(ci, co) for ci, co in chans)
    keys = jax.random.split(key, L * 6)

    raw = []
    packed_w = jnp.zeros((L, K, cmax, cmax), jnp.float32)
    packed_b = jnp.zeros((L, 1, cmax), jnp.float32)
    for li, (cin, cout) in enumerate(chans):
        k = keys[li * 6:(li + 1) * 6]
        gain = (5.0 / 3.0) if li < L - 1 else 1.0              # tanh vs linear
        fan_in = cin * K
        fan_out = cout * K
        bound = gain * math.sqrt(6.0 / (fan_in + fan_out))
        w = jax.random.uniform(k[0], (cout, cin, K),
                               jnp.float32, -bound, bound)      # PyTorch (O,I,K)
        cb = jax.random.uniform(k[1], (cout,), jnp.float32, -0.1, 0.1)
        gamma = jax.random.uniform(k[2], (cout,), jnp.float32, 0.5, 1.5)
        beta = jax.random.uniform(k[3], (cout,), jnp.float32, -0.5, 0.5)
        mean = jax.random.uniform(k[4], (cout,), jnp.float32, -0.5, 0.5)
        var = jax.random.uniform(k[5], (cout,), jnp.float32, 0.5, 1.5)
        raw.append((w, cb, gamma, beta, mean, var))

        scale = gamma / jnp.sqrt(var + BN_EPS)                  # folded BN (eval)
        bias_f = beta + (cb - mean) * scale
        # (K, Cin, Cout) with the BN scale folded into the weights; zero-padded
        # to Cmax so every layer uses the same matmul shape in the kernel.
        w_kio = jnp.transpose(w, (2, 1, 0)) * scale[None, None, :]
        packed_w = packed_w.at[li, :, :cin, :cout].set(w_kio)
        packed_b = packed_b.at[li, 0, :cout].set(bias_f)
    return raw, packed_w, packed_b


# ---------------------------------------------------------------------------
# Pure-JAX reference (independent: lax.conv_general_dilated) for correctness.
# ---------------------------------------------------------------------------
def reference_forward(x, raw_params):
    pad = (POSTNET_KERNEL_SIZE - 1) // 2
    h = x
    n = len(raw_params)
    for li, (w, cb, gamma, beta, mean, var) in enumerate(raw_params):
        y = jax.lax.conv_general_dilated(
            h, w, window_strides=(1,), padding=[(pad, pad)],
            dimension_numbers=("NCH", "OIH", "NCH"),
            precision=jax.lax.Precision.HIGHEST)
        y = y + cb[None, :, None]
        y = ((y - mean[None, :, None]) / jnp.sqrt(var[None, :, None] + BN_EPS)
             * gamma[None, :, None] + beta[None, :, None])
        if li < n - 1:
            y = jnp.tanh(y)
        h = y
    return h


# ---------------------------------------------------------------------------
if __name__ == "__main__":
    key = jax.random.PRNGKey(0)
    k_x, k_p = jax.random.split(key)

    x = jax.random.normal(k_x, (BATCH, N_MEL_CHANNELS, SEQ_LEN), jnp.float32)
    raw_params, packed_w, packed_b = init_params(k_p)

    out = postnet_forward(x, packed_w, packed_b)
    out = jax.block_until_ready(out)

    ref = reference_forward(x, raw_params)
    assert out.shape == (BATCH, N_MEL_CHANNELS, SEQ_LEN), out.shape
    max_err = float(jnp.max(jnp.abs(out - ref)))
    assert jnp.allclose(out, ref, atol=2e-3, rtol=2e-3), \
        f"mismatch, max err {max_err}"

    print("KERNEL_OK")
</pallas_src>

<mosaic_0001>
module attributes {stable_mosaic.version = 11 : i64} {
  func.func @_postnet_fused_kernel(%arg0: i32, %arg1: memref<2x16x16xf32, #tpu.memory_space<vmem>>, %arg2: memref<5x5x32x32xf32, #tpu.memory_space<vmem>>, %arg3: memref<5x1x32xf32, #tpu.memory_space<vmem>>, %arg4: memref<2x16x16xf32, #tpu.memory_space<vmem>>, %arg5: memref<64x32xf32, #tpu.memory_space<vmem>>, %arg6: memref<64x32xf32, #tpu.memory_space<vmem>>) attributes {dimension_semantics = [#tpu.dimension_semantics<arbitrary>], iteration_bounds = array<i64: 1>, scalar_prefetch = 0 : i64, scratch_operands = 2 : i64, tpu.core_type = #tpu.core_type<tc>, window_params = [{pipeline_mode = #tpu.pipeline_mode<synchronous>, transform_indices = @transform_0, window_bounds = array<i64: 2, 16, 16>}, {pipeline_mode = #tpu.pipeline_mode<synchronous>, transform_indices = @transform_1, window_bounds = array<i64: 5, 5, 32, 32>}, {pipeline_mode = #tpu.pipeline_mode<synchronous>, transform_indices = @transform_2, window_bounds = array<i64: 5, 1, 32>}, {pipeline_mode = #tpu.pipeline_mode<synchronous>, transform_indices = @transform_3, window_bounds = array<i64: 2, 16, 16>}]} {
    %cst = arith.constant 0.000000e+00 : f32
    %0 = vector.broadcast %cst : f32 to vector<64x32xf32>
    %c0 = arith.constant 0 : index
    %c0_0 = arith.constant 0 : index
    %1 = vector.load %arg5[%c0, %c0_0] : memref<64x32xf32, #tpu.memory_space<vmem>>, vector<64x32xf32>
    tpu.vector_store %arg5[%c0, %c0_0], %0 {strides = array<i32>} : memref<64x32xf32, #tpu.memory_space<vmem>>, vector<64x32xf32>,
    %cst_1 = arith.constant 0.000000e+00 : f32
    %2 = vector.broadcast %cst_1 : f32 to vector<64x32xf32>
    %c0_2 = arith.constant 0 : index
    %c0_3 = arith.constant 0 : index
    %3 = vector.load %arg6[%c0_2, %c0_3] : memref<64x32xf32, #tpu.memory_space<vmem>>, vector<64x32xf32>
    tpu.vector_store %arg6[%c0_2, %c0_3], %2 {strides = array<i32>} : memref<64x32xf32, #tpu.memory_space<vmem>>, vector<64x32xf32>,
    %c0_4 = arith.constant 0 : index
    %c0_5 = arith.constant 0 : index
    %c0_6 = arith.constant 0 : index
    %4 = vector.load %arg1[%c0_4, %c0_5, %c0_6] : memref<2x16x16xf32, #tpu.memory_space<vmem>>, vector<1x16x16xf32>
    %5 = vector.shape_cast %4 : vector<1x16x16xf32> to vector<16x16xf32>
    %c8 = arith.constant 8 : index
    %c0_7 = arith.constant 0 : index
    %6 = vector.load %arg5[%c8, %c0_7] : memref<64x32xf32, #tpu.memory_space<vmem>>, vector<16x16xf32>
    tpu.vector_store %arg5[%c8, %c0_7], %5 {strides = array<i32>} : memref<64x32xf32, #tpu.memory_space<vmem>>, vector<16x16xf32>,
    %c1 = arith.constant 1 : index
    %c0_8 = arith.constant 0 : index
    %c0_9 = arith.constant 0 : index
    %7 = vector.load %arg1[%c1, %c0_8, %c0_9] : memref<2x16x16xf32, #tpu.memory_space<vmem>>, vector<1x16x16xf32>
    %8 = vector.shape_cast %7 : vector<1x16x16xf32> to vector<16x16xf32>
    %c40 = arith.constant 40 : index
    %c0_10 = arith.constant 0 : index
    %9 = vector.load %arg5[%c40, %c0_10] : memref<64x32xf32, #tpu.memory_space<vmem>>, vector<16x16xf32>
    tpu.vector_store %arg5[%c40, %c0_10], %8 {strides = array<i32>} : memref<64x32xf32, #tpu.memory_space<vmem>>, vector<16x16xf32>,
    %c6 = arith.constant 6 : index
    %c0_11 = arith.constant 0 : index
    %10 = vector.load %arg5[%c6, %c0_11] : memref<64x32xf32, #tpu.memory_space<vmem>>, vector<48x32xf32>
    %c0_12 = arith.constant 0 : index
    %c0_13 = arith.constant 0 : index
    %c0_14 = arith.constant 0 : index
    %c0_15 = arith.constant 0 : index
    %11 = vector.load %arg2[%c0_12, %c0_13, %c0_14, %c0_15] : memref<5x5x32x32xf32, #tpu.memory_space<vmem>>, vector<1x1x32x32xf32>
    %12 = vector.shape_cast %11 : vector<1x1x32x32xf32> to vector<32x32xf32>
    %cst_16 = arith.constant dense<0.000000e+00> : vector<48x32xf32>
    %13 = tpu.matmul %10, %12, %cst_16 {dimension_numbers = #tpu.dot_dimension_numbers<[1], [0], [0], [1], [0, 0, 1, 1], [], []>} : vector<48x32xf32>, vector<32x32xf32>, vector<48x32xf32> -> vector<48x32xf32>
    %c7 = arith.constant 7 : index
    %c0_17 = arith.constant 0 : index
    %14 = vector.load %arg5[%c7, %c0_17] : memref<64x32xf32, #tpu.memory_space<vmem>>, vector<48x32xf32>
    %c0_18 = arith.constant 0 : index
    %c1_19 = arith.constant 1 : index
    %c0_20 = arith.constant 0 : index
    %c0_21 = arith.constant 0 : index
    %15 = vector.load %arg2[%c0_18, %c1_19, %c0_20, %c0_21] : memref<5x5x32x32xf32, #tpu.memory_space<vmem>>, vector<1x1x32x32xf32>
    %16 = vector.shape_cast %15 : vector<1x1x32x32xf32> to vector<32x32xf32>
    %cst_22 = arith.constant dense<0.000000e+00> : vector<48x32xf32>
    %17 = tpu.matmul %14, %16, %cst_22 {dimension_numbers = #tpu.dot_dimension_numbers<[1], [0], [0], [1], [0, 0, 1, 1], [], []>} : vector<48x32xf32>, vector<32x32xf32>, vector<48x32xf32> -> vector<48x32xf32>
    %18 = arith.addf %13, %17 : vector<48x32xf32>
    %c8_23 = arith.constant 8 : index
    %c0_24 = arith.constant 0 : index
    %19 = vector.load %arg5[%c8_23, %c0_24] : memref<64x32xf32, #tpu.memory_space<vmem>>, vector<48x32xf32>
    %c0_25 = arith.constant 0 : index
    %c2 = arith.constant 2 : index
    %c0_26 = arith.constant 0 : index
    %c0_27 = arith.constant 0 : index
    %20 = vector.load %arg2[%c0_25, %c2, %c0_26, %c0_27] : memref<5x5x32x32xf32, #tpu.memory_space<vmem>>, vector<1x1x32x32xf32>
    %21 = vector.shape_cast %20 : vector<1x1x32x32xf32> to vector<32x32xf32>
    %cst_28 = arith.constant dense<0.000000e+00> : vector<48x32xf32>
    %22 = tpu.matmul %19, %21, %cst_28 {dimension_numbers = #tpu.dot_dimension_numbers<[1], [0], [0], [1], [0, 0, 1, 1], [], []>} : vector<48x32xf32>, vector<32x32xf32>, vector<48x32xf32> -> vector<48x32xf32>
    %23 = arith.addf %18, %22 : vector<48x32xf32>
    %c9 = arith.constant 9 : index
    %c0_29 = arith.constant 0 : index
    %24 = vector.load %arg5[%c9, %c0_29] : memref<64x32xf32, #tpu.memory_space<vmem>>, vector<48x32xf32>
    %c0_30 = arith.constant 0 : index
    %c3 = arith.constant 3 : index
    %c0_31 = arith.constant 0 : index
    %c0_32 = arith.constant 0 : index
    %25 = vector.load %arg2[%c0_30, %c3, %c0_31, %c0_32] : memref<5x5x32x32xf32, #tpu.memory_space<vmem>>, vector<1x1x32x32xf32>
    %26 = vector.shape_cast %25 : vector<1x1x32x32xf32> to vector<32x32xf32>
    %cst_33 = arith.constant dense<0.000000e+00> : vector<48x32xf32>
    %27 = tpu.matmul %24, %26, %cst_33 {dimension_numbers = #tpu.dot_dimension_numbers<[1], [0], [0], [1], [0, 0, 1, 1], [], []>} : vector<48x32xf32>, vector<32x32xf32>, vector<48x32xf32> -> vector<48x32xf32>
    %28 = arith.addf %23, %27 : vector<48x32xf32>
    %c10 = arith.constant 10 : index
    %c0_34 = arith.constant 0 : index
    %29 = vector.load %arg5[%c10, %c0_34] : memref<64x32xf32, #tpu.memory_space<vmem>>, vector<48x32xf32>
    %c0_35 = arith.constant 0 : index
    %c4 = arith.constant 4 : index
    %c0_36 = arith.constant 0 : index
    %c0_37 = arith.constant 0 : index
    %30 = vector.load %arg2[%c0_35, %c4, %c0_36, %c0_37] : memref<5x5x32x32xf32, #tpu.memory_space<vmem>>, vector<1x1x32x32xf32>
    %31 = vector.shape_cast %30 : vector<1x1x32x32xf32> to vector<32x32xf32>
    %cst_38 = arith.constant dense<0.000000e+00> : vector<48x32xf32>
    %32 = tpu.matmul %29, %31, %cst_38 {dimension_numbers = #tpu.dot_dimension_numbers<[1], [0], [0], [1], [0, 0, 1, 1], [], []>} : vector<48x32xf32>, vector<32x32xf32>, vector<48x32xf32> -> vector<48x32xf32>
    %33 = arith.addf %28, %32 : vector<48x32xf32>
    %c0_39 = arith.constant 0 : index
    %c0_40 = arith.constant 0 : index
    %c0_41 = arith.constant 0 : index
    %34 = vector.load %arg3[%c0_39, %c0_40, %c0_41] : memref<5x1x32xf32, #tpu.memory_space<vmem>>, vector<1x1x32xf32>
    %35 = vector.shape_cast %34 : vector<1x1x32xf32> to vector<1x32xf32>
    %36 = vector.broadcast %35 : vector<1x32xf32> to vector<48x32xf32>
    %37 = arith.addf %33, %36 : vector<48x32xf32>
    %38 = vector.extract_strided_slice %37 {offsets = [0, 0], sizes = [16, 32], strides = [1, 1]} : vector<48x32xf32> to vector<16x32xf32>
    %39 = math.tanh %38 : vector<16x32xf32>
    %c8_42 = arith.constant 8 : index
    %c0_43 = arith.constant 0 : index
    %40 = vector.load %arg6[%c8_42, %c0_43] : memref<64x32xf32, #tpu.memory_space<vmem>>, vector<16x32xf32>
    tpu.vector_store %arg6[%c8_42, %c0_43], %39 {strides = array<i32>} : memref<64x32xf32, #tpu.memory_space<vmem>>, vector<16x32xf32>,
    %41 = vector.extract_strided_slice %37 {offsets = [32, 0], sizes = [16, 32], strides = [1, 1]} : vector<48x32xf32> to vector<16x32xf32>
    %42 = math.tanh %41 : vector<16x32xf32>
    %c40_44 = arith.constant 40 : index
    %c0_45 = arith.constant 0 : index
    %43 = vector.load %arg6[%c40_44, %c0_45] : memref<64x32xf32, #tpu.memory_space<vmem>>, vector<16x32xf32>
    tpu.vector_store %arg6[%c40_44, %c0_45], %42 {strides = array<i32>} : memref<64x32xf32, #tpu.memory_space<vmem>>, vector<16x32xf32>,
    %c6_46 = arith.constant 6 : index
    %c0_47 = arith.constant 0 : index
    %44 = vector.load %arg6[%c6_46, %c0_47] : memref<64x32xf32, #tpu.memory_space<vmem>>, vector<48x32xf32>
    %c1_48 = arith.constant 1 : index
    %c0_49 = arith.constant 0 : index
    %c0_50 = arith.constant 0 : index
    %c0_51 = arith.constant 0 : index
    %45 = vector.load %arg2[%c1_48, %c0_49, %c0_50, %c0_51] : memref<5x5x32x32xf32, #tpu.memory_space<vmem>>, vector<1x1x32x32xf32>
    %46 = vector.shape_cast %45 : vector<1x1x32x32xf32> to vector<32x32xf32>
    %cst_52 = arith.constant dense<0.000000e+00> : vector<48x32xf32>
    %47 = tpu.matmul %44, %46, %cst_52 {dimension_numbers = #tpu.dot_dimension_numbers<[1], [0], [0], [1], [0, 0, 1, 1], [], []>} : vector<48x32xf32>, vector<32x32xf32>, vector<48x32xf32> -> vector<48x32xf32>
    %c7_53 = arith.constant 7 : index
    %c0_54 = arith.constant 0 : index
    %48 = vector.load %arg6[%c7_53, %c0_54] : memref<64x32xf32, #tpu.memory_space<vmem>>, vector<48x32xf32>
    %c1_55 = arith.constant 1 : index
    %c1_56 = arith.constant 1 : index
    %c0_57 = arith.constant 0 : index
    %c0_58 = arith.constant 0 : index
    %49 = vector.load %arg2[%c1_55, %c1_56, %c0_57, %c0_58] : memref<5x5x32x32xf32, #tpu.memory_space<vmem>>, vector<1x1x32x32xf32>
    %50 = vector.shape_cast %49 : vector<1x1x32x32xf32> to vector<32x32xf32>
    %cst_59 = arith.constant dense<0.000000e+00> : vector<48x32xf32>
    %51 = tpu.matmul %48, %50, %cst_59 {dimension_numbers = #tpu.dot_dimension_numbers<[1], [0], [0], [1], [0, 0, 1, 1], [], []>} : vector<48x32xf32>, vector<32x32xf32>, vector<48x32xf32> -> vector<48x32xf32>
    %52 = arith.addf %47, %51 : vector<48x32xf32>
    %c8_60 = arith.constant 8 : index
    %c0_61 = arith.constant 0 : index
    %53 = vector.load %arg6[%c8_60, %c0_61] : memref<64x32xf32, #tpu.memory_space<vmem>>, vector<48x32xf32>
    %c1_62 = arith.constant 1 : index
    %c2_63 = arith.constant 2 : index
    %c0_64 = arith.constant 0 : index
    %c0_65 = arith.constant 0 : index
    %54 = vector.load %arg2[%c1_62, %c2_63, %c0_64, %c0_65] : memref<5x5x32x32xf32, #tpu.memory_space<vmem>>, vector<1x1x32x32xf32>
    %55 = vector.shape_cast %54 : vector<1x1x32x32xf32> to vector<32x32xf32>
    %cst_66 = arith.constant dense<0.000000e+00> : vector<48x32xf32>
    %56 = tpu.matmul %53, %55, %cst_66 {dimension_numbers = #tpu.dot_dimension_numbers<[1], [0], [0], [1], [0, 0, 1, 1], [], []>} : vector<48x32xf32>, vector<32x32xf32>, vector<48x32xf32> -> vector<48x32xf32>
    %57 = arith.addf %52, %56 : vector<48x32xf32>
    %c9_67 = arith.constant 9 : index
    %c0_68 = arith.constant 0 : index
    %58 = vector.load %arg6[%c9_67, %c0_68] : memref<64x32xf32, #tpu.memory_space<vmem>>, vector<48x32xf32>
    %c1_69 = arith.constant 1 : index
    %c3_70 = arith.constant 3 : index
    %c0_71 = arith.constant 0 : index
    %c0_72 = arith.constant 0 : index
    %59 = vector.load %arg2[%c1_69, %c3_70, %c0_71, %c0_72] : memref<5x5x32x32xf32, #tpu.memory_space<vmem>>, vector<1x1x32x32xf32>
    %60 = vector.shape_cast %59 : vector<1x1x32x32xf32> to vector<32x32xf32>
    %cst_73 = arith.constant dense<0.000000e+00> : vector<48x32xf32>
    %61 = tpu.matmul %58, %60, %cst_73 {dimension_numbers = #tpu.dot_dimension_numbers<[1], [0], [0], [1], [0, 0, 1, 1], [], []>} : vector<48x32xf32>, vector<32x32xf32>, vector<48x32xf32> -> vector<48x32xf32>
    %62 = arith.addf %57, %61 : vector<48x32xf32>
    %c10_74 = arith.constant 10 : index
    %c0_75 = arith.constant 0 : index
    %63 = vector.load %arg6[%c10_74, %c0_75] : memref<64x32xf32, #tpu.memory_space<vmem>>, vector<48x32xf32>
    %c1_76 = arith.constant 1 : index
    %c4_77 = arith.constant 4 : index
    %c0_78 = arith.constant 0 : index
    %c0_79 = arith.constant 0 : index
    %64 = vector.load %arg2[%c1_76, %c4_77, %c0_78, %c0_79] : memref<5x5x32x32xf32, #tpu.memory_space<vmem>>, vector<1x1x32x32xf32>
    %65 = vector.shape_cast %64 : vector<1x1x32x32xf32> to vector<32x32xf32>
    %cst_80 = arith.constant dense<0.000000e+00> : vector<48x32xf32>
    %66 = tpu.matmul %63, %65, %cst_80 {dimension_numbers = #tpu.dot_dimension_numbers<[1], [0], [0], [1], [0, 0, 1, 1], [], []>} : vector<48x32xf32>, vector<32x32xf32>, vector<48x32xf32> -> vector<48x32xf32>
    %67 = arith.addf %62, %66 : vector<48x32xf32>
    %c1_81 = arith.constant 1 : index
    %c0_82 = arith.constant 0 : index
    %c0_83 = arith.constant 0 : index
    %68 = vector.load %arg3[%c1_81, %c0_82, %c0_83] : memref<5x1x32xf32, #tpu.memory_space<vmem>>, vector<1x1x32xf32>
    %69 = vector.shape_cast %68 : vector<1x1x32xf32> to vector<1x32xf32>
    %70 = vector.broadcast %69 : vector<1x32xf32> to vector<48x32xf32>
    %71 = arith.addf %67, %70 : vector<48x32xf32>
    %72 = vector.extract_strided_slice %71 {offsets = [0, 0], sizes = [16, 32], strides = [1, 1]} : vector<48x32xf32> to vector<16x32xf32>
    %73 = math.tanh %72 : vector<16x32xf32>
    %c8_84 = arith.constant 8 : index
    %c0_85 = arith.constant 0 : index
    %74 = vector.load %arg5[%c8_84, %c0_85] : memref<64x32xf32, #tpu.memory_space<vmem>>, vector<16x32xf32>
    tpu.vector_store %arg5[%c8_84, %c0_85], %73 {strides = array<i32>} : memref<64x32xf32, #tpu.memory_space<vmem>>, vector<16x32xf32>,
    %75 = vector.extract_strided_slice %71 {offsets = [32, 0], sizes = [16, 32], strides = [1, 1]} : vector<48x32xf32> to vector<16x32xf32>
    %76 = math.tanh %75 : vector<16x32xf32>
    %c40_86 = arith.constant 40 : index
    %c0_87 = arith.constant 0 : index
    %77 = vector.load %arg5[%c40_86, %c0_87] : memref<64x32xf32, #tpu.memory_space<vmem>>, vector<16x32xf32>
    tpu.vector_store %arg5[%c40_86, %c0_87], %76 {strides = array<i32>} : memref<64x32xf32, #tpu.memory_space<vmem>>, vector<16x32xf32>,
    %c6_88 = arith.constant 6 : index
    %c0_89 = arith.constant 0 : index
    %78 = vector.load %arg5[%c6_88, %c0_89] : memref<64x32xf32, #tpu.memory_space<vmem>>, vector<48x32xf32>
    %c2_90 = arith.constant 2 : index
    %c0_91 = arith.constant 0 : index
    %c0_92 = arith.constant 0 : index
    %c0_93 = arith.constant 0 : index
    %79 = vector.load %arg2[%c2_90, %c0_91, %c0_92, %c0_93] : memref<5x5x32x32xf32, #tpu.memory_space<vmem>>, vector<1x1x32x32xf32>
    %80 = vector.shape_cast %79 : vector<1x1x32x32xf32> to vector<32x32xf32>
    %cst_94 = arith.constant dense<0.000000e+00> : vector<48x32xf32>
    %81 = tpu.matmul %78, %80, %cst_94 {dimension_numbers = #tpu.dot_dimension_numbers<[1], [0], [0], [1], [0, 0, 1, 1], [], []>} : vector<48x32xf32>, vector<32x32xf32>, vector<48x32xf32> -> vector<48x32xf32>
    %c7_95 = arith.constant 7 : index
    %c0_96 = arith.constant 0 : index
    %82 = vector.load %arg5[%c7_95, %c0_96] : memref<64x32xf32, #tpu.memory_space<vmem>>, vector<48x32xf32>
    %c2_97 = arith.constant 2 : index
    %c1_98 = arith.constant 1 : index
    %c0_99 = arith.constant 0 : index
    %c0_100 = arith.constant 0 : index
    %83 = vector.load %arg2[%c2_97, %c1_98, %c0_99, %c0_100] : memref<5x5x32x32xf32, #tpu.memory_space<vmem>>, vector<1x1x32x32xf32>
    %84 = vector.shape_cast %83 : vector<1x1x32x32xf32> to vector<32x32xf32>
    %cst_101 = arith.constant dense<0.000000e+00> : vector<48x32xf32>
    %85 = tpu.matmul %82, %84, %cst_101 {dimension_numbers = #tpu.dot_dimension_numbers<[1], [0], [0], [1], [0, 0, 1, 1], [], []>} : vector<48x32xf32>, vector<32x32xf32>, vector<48x32xf32> -> vector<48x32xf32>
    %86 = arith.addf %81, %85 : vector<48x32xf32>
    %c8_102 = arith.constant 8 : index
    %c0_103 = arith.constant 0 : index
    %87 = vector.load %arg5[%c8_102, %c0_103] : memref<64x32xf32, #tpu.memory_space<vmem>>, vector<48x32xf32>
    %c2_104 = arith.constant 2 : index
    %c2_105 = arith.constant 2 : index
    %c0_106 = arith.constant 0 : index
    %c0_107 = arith.constant 0 : index
    %88 = vector.load %arg2[%c2_104, %c2_105, %c0_106, %c0_107] : memref<5x5x32x32xf32, #tpu.memory_space<vmem>>, vector<1x1x32x32xf32>
    %89 = vector.shape_cast %88 : vector<1x1x32x32xf32> to vector<32x32xf32>
    %cst_108 = arith.constant dense<0.000000e+00> : vector<48x32xf32>
    %90 = tpu.matmul %87, %89, %cst_108 {dimension_numbers = #tpu.dot_dimension_numbers<[1], [0], [0], [1], [0, 0, 1, 1], [], []>} : vector<48x32xf32>, vector<32x32xf32>, vector<48x32xf32> -> vector<48x32xf32>
    %91 = arith.addf %86, %90 : vector<48x32xf32>
    %c9_109 = arith.constant 9 : index
    %c0_110 = arith.constant 0 : index
    %92 = vector.load %arg5[%c9_109, %c0_110] : memref<64x32xf32, #tpu.memory_space<vmem>>, vector<48x32xf32>
    %c2_111 = arith.constant 2 : index
    %c3_112 = arith.constant 3 : index
    %c0_113 = arith.constant 0 : index
    %c0_114 = arith.constant 0 : index
    %93 = vector.load %arg2[%c2_111, %c3_112, %c0_113, %c0_114] : memref<5x5x32x32xf32, #tpu.memory_space<vmem>>, vector<1x1x32x32xf32>
    %94 = vector.shape_cast %93 : vector<1x1x32x32xf32> to vector<32x32xf32>
    %cst_115 = arith.constant dense<0.000000e+00> : vector<48x32xf32>
    %95 = tpu.matmul %92, %94, %cst_115 {dimension_numbers = #tpu.dot_dimension_numbers<[1], [0], [0], [1], [0, 0, 1, 1], [], []>} : vector<48x32xf32>, vector<32x32xf32>, vector<48x32xf32> -> vector<48x32xf32>
    %96 = arith.addf %91, %95 : vector<48x32xf32>
    %c10_116 = arith.constant 10 : index
    %c0_117 = arith.constant 0 : index
    %97 = vector.load %arg5[%c10_116, %c0_117] : memref<64x32xf32, #tpu.memory_space<vmem>>, vector<48x32xf32>
    %c2_118 = arith.constant 2 : index
    %c4_119 = arith.constant 4 : index
    %c0_120 = arith.constant 0 : index
    %c0_121 = arith.constant 0 : index
    %98 = vector.load %arg2[%c2_118, %c4_119, %c0_120, %c0_121] : memref<5x5x32x32xf32, #tpu.memory_space<vmem>>, vector<1x1x32x32xf32>
    %99 = vector.shape_cast %98 : vector<1x1x32x32xf32> to vector<32x32xf32>
    %cst_122 = arith.constant dense<0.000000e+00> : vector<48x32xf32>
    %100 = tpu.matmul %97, %99, %cst_122 {dimension_numbers = #tpu.dot_dimension_numbers<[1], [0], [0], [1], [0, 0, 1, 1], [], []>} : vector<48x32xf32>, vector<32x32xf32>, vector<48x32xf32> -> vector<48x32xf32>
    %101 = arith.addf %96, %100 : vector<48x32xf32>
    %c2_123 = arith.constant 2 : index
    %c0_124 = arith.constant 0 : index
    %c0_125 = arith.constant 0 : index
    %102 = vector.load %arg3[%c2_123, %c0_124, %c0_125] : memref<5x1x32xf32, #tpu.memory_space<vmem>>, vector<1x1x32xf32>
    %103 = vector.shape_cast %102 : vector<1x1x32xf32> to vector<1x32xf32>
    %104 = vector.broadcast %103 : vector<1x32xf32> to vector<48x32xf32>
    %105 = arith.addf %101, %104 : vector<48x32xf32>
    %106 = vector.extract_strided_slice %105 {offsets = [0, 0], sizes = [16, 32], strides = [1, 1]} : vector<48x32xf32> to vector<16x32xf32>
    %107 = math.tanh %106 : vector<16x32xf32>
    %c8_126 = arith.constant 8 : index
    %c0_127 = arith.constant 0 : index
    %108 = vector.load %arg6[%c8_126, %c0_127] : memref<64x32xf32, #tpu.memory_space<vmem>>, vector<16x32xf32>
    tpu.vector_store %arg6[%c8_126, %c0_127], %107 {strides = array<i32>} : memref<64x32xf32, #tpu.memory_space<vmem>>, vector<16x32xf32>,
    %109 = vector.extract_strided_slice %105 {offsets = [32, 0], sizes = [16, 32], strides = [1, 1]} : vector<48x32xf32> to vector<16x32xf32>
    %110 = math.tanh %109 : vector<16x32xf32>
    %c40_128 = arith.constant 40 : index
    %c0_129 = arith.constant 0 : index
    %111 = vector.load %arg6[%c40_128, %c0_129] : memref<64x32xf32, #tpu.memory_space<vmem>>, vector<16x32xf32>
    tpu.vector_store %arg6[%c40_128, %c0_129], %110 {strides = array<i32>} : memref<64x32xf32, #tpu.memory_space<vmem>>, vector<16x32xf32>,
    %c6_130 = arith.constant 6 : index
    %c0_131 = arith.constant 0 : index
    %112 = vector.load %arg6[%c6_130, %c0_131] : memref<64x32xf32, #tpu.memory_space<vmem>>, vector<48x32xf32>
    %c3_132 = arith.constant 3 : index
    %c0_133 = arith.constant 0 : index
    %c0_134 = arith.constant 0 : index
    %c0_135 = arith.constant 0 : index
    %113 = vector.load %arg2[%c3_132, %c0_133, %c0_134, %c0_135] : memref<5x5x32x32xf32, #tpu.memory_space<vmem>>, vector<1x1x32x32xf32>
    %114 = vector.shape_cast %113 : vector<1x1x32x32xf32> to vector<32x32xf32>
    %cst_136 = arith.constant dense<0.000000e+00> : vector<48x32xf32>
    %115 = tpu.matmul %112, %114, %cst_136 {dimension_numbers = #tpu.dot_dimension_numbers<[1], [0], [0], [1], [0, 0, 1, 1], [], []>} : vector<48x32xf32>, vector<32x32xf32>, vector<48x32xf32> -> vector<48x32xf32>
    %c7_137 = arith.constant 7 : index
    %c0_138 = arith.constant 0 : index
    %116 = vector.load %arg6[%c7_137, %c0_138] : memref<64x32xf32, #tpu.memory_space<vmem>>, vector<48x32xf32>
    %c3_139 = arith.constant 3 : index
    %c1_140 = arith.constant 1 : index
    %c0_141 = arith.constant 0 : index
    %c0_142 = arith.constant 0 : index
    %117 = vector.load %arg2[%c3_139, %c1_140, %c0_141, %c0_142] : memref<5x5x32x32xf32, #tpu.memory_space<vmem>>, vector<1x1x32x32xf32>
    %118 = vector.shape_cast %117 : vector<1x1x32x32xf32> to vector<32x32xf32>
    %cst_143 = arith.constant dense<0.000000e+00> : vector<48x32xf32>
    %119 = tpu.matmul %116, %118, %cst_143 {dimension_numbers = #tpu.dot_dimension_numbers<[1], [0], [0], [1], [0, 0, 1, 1], [], []>} : vector<48x32xf32>, vector<32x32xf32>, vector<48x32xf32> -> vector<48x32xf32>
    %120 = arith.addf %115, %119 : vector<48x32xf32>
    %c8_144 = arith.constant 8 : index
    %c0_145 = arith.constant 0 : index
    %121 = vector.load %arg6[%c8_144, %c0_145] : memref<64x32xf32, #tpu.memory_space<vmem>>, vector<48x32xf32>
    %c3_146 = arith.constant 3 : index
    %c2_147 = arith.constant 2 : index
    %c0_148 = arith.constant 0 : index
    %c0_149 = arith.constant 0 : index
    %122 = vector.load %arg2[%c3_146, %c2_147, %c0_148, %c0_149] : memref<5x5x32x32xf32, #tpu.memory_space<vmem>>, vector<1x1x32x32xf32>
    %123 = vector.shape_cast %122 : vector<1x1x32x32xf32> to vector<32x32xf32>
    %cst_150 = arith.constant dense<0.000000e+00> : vector<48x32xf32>
    %124 = tpu.matmul %121, %123, %cst_150 {dimension_numbers = #tpu.dot_dimension_numbers<[1], [0], [0], [1], [0, 0, 1, 1], [], []>} : vector<48x32xf32>, vector<32x32xf32>, vector<48x32xf32> -> vector<48x32xf32>
    %125 = arith.addf %120, %124 : vector<48x32xf32>
    %c9_151 = arith.constant 9 : index
    %c0_152 = arith.constant 0 : index
    %126 = vector.load %arg6[%c9_151, %c0_152] : memref<64x32xf32, #tpu.memory_space<vmem>>, vector<48x32xf32>
    %c3_153 = arith.constant 3 : index
    %c3_154 = arith.constant 3 : index
    %c0_155 = arith.constant 0 : index
    %c0_156 = arith.constant 0 : index
    %127 = vector.load %arg2[%c3_153, %c3_154, %c0_155, %c0_156] : memref<5x5x32x32xf32, #tpu.memory_space<vmem>>, vector<1x1x32x32xf32>
    %128 = vector.shape_cast %127 : vector<1x1x32x32xf32> to vector<32x32xf32>
    %cst_157 = arith.constant dense<0.000000e+00> : vector<48x32xf32>
    %129 = tpu.matmul %126, %128, %cst_157 {dimension_numbers = #tpu.dot_dimension_numbers<[1], [0], [0], [1], [0, 0, 1, 1], [], []>} : vector<48x32xf32>, vector<32x32xf32>, vector<48x32xf32> -> vector<48x32xf32>
    %130 = arith.addf %125, %129 : vector<48x32xf32>
    %c10_158 = arith.constant 10 : index
    %c0_159 = arith.constant 0 : index
    %131 = vector.load %arg6[%c10_158, %c0_159] : memref<64x32xf32, #tpu.memory_space<vmem>>, vector<48x32xf32>
    %c3_160 = arith.constant 3 : index
    %c4_161 = arith.constant 4 : index
    %c0_162 = arith.constant 0 : index
    %c0_163 = arith.constant 0 : index
    %132 = vector.load %arg2[%c3_160, %c4_161, %c0_162, %c0_163] : memref<5x5x32x32xf32, #tpu.memory_space<vmem>>, vector<1x1x32x32xf32>
    %133 = vector.shape_cast %132 : vector<1x1x32x32xf32> to vector<32x32xf32>
    %cst_164 = arith.constant dense<0.000000e+00> : vector<48x32xf32>
    %134 = tpu.matmul %131, %133, %cst_164 {dimension_numbers = #tpu.dot_dimension_numbers<[1], [0], [0], [1], [0, 0, 1, 1], [], []>} : vector<48x32xf32>, vector<32x32xf32>, vector<48x32xf32> -> vector<48x32xf32>
    %135 = arith.addf %130, %134 : vector<48x32xf32>
    %c3_165 = arith.constant 3 : index
    %c0_166 = arith.constant 0 : index
    %c0_167 = arith.constant 0 : index
    %136 = vector.load %arg3[%c3_165, %c0_166, %c0_167] : memref<5x1x32xf32, #tpu.memory_space<vmem>>, vector<1x1x32xf32>
    %137 = vector.shape_cast %136 : vector<1x1x32xf32> to vector<1x32xf32>
    %138 = vector.broadcast %137 : vector<1x32xf32> to vector<48x32xf32>
    %139 = arith.addf %135, %138 : vector<48x32xf32>
    %140 = vector.extract_strided_slice %139 {offsets = [0, 0], sizes = [16, 32], strides = [1, 1]} : vector<48x32xf32> to vector<16x32xf32>
    %141 = math.tanh %140 : vector<16x32xf32>
    %c8_168 = arith.constant 8 : index
    %c0_169 = arith.constant 0 : index
    %142 = vector.load %arg5[%c8_168, %c0_169] : memref<64x32xf32, #tpu.memory_space<vmem>>, vector<16x32xf32>
    tpu.vector_store %arg5[%c8_168, %c0_169], %141 {strides = array<i32>} : memref<64x32xf32, #tpu.memory_space<vmem>>, vector<16x32xf32>,
    %143 = vector.extract_strided_slice %139 {offsets = [32, 0], sizes = [16, 32], strides = [1, 1]} : vector<48x32xf32> to vector<16x32xf32>
    %144 = math.tanh %143 : vector<16x32xf32>
    %c40_170 = arith.constant 40 : index
    %c0_171 = arith.constant 0 : index
    %145 = vector.load %arg5[%c40_170, %c0_171] : memref<64x32xf32, #tpu.memory_space<vmem>>, vector<16x32xf32>
    tpu.vector_store %arg5[%c40_170, %c0_171], %144 {strides = array<i32>} : memref<64x32xf32, #tpu.memory_space<vmem>>, vector<16x32xf32>,
    %c6_172 = arith.constant 6 : index
    %c0_173 = arith.constant 0 : index
    %146 = vector.load %arg5[%c6_172, %c0_173] : memref<64x32xf32, #tpu.memory_space<vmem>>, vector<48x32xf32>
    %c4_174 = arith.constant 4 : index
    %c0_175 = arith.constant 0 : index
    %c0_176 = arith.constant 0 : index
    %c0_177 = arith.constant 0 : index
    %147 = vector.load %arg2[%c4_174, %c0_175, %c0_176, %c0_177] : memref<5x5x32x32xf32, #tpu.memory_space<vmem>>, vector<1x1x32x32xf32>
    %148 = vector.shape_cast %147 : vector<1x1x32x32xf32> to vector<32x32xf32>
    %cst_178 = arith.constant dense<0.000000e+00> : vector<48x32xf32>
    %149 = tpu.matmul %146, %148, %cst_178 {dimension_numbers = #tpu.dot_dimension_numbers<[1], [0], [0], [1], [0, 0, 1, 1], [], []>} : vector<48x32xf32>, vector<32x32xf32>, vector<48x32xf32> -> vector<48x32xf32>
    %c7_179 = arith.constant 7 : index
    %c0_180 = arith.constant 0 : index
    %150 = vector.load %arg5[%c7_179, %c0_180] : memref<64x32xf32, #tpu.memory_space<vmem>>, vector<48x32xf32>
    %c4_181 = arith.constant 4 : index
    %c1_182 = arith.constant 1 : index
    %c0_183 = arith.constant 0 : index
    %c0_184 = arith.constant 0 : index
    %151 = vector.load %arg2[%c4_181, %c1_182, %c0_183, %c0_184] : memref<5x5x32x32xf32, #tpu.memory_space<vmem>>, vector<1x1x32x32xf32>
    %152 = vector.shape_cast %151 : vector<1x1x32x32xf32> to vector<32x32xf32>
    %cst_185 = arith.constant dense<0.000000e+00> : vector<48x32xf32>
    %153 = tpu.matmul %150, %152, %cst_185 {dimension_numbers = #tpu.dot_dimension_numbers<[1], [0], [0], [1], [0, 0, 1, 1], [], []>} : vector<48x32xf32>, vector<32x32xf32>, vector<48x32xf32> -> vector<48x32xf32>
    %154 = arith.addf %149, %153 : vector<48x32xf32>
    %c8_186 = arith.constant 8 : index
    %c0_187 = arith.constant 0 : index
    %155 = vector.load %arg5[%c8_186, %c0_187] : memref<64x32xf32, #tpu.memory_space<vmem>>, vector<48x32xf32>
    %c4_188 = arith.constant 4 : index
    %c2_189 = arith.constant 2 : index
    %c0_190 = arith.constant 0 : index
    %c0_191 = arith.constant 0 : index
    %156 = vector.load %arg2[%c4_188, %c2_189, %c0_190, %c0_191] : memref<5x5x32x32xf32, #tpu.memory_space<vmem>>, vector<1x1x32x32xf32>
    %157 = vector.shape_cast %156 : vector<1x1x32x32xf32> to vector<32x32xf32>
    %cst_192 = arith.constant dense<0.000000e+00> : vector<48x32xf32>
    %158 = tpu.matmul %155, %157, %cst_192 {dimension_numbers = #tpu.dot_dimension_numbers<[1], [0], [0], [1], [0, 0, 1, 1], [], []>} : vector<48x32xf32>, vector<32x32xf32>, vector<48x32xf32> -> vector<48x32xf32>
    %159 = arith.addf %154, %158 : vector<48x32xf32>
    %c9_193 = arith.constant 9 : index
    %c0_194 = arith.constant 0 : index
    %160 = vector.load %arg5[%c9_193, %c0_194] : memref<64x32xf32, #tpu.memory_space<vmem>>, vector<48x32xf32>
    %c4_195 = arith.constant 4 : index
    %c3_196 = arith.constant 3 : index
    %c0_197 = arith.constant 0 : index
    %c0_198 = arith.constant 0 : index
    %161 = vector.load %arg2[%c4_195, %c3_196, %c0_197, %c0_198] : memref<5x5x32x32xf32, #tpu.memory_space<vmem>>, vector<1x1x32x32xf32>
    %162 = vector.shape_cast %161 : vector<1x1x32x32xf32> to vector<32x32xf32>
    %cst_199 = arith.constant dense<0.000000e+00> : vector<48x32xf32>
    %163 = tpu.matmul %160, %162, %cst_199 {dimension_numbers = #tpu.dot_dimension_numbers<[1], [0], [0], [1], [0, 0, 1, 1], [], []>} : vector<48x32xf32>, vector<32x32xf32>, vector<48x32xf32> -> vector<48x32xf32>
    %164 = arith.addf %159, %163 : vector<48x32xf32>
    %c10_200 = arith.constant 10 : index
    %c0_201 = arith.constant 0 : index
    %165 = vector.load %arg5[%c10_200, %c0_201] : memref<64x32xf32, #tpu.memory_space<vmem>>, vector<48x32xf32>
    %c4_202 = arith.constant 4 : index
    %c4_203 = arith.constant 4 : index
    %c0_204 = arith.constant 0 : index
    %c0_205 = arith.constant 0 : index
    %166 = vector.load %arg2[%c4_202, %c4_203, %c0_204, %c0_205] : memref<5x5x32x32xf32, #tpu.memory_space<vmem>>, vector<1x1x32x32xf32>
    %167 = vector.shape_cast %166 : vector<1x1x32x32xf32> to vector<32x32xf32>
    %cst_206 = arith.constant dense<0.000000e+00> : vector<48x32xf32>
    %168 = tpu.matmul %165, %167, %cst_206 {dimension_numbers = #tpu.dot_dimension_numbers<[1], [0], [0], [1], [0, 0, 1, 1], [], []>} : vector<48x32xf32>, vector<32x32xf32>, vector<48x32xf32> -> vector<48x32xf32>
    %169 = arith.addf %164, %168 : vector<48x32xf32>
    %c4_207 = arith.constant 4 : index
    %c0_208 = arith.constant 0 : index
    %c0_209 = arith.constant 0 : index
    %170 = vector.load %arg3[%c4_207, %c0_208, %c0_209] : memref<5x1x32xf32, #tpu.memory_space<vmem>>, vector<1x1x32xf32>
    %171 = vector.shape_cast %170 : vector<1x1x32xf32> to vector<1x32xf32>
    %172 = vector.broadcast %171 : vector<1x32xf32> to vector<48x32xf32>
    %173 = arith.addf %169, %172 : vector<48x32xf32>
    %174 = vector.extract_strided_slice %173 {offsets = [0, 0], sizes = [16, 32], strides = [1, 1]} : vector<48x32xf32> to vector<16x32xf32>
    %175 = vector.extract_strided_slice %174 {offsets = [0, 0], sizes = [16, 16], strides = [1, 1]} : vector<16x32xf32> to vector<16x16xf32>
    %c0_210 = arith.constant 0 : index
    %c0_211 = arith.constant 0 : index
    %c0_212 = arith.constant 0 : index
    %176 = vector.load %arg4[%c0_210, %c0_211, %c0_212] : memref<2x16x16xf32, #tpu.memory_space<vmem>>, vector<1x16x16xf32>
    %177 = vector.shape_cast %176 : vector<1x16x16xf32> to vector<16x16xf32>
    %178 = vector.shape_cast %175 : vector<16x16xf32> to vector<1x16x16xf32>
    tpu.vector_store %arg4[%c0_210, %c0_211, %c0_212], %178 {strides = array<i32>} : memref<2x16x16xf32, #tpu.memory_space<vmem>>, vector<1x16x16xf32>,
    %179 = vector.extract_strided_slice %173 {offsets = [32, 0], sizes = [16, 32], strides = [1, 1]} : vector<48x32xf32> to vector<16x32xf32>
    %180 = vector.extract_strided_slice %179 {offsets = [0, 0], sizes = [16, 16], strides = [1, 1]} : vector<16x32xf32> to vector<16x16xf32>
    %c1_213 = arith.constant 1 : index
    %c0_214 = arith.constant 0 : index
    %c0_215 = arith.constant 0 : index
    %181 = vector.load %arg4[%c1_213, %c0_214, %c0_215] : memref<2x16x16xf32, #tpu.memory_space<vmem>>, vector<1x16x16xf32>
    %182 = vector.shape_cast %181 : vector<1x16x16xf32> to vector<16x16xf32>
    %183 = vector.shape_cast %180 : vector<16x16xf32> to vector<1x16x16xf32>
    tpu.vector_store %arg4[%c1_213, %c0_214, %c0_215], %183 {strides = array<i32>} : memref<2x16x16xf32, #tpu.memory_space<vmem>>, vector<1x16x16xf32>,
    return
  }
  func.func @transform_0(%arg0: i32) -> (i32, i32, i32) {
    %c0_i32 = arith.constant 0 : i32
    %c0_i32_0 = arith.constant 0 : i32
    %c0_i32_1 = arith.constant 0 : i32
    %c0_i32_2 = arith.constant 0 : i32
    return %c0_i32, %c0_i32_0, %c0_i32_1 : i32, i32, i32
  }
  func.func @transform_1(%arg0: i32) -> (i32, i32, i32, i32) {
    %c0_i32 = arith.constant 0 : i32
    %c0_i32_0 = arith.constant 0 : i32
    %c0_i32_1 = arith.constant 0 : i32
    %c0_i32_2 = arith.constant 0 : i32
    %c0_i32_3 = arith.constant 0 : i32
    return %c0_i32, %c0_i32_0, %c0_i32_1, %c0_i32_2 : i32, i32, i32, i32
  }
  func.func @transform_2(%arg0: i32) -> (i32, i32, i32) {
    %c0_i32 = arith.constant 0 : i32
    %c0_i32_0 = arith.constant 0 : i32
    %c0_i32_1 = arith.constant 0 : i32
    %c0_i32_2 = arith.constant 0 : i32
    return %c0_i32, %c0_i32_0, %c0_i32_1 : i32, i32, i32
  }
  func.func @transform_3(%arg0: i32) -> (i32, i32, i32) {
    %c0_i32 = arith.constant 0 : i32
    %c0_i32_0 = arith.constant 0 : i32
    %c0_i32_1 = arith.constant 0 : i32
    %c0_i32_2 = arith.constant 0 : i32
    return %c0_i32, %c0_i32_0, %c0_i32_1 : i32, i32, i32
  }
}

</mosaic_0001>

<llo_original>
// kernel: tpu_custom_call.1
$region0: #{tpu_custom_call.1}
  #allocation0 [shape = 'u32[]', space=smem, size = 0x4, offset = 0x4, fixed_abs, tag = 'smem constant byte address 0x4 - core index']
  #allocation1 [shape = 'u32[144,128]{1,0:T(1,128)}', space=vmem, size = 0x12000, scoped, tag = 'internal scratch']
  #allocation2 [shape = 'f32[64,32]{1,0:T(8,128)}', space=vmem, size = 0x8000, scoped, tag = 'scratch operand']
  #allocation3 [shape = 'f32[64,32]{1,0:T(8,128)}', space=vmem, size = 0x8000, scoped, tag = 'scratch operand']
  %s0 = inlined_call_operand.hbm [shape: f32[2,16,16], index: 0, kind: input, shape index: {}]
  %s1 = inlined_call_operand.hbm [shape: f32[5,5,32,32], index: 1, kind: input, shape index: {}]
  %s2 = inlined_call_operand.hbm [shape: f32[5,1,32], index: 2, kind: input, shape index: {}]
  %s3 = inlined_call_operand.hbm [shape: f32[2,16,16], index: 3, kind: output, shape index: {}]
  %s4 = sld [smem:[#allocation0]]
  $region34: #{tpu_custom_call.1} parent=0
    _
  %s6 = ssub.s32 1, %s4
  %s7 = scalar_select 0, %s6, %s4
  $region1: #{tpu_custom_call.1} parent=0
    #allocation4 [shape = 'u8[16384]{0}', space=vmem, size = 0x4000, scoped, tag = 'input window, operand 0, single buffered']
    #allocation5 [shape = 's32[1]{0}', space=sflag, size = 0x4, scoped, tag = 'scoped memory for tpu_custom_call.1']
    #allocation6 [shape = 's32[1]{0}', space=sflag, size = 0x4, scoped, tag = 'scoped memory for tpu_custom_call.1']
    #allocation7 [shape = 'u8[409600]{0}', space=vmem, size = 0x64000, scoped, tag = 'input window, operand 1, single buffered']
    #allocation8 [shape = 's32[1]{0}', space=sflag, size = 0x4, scoped, tag = 'scoped memory for tpu_custom_call.1']
    #allocation9 [shape = 'u8[2560]{0}', space=vmem, size = 0xc00, scoped, tag = 'input window, operand 2, single buffered']
    #allocation10 [shape = 'u8[16384]{0}', space=vmem, size = 0x4000, scoped, tag = 'output window, operand 0, single buffered']
    %8 = vsyncpa [#allocation5], 0
    %9 = vsyncpa [#allocation8], 0
    %10 = vsyncpa [#allocation6], 0
    // Predicated region
    $region2: #{tpu_custom_call.1} parent=1 // pred_check
      _
    $region3: #{tpu_custom_call.1} parent=1 // pred_check_branch
      %12 = sbr.rel (0) target = $region5
    $region4: #{tpu_custom_call.1} parent=1 // pred_region
      %s14 = ssub.s32 512, 512
      %15 = vsyncadd [#allocation5], %s14
      %s16 = sshll.u32 [#allocation4], 4
      %s17 = int_to_ptr.vmem [resolvable:$true] %s16
      %22 = dma.hbm_to_vmem [thread:$0]  %s0, 512, %s17, [#allocation5], 128, 128, 8
    $region5: #{tpu_custom_call.1} parent=1 // pred_fallthru
      _
    // Predicated region
    $region6: #{tpu_custom_call.1} parent=1 // pred_check
      _
    $region7: #{tpu_custom_call.1} parent=1 // pred_check_branch
      %24 = sbr.rel (0) target = $region9
    $region8: #{tpu_custom_call.1} parent=1 // pred_region
      %s26 = ssub.s32 12800, 12800
      %27 = vsyncadd [#allocation8], %s26
      %s28 = sshll.u32 [#allocation7], 4
      %s29 = int_to_ptr.vmem [resolvable:$true] %s28
      %34 = dma.hbm_to_vmem [thread:$0]  %s1, 12800, %s29, [#allocation8], 128, 128, 8
    $region9: #{tpu_custom_call.1} parent=1 // pred_fallthru
      _
    // Predicated region
    $region10: #{tpu_custom_call.1} parent=1 // pred_check
      _
    $region11: #{tpu_custom_call.1} parent=1 // pred_check_branch
      %36 = sbr.rel (0) target = $region13
    $region12: #{tpu_custom_call.1} parent=1 // pred_region
      %s38 = ssub.s32 80, 80
      %39 = vsyncadd [#allocation8], %s38
      %s40 = sshll.u32 [#allocation9], 4
      %s41 = int_to_ptr.vmem [resolvable:$true] %s40
      %46 = dma.hbm_to_vmem [thread:$0]  %s2, 80, %s41, [#allocation8], 16, 16, 1
    $region13: #{tpu_custom_call.1} parent=1 // pred_fallthru
      _
    // Predicated region
    $region14: #{tpu_custom_call.1} parent=1 // pred_check
      _
    $region15: #{tpu_custom_call.1} parent=1 // pred_check_branch
      %48 = sbr.rel (0) target = $region17
    $region16: #{tpu_custom_call.1} parent=1 // pred_region
      %49 = dma.done [#allocation5], 512
    $region17: #{tpu_custom_call.1} parent=1 // pred_fallthru
      _
    // Predicated region
    $region18: #{tpu_custom_call.1} parent=1 // pred_check
      _
    $region19: #{tpu_custom_call.1} parent=1 // pred_check_branch
      %51 = sbr.rel (0) target = $region21
    $region20: #{tpu_custom_call.1} parent=1 // pred_region
      %52 = dma.done [#allocation8], 12800
    $region21: #{tpu_custom_call.1} parent=1 // pred_fallthru
      _
    // Predicated region
    $region22: #{tpu_custom_call.1} parent=1 // pred_check
      _
    $region23: #{tpu_custom_call.1} parent=1 // pred_check_branch
      %54 = sbr.rel (0) target = $region25
    $region24: #{tpu_custom_call.1} parent=1 // pred_region
      %55 = dma.done [#allocation8], 80
    $region25: #{tpu_custom_call.1} parent=1 // pred_fallthru
      _
    %vm56 = vcmask 261120
    %57 = vst.msk [vmem:[#allocation2] sm:$0xff] %vm56, 0.0
    %58 = vst.msk [vmem:[#allocation2 + $0x8] sm:$0xff] %vm56, 0.0
    %59 = vst.msk [vmem:[#allocation2 + $0x10] sm:$0xff] %vm56, 0.0
    %60 = vst.msk [vmem:[#allocation2 + $0x18] sm:$0xff] %vm56, 0.0
    %61 = vst.msk [vmem:[#allocation2 + $0x20] sm:$0xff] %vm56, 0.0
    %62 = vst.msk [vmem:[#allocation2 + $0x28] sm:$0xff] %vm56, 0.0
    %63 = vst.msk [vmem:[#allocation2 + $0x30] sm:$0xff] %vm56, 0.0
    %64 = vst.msk [vmem:[#allocation2 + $0x38] sm:$0xff] %vm56, 0.0
    %65 = vst.msk [vmem:[#allocation3] sm:$0xff] %vm56, 0.0
    %66 = vst.msk [vmem:[#allocation3 + $0x8] sm:$0xff] %vm56, 0.0
    %67 = vst.msk [vmem:[#allocation3 + $0x10] sm:$0xff] %vm56, 0.0
    %68 = vst.msk [vmem:[#allocation3 + $0x18] sm:$0xff] %vm56, 0.0
    %69 = vst.msk [vmem:[#allocation3 + $0x20] sm:$0xff] %vm56, 0.0
    %70 = vst.msk [vmem:[#allocation3 + $0x28] sm:$0xff] %vm56, 0.0
    %71 = vst.msk [vmem:[#allocation3 + $0x30] sm:$0xff] %vm56, 0.0
    %72 = vst.msk [vmem:[#allocation3 + $0x38] sm:$0xff] %vm56, 0.0
    %v73 = vld [vmem:[#allocation4] sm:$0xff]
    %v74 = vld [vmem:[#allocation4 + $0x8] sm:$0xff]
    %vm75 = vcmask 130048
    %76 = vst.msk [vmem:[#allocation2 + $0x8] sm:$0xff] %vm75, %v73
    %77 = vst.msk [vmem:[#allocation2 + $0x10] sm:$0xff] %vm75, %v74
    %s78 = scalar_lea.vmem [#allocation4], 16
    %v79 = vld [vmem:[%s78] sm:$0xff]
    %v80 = vld [vmem:[%s78 + $0x8] sm:$0xff]
    %81 = vst.msk [vmem:[#allocation2 + $0x28] sm:$0xff] %vm75, %v79
    %82 = vst.msk [vmem:[#allocation2 + $0x30] sm:$0xff] %vm75, %v80
    %v83 = vld [vmem:[#allocation2 + $0x6] sm:$0xff]
    %v84 = vld [vmem:[#allocation2 + $0xe] sm:$0xff]
    %v85 = vld [vmem:[#allocation2 + $0x16] sm:$0xff]
    %v86 = vld [vmem:[#allocation2 + $0x1e] sm:$0xff]
    %v87 = vld [vmem:[#allocation2 + $0x26] sm:$0xff]
    %v88 = vld [vmem:[#allocation2 + $0x2e] sm:$0xff]
    %v89 = vld [vmem:[#allocation7] sm:$0xff]
    %v90 = vld [vmem:[#allocation7 + $0x8] sm:$0xff]
    %v91 = vld [vmem:[#allocation7 + $0x10] sm:$0xff]
    %v92 = vld [vmem:[#allocation7 + $0x18] sm:$0xff]
    %v93 = vld [vmem:[#allocation2 + $0x7] sm:$0xff]
    %v94 = vld [vmem:[#allocation2 + $0xf] sm:$0xff]
    %v95 = vld [vmem:[#allocation2 + $0x17] sm:$0xff]
    %v96 = vld [vmem:[#allocation2 + $0x1f] sm:$0xff]
    %v97 = vld [vmem:[#allocation2 + $0x27] sm:$0xff]
    %v98 = vld [vmem:[#allocation2 + $0x2f] sm:$0xff]
    %s99 = scalar_lea.vmem [#allocation7], 32
    %v100 = vld [vmem:[%s99] sm:$0xff]
    %v101 = vld [vmem:[%s99 + $0x8] sm:$0xff]
    %v102 = vld [vmem:[%s99 + $0x10] sm:$0xff]
    %v103 = vld [vmem:[%s99 + $0x18] sm:$0xff]
    %v105 = vsel %vm56, %v93, 0
    %v108 = vsel %vm56, %v94, 0
    %v111 = vsel %vm56, %v95, 0
    %v114 = vsel %vm56, %v96, 0
    %v117 = vsel %vm56, %v97, 0
    %v120 = vsel %vm56, %v98, 0
    %122 = vmatprep.subr.mxu0 0.0
    %123 = vmatpush1.msra.mxu0 0.0
    %124 = vmatprep.subr.mxu0 0.0
    %125 = vmatpush1.msra.mxu0 0.0
    %126 = vmatprep.subr.mxu0 0.0
    %127 = vmatpush1.msra.mxu0 0.0
    %128 = vmatprep.subr.mxu0 0.0
    %129 = vmatpush1.msra.mxu0 0.0
    %130 = vmatprep.subr.mxu0 0.0
    %131 = vmatpush1.msra.mxu0 0.0
    %132 = vmatprep.subr.mxu0 0.0
    %133 = vmatpush1.msra.mxu0 0.0
    %134 = vmatprep.subr.mxu0 0.0
    %135 = vmatpush1.msra.mxu0 0.0
    %136 = vmatprep.subr.mxu0 0.0
    %137 = vmatpush1.msra.mxu0 0.0
    %138 = vmatprep.subr.mxu0 0.0
    %139 = vmatpush1.msra.mxu0 0.0
    %140 = vmatprep.subr.mxu0 0.0
    %141 = vmatpush1.msra.mxu0 0.0
    %142 = vmatprep.subr.mxu0 0.0
    %143 = vmatpush1.msra.mxu0 0.0
    %144 = vmatprep.subr.mxu0 0.0
    %145 = vmatpush1.msra.mxu0 0.0
    %146 = vmatprep.subr.mxu0 0.0
    %147 = vmatpush1.msra.mxu0 %v103
    %148 = vmatprep.subr.mxu0 0.0
    %149 = vmatpush1.msra.mxu0 %v102
    %150 = vmatprep.subr.mxu0 0.0
    %151 = vmatpush1.msra.mxu0 %v101
    %152 = vmatprep.subr.mxu0 0.0
    %153 = vmatpush1.msra.mxu0 %v100
    %154 = vmatprep.subr.mxu0 0.0
    %155 = vmatpush2.msra.mxu0 0.0
    %156 = vmatprep.subr.mxu0 0.0
    %157 = vmatpush2.msra.mxu0 0.0
    %158 = vmatprep.subr.mxu0 0.0
    %159 = vmatpush2.msra.mxu0 0.0
    %160 = vmatprep.subr.mxu0 0.0
    %161 = vmatpush2.msra.mxu0 0.0
    %162 = vmatprep.subr.mxu0 0.0
    %163 = vmatpush2.msra.mxu0 0.0
    %164 = vmatprep.subr.mxu0 0.0
    %165 = vmatpush2.msra.mxu0 0.0
    %166 = vmatprep.subr.mxu0 0.0
    %167 = vmatpush2.msra.mxu0 0.0
    %168 = vmatprep.subr.mxu0 0.0
    %169 = vmatpush2.msra.mxu0 0.0
    %170 = vmatprep.subr.mxu0 0.0
    %171 = vmatpush2.msra.mxu0 0.0
    %172 = vmatprep.subr.mxu0 0.0
    %173 = vmatpush2.msra.mxu0 0.0
    %174 = vmatprep.subr.mxu0 0.0
    %175 = vmatpush2.msra.mxu0 0.0
    %176 = vmatprep.subr.mxu0 0.0
    %177 = vmatpush2.msra.mxu0 0.0
    %178 = vmatprep.subr.mxu0 0.0
    %179 = vmatpush2.msra.mxu0 0.0
    %180 = vmatprep.subr.mxu0 0.0
    %181 = vmatpush2.msra.mxu0 0.0
    %182 = vmatprep.subr.mxu0 0.0
    %183 = vmatpush2.msra.mxu0 0.0
    %184 = vmatprep.subr.mxu0 0.0
    %185 = vmatpush2.msra.mxu0 0.0
    %186 = vmatprep.mubr.f32.mxu0 0.0
    %187 = vmatmul.mubr.f32.gmra.mxu0 %v105
    %v188 = vpop.f32.mrf.mxu0
    %v189 = vadd.f32 0.0, %v188
    %v190 = vpop.f32.mrf.mxu0
    %191 = vmatprep.mubr.f32.mxu0 0.0
    %192 = vmatmul.mubr.f32.gmra.mxu0 %v108
    %v193 = vpop.f32.mrf.mxu0
    %v194 = vadd.f32 0.0, %v193
    %v195 = vpop.f32.mrf.mxu0
    %196 = vmatprep.mubr.f32.mxu0 0.0
    %197 = vmatmul.mubr.f32.gmra.mxu0 %v111
    %v198 = vpop.f32.mrf.mxu0
    %v199 = vpop.f32.mrf.mxu0
    %200 = vmatprep.mubr.f32.mxu0 0.0
    %201 = vmatmul.mubr.f32.gmra.mxu0 %v114
    %v202 = vpop.f32.mrf.mxu0
    %v203 = vpop.f32.mrf.mxu0
    %204 = vmatprep.mubr.f32.mxu0 0.0
    %205 = vmatmul.mubr.f32.gmra.mxu0 %v117
    %v206 = vpop.f32.mrf.mxu0
    %v207 = vadd.f32 0.0, %v206
    %v208 = vpop.f32.mrf.mxu0
    %209 = vmatprep.mubr.f32.mxu0 0.0
    %210 = vmatmul.mubr.f32.gmra.mxu0 %v120
    %v211 = vpop.f32.mrf.mxu0
    %v212 = vadd.f32 0.0, %v211
    %v213 = vpop.f32.mrf.mxu0
    %214 = vdwg.mxu0
    %v216 = vsel %vm56, %v83, 0
    %v219 = vsel %vm56, %v84, 0
    %v222 = vsel %vm56, %v85, 0
    %v225 = vsel %vm56, %v86, 0
    %v228 = vsel %vm56, %v87, 0
    %v231 = vsel %vm56, %v88, 0
    %233 = vmatprep.subr.mxu0 0.0
    %234 = vmatpush1.msra.mxu0 0.0
    %235 = vmatprep.subr.mxu0 0.0
    %236 = vmatpush1.msra.mxu0 0.0
    %237 = vmatprep.subr.mxu0 0.0
    %238 = vmatpush1.msra.mxu0 0.0
    %239 = vmatprep.subr.mxu0 0.0
    %240 = vmatpush1.msra.mxu0 0.0
    %241 = vmatprep.subr.mxu0 0.0
    %242 = vmatpush1.msra.mxu0 0.0
    %243 = vmatprep.subr.mxu0 0.0
    %244 = vmatpush1.msra.mxu0 0.0
    %245 = vmatprep.subr.mxu0 0.0
    %246 = vmatpush1.msra.mxu0 0.0
    %247 = vmatprep.subr.mxu0 0.0
    %248 = vmatpush1.msra.mxu0 0.0
    %249 = vmatprep.subr.mxu0 0.0
    %250 = vmatpush1.msra.mxu0 0.0
    %251 = vmatprep.subr.mxu0 0.0
    %252 = vmatpush1.msra.mxu0 0.0
    %253 = vmatprep.subr.mxu0 0.0
    %254 = vmatpush1.msra.mxu0 0.0
    %255 = vmatprep.subr.mxu0 0.0
    %256 = vmatpush1.msra.mxu0 0.0
    %257 = vmatprep.subr.mxu0 0.0
    %258 = vmatpush1.msra.mxu0 %v92
    %259 = vmatprep.subr.mxu0 0.0
    %260 = vmatpush1.msra.mxu0 %v91
    %261 = vmatprep.subr.mxu0 0.0
    %262 = vmatpush1.msra.mxu0 %v90
    %263 = vmatprep.subr.mxu0 0.0
    %264 = vmatpush1.msra.mxu0 %v89
    %265 = vmatprep.subr.mxu0 0.0
    %266 = vmatpush2.msra.mxu0 0.0
    %267 = vmatprep.subr.mxu0 0.0
    %268 = vmatpush2.msra.mxu0 0.0
    %269 = vmatprep.subr.mxu0 0.0
    %270 = vmatpush2.msra.mxu0 0.0
    %271 = vmatprep.subr.mxu0 0.0
    %272 = vmatpush2.msra.mxu0 0.0
    %273 = vmatprep.subr.mxu0 0.0
    %274 = vmatpush2.msra.mxu0 0.0
    %275 = vmatprep.subr.mxu0 0.0
    %276 = vmatpush2.msra.mxu0 0.0
    %277 = vmatprep.subr.mxu0 0.0
    %278 = vmatpush2.msra.mxu0 0.0
    %279 = vmatprep.subr.mxu0 0.0
    %280 = vmatpush2.msra.mxu0 0.0
    %281 = vmatprep.subr.mxu0 0.0
    %282 = vmatpush2.msra.mxu0 0.0
    %283 = vmatprep.subr.mxu0 0.0
    %284 = vmatpush2.msra.mxu0 0.0
    %285 = vmatprep.subr.mxu0 0.0
    %286 = vmatpush2.msra.mxu0 0.0
    %287 = vmatprep.subr.mxu0 0.0
    %288 = vmatpush2.msra.mxu0 0.0
    %289 = vmatprep.subr.mxu0 0.0
    %290 = vmatpush2.msra.mxu0 0.0
    %291 = vmatprep.subr.mxu0 0.0
    %292 = vmatpush2.msra.mxu0 0.0
    %293 = vmatprep.subr.mxu0 0.0
    %294 = vmatpush2.msra.mxu0 0.0
    %295 = vmatprep.subr.mxu0 0.0
    %296 = vmatpush2.msra.mxu0 0.0
    %297 = vmatprep.mubr.f32.mxu0 0.0
    %298 = vmatmul.mubr.f32.gmra.mxu0 %v216
    %v299 = vpop.f32.mrf.mxu0
    %v300 = vadd.f32 %v189, %v299
    %v301 = vpop.f32.mrf.mxu0
    %302 = vmatprep.mubr.f32.mxu0 0.0
    %303 = vmatmul.mubr.f32.gmra.mxu0 %v219
    %v304 = vpop.f32.mrf.mxu0
    %v305 = vadd.f32 %v194, %v304
    %v306 = vpop.f32.mrf.mxu0
    %307 = vmatprep.mubr.f32.mxu0 0.0
    %308 = vmatmul.mubr.f32.gmra.mxu0 %v222
    %v309 = vpop.f32.mrf.mxu0
    %v310 = vpop.f32.mrf.mxu0
    %311 = vmatprep.mubr.f32.mxu0 0.0
    %312 = vmatmul.mubr.f32.gmra.mxu0 %v225
    %v313 = vpop.f32.mrf.mxu0
    %v314 = vpop.f32.mrf.mxu0
    %315 = vmatprep.mubr.f32.mxu0 0.0
    %316 = vmatmul.mubr.f32.gmra.mxu0 %v228
    %v317 = vpop.f32.mrf.mxu0
    %v318 = vadd.f32 %v207, %v317
    %v319 = vpop.f32.mrf.mxu0
    %320 = vmatprep.mubr.f32.mxu0 0.0
    %321 = vmatmul.mubr.f32.gmra.mxu0 %v231
    %v322 = vpop.f32.mrf.mxu0
    %v323 = vadd.f32 %v212, %v322
    %v324 = vpop.f32.mrf.mxu0
    %325 = vdwg.mxu0
    %v326 = vld [vmem:[#allocation2 + $0x8] sm:$0xff]
    %v327 = vld [vmem:[#allocation2 + $0x10] sm:$0xff]
    %v328 = vld [vmem:[#allocation2 + $0x18] sm:$0xff]
    %v329 = vld [vmem:[#allocation2 + $0x20] sm:$0xff]
    %v330 = vld [vmem:[#allocation2 + $0x28] sm:$0xff]
    %v331 = vld [vmem:[#allocation2 + $0x30] sm:$0xff]
    %s332 = scalar_lea.vmem [#allocation7], 64
    %v333 = vld [vmem:[%s332] sm:$0xff]
    %v334 = vld [vmem:[%s332 + $0x8] sm:$0xff]
    %v335 = vld [vmem:[%s332 + $0x10] sm:$0xff]
    %v336 = vld [vmem:[%s332 + $0x18] sm:$0xff]
    %v338 = vsel %vm56, %v326, 0
    %v341 = vsel %vm56, %v327, 0
    %v344 = vsel %vm56, %v328, 0
    %v347 = vsel %vm56, %v329, 0
    %v350 = vsel %vm56, %v330, 0
    %v353 = vsel %vm56, %v331, 0
    %355 = vmatprep.subr.mxu0 0.0
    %356 = vmatpush1.msra.mxu0 0.0
    %357 = vmatprep.subr.mxu0 0.0
    %358 = vmatpush1.msra.mxu0 0.0
    %359 = vmatprep.subr.mxu0 0.0
    %360 = vmatpush1.msra.mxu0 0.0
    %361 = vmatprep.subr.mxu0 0.0
    %362 = vmatpush1.msra.mxu0 0.0
    %363 = vmatprep.subr.mxu0 0.0
    %364 = vmatpush1.msra.mxu0 0.0
    %365 = vmatprep.subr.mxu0 0.0
    %366 = vmatpush1.msra.mxu0 0.0
    %367 = vmatprep.subr.mxu0 0.0
    %368 = vmatpush1.msra.mxu0 0.0
    %369 = vmatprep.subr.mxu0 0.0
    %370 = vmatpush1.msra.mxu0 0.0
    %371 = vmatprep.subr.mxu0 0.0
    %372 = vmatpush1.msra.mxu0 0.0
    %373 = vmatprep.subr.mxu0 0.0
    %374 = vmatpush1.msra.mxu0 0.0
    %375 = vmatprep.subr.mxu0 0.0
    %376 = vmatpush1.msra.mxu0 0.0
    %377 = vmatprep.subr.mxu0 0.0
    %378 = vmatpush1.msra.mxu0 0.0
    %379 = vmatprep.subr.mxu0 0.0
    %380 = vmatpush1.msra.mxu0 %v336
    %381 = vmatprep.subr.mxu0 0.0
    %382 = vmatpush1.msra.mxu0 %v335
    %383 = vmatprep.subr.mxu0 0.0
    %384 = vmatpush1.msra.mxu0 %v334
    %385 = vmatprep.subr.mxu0 0.0
    %386 = vmatpush1.msra.mxu0 %v333
    %387 = vmatprep.subr.mxu0 0.0
    %388 = vmatpush2.msra.mxu0 0.0
    %389 = vmatprep.subr.mxu0 0.0
    %390 = vmatpush2.msra.mxu0 0.0
    %391 = vmatprep.subr.mxu0 0.0
    %392 = vmatpush2.msra.mxu0 0.0
    %393 = vmatprep.subr.mxu0 0.0
    %394 = vmatpush2.msra.mxu0 0.0
    %395 = vmatprep.subr.mxu0 0.0
    %396 = vmatpush2.msra.mxu0 0.0
    %397 = vmatprep.subr.mxu0 0.0
    %398 = vmatpush2.msra.mxu0 0.0
    %399 = vmatprep.subr.mxu0 0.0
    %400 = vmatpush2.msra.mxu0 0.0
    %401 = vmatprep.subr.mxu0 0.0
    %402 = vmatpush2.msra.mxu0 0.0
    %403 = vmatprep.subr.mxu0 0.0
    %404 = vmatpush2.msra.mxu0 0.0
    %405 = vmatprep.subr.mxu0 0.0
    %406 = vmatpush2.msra.mxu0 0.0
    %407 = vmatprep.subr.mxu0 0.0
    %408 = vmatpush2.msra.mxu0 0.0
    %409 = vmatprep.subr.mxu0 0.0
    %410 = vmatpush2.msra.mxu0 0.0
    %411 = vmatprep.subr.mxu0 0.0
    %412 = vmatpush2.msra.mxu0 0.0
    %413 = vmatprep.subr.mxu0 0.0
    %414 = vmatpush2.msra.mxu0 0.0
    %415 = vmatprep.subr.mxu0 0.0
    %416 = vmatpush2.msra.mxu0 0.0
    %417 = vmatprep.subr.mxu0 0.0
    %418 = vmatpush2.msra.mxu0 0.0
    %419 = vmatprep.mubr.f32.mxu0 0.0
    %420 = vmatmul.mubr.f32.gmra.mxu0 %v338
    %v421 = vpop.f32.mrf.mxu0
    %v422 = vadd.f32 0.0, %v421
    %v423 = vpop.f32.mrf.mxu0
    %424 = vmatprep.mubr.f32.mxu0 0.0
    %425 = vmatmul.mubr.f32.gmra.mxu0 %v341
    %v426 = vpop.f32.mrf.mxu0
    %v427 = vadd.f32 0.0, %v426
    %v428 = vpop.f32.mrf.mxu0
    %429 = vmatprep.mubr.f32.mxu0 0.0
    %430 = vmatmul.mubr.f32.gmra.mxu0 %v344
    %v431 = vpop.f32.mrf.mxu0
    %v432 = vpop.f32.mrf.mxu0
    %433 = vmatprep.mubr.f32.mxu0 0.0
    %434 = vmatmul.mubr.f32.gmra.mxu0 %v347
    %v435 = vpop.f32.mrf.mxu0
    %v436 = vpop.f32.mrf.mxu0
    %437 = vmatprep.mubr.f32.mxu0 0.0
    %438 = vmatmul.mubr.f32.gmra.mxu0 %v350
    %v439 = vpop.f32.mrf.mxu0
    %v440 = vadd.f32 0.0, %v439
    %v441 = vpop.f32.mrf.mxu0
    %442 = vmatprep.mubr.f32.mxu0 0.0
    %443 = vmatmul.mubr.f32.gmra.mxu0 %v353
    %v444 = vpop.f32.mrf.mxu0
    %v445 = vadd.f32 0.0, %v444
    %v446 = vpop.f32.mrf.mxu0
    %447 = vdwg.mxu0
    %v448 = vadd.f32 %v300, %v422
    %v449 = vadd.f32 %v305, %v427
    %v450 = vadd.f32 %v318, %v440
    %v451 = vadd.f32 %v323, %v445
    %v452 = vld [vmem:[#allocation2 + $0x9] sm:$0xff]
    %v453 = vld [vmem:[#allocation2 + $0x11] sm:$0xff]
    %v454 = vld [vmem:[#allocation2 + $0x19] sm:$0xff]
    %v455 = vld [vmem:[#allocation2 + $0x21] sm:$0xff]
    %v456 = vld [vmem:[#allocation2 + $0x29] sm:$0xff]
    %v457 = vld [vmem:[#allocation2 + $0x31] sm:$0xff]
    %s458 = scalar_lea.vmem [#allocation7], 96
    %v459 = vld [vmem:[%s458] sm:$0xff]
    %v460 = vld [vmem:[%s458 + $0x8] sm:$0xff]
    %v461 = vld [vmem:[%s458 + $0x10] sm:$0xff]
    %v462 = vld [vmem:[%s458 + $0x18] sm:$0xff]
    %v464 = vsel %vm56, %v452, 0
    %v467 = vsel %vm56, %v453, 0
    %v470 = vsel %vm56, %v454, 0
    %v473 = vsel %vm56, %v455, 0
    %v476 = vsel %vm56, %v456, 0
    %v479 = vsel %vm56, %v457, 0
    %481 = vmatprep.subr.mxu0 0.0
    %482 = vmatpush1.msra.mxu0 0.0
    %483 = vmatprep.subr.mxu0 0.0
    %484 = vmatpush1.msra.mxu0 0.0
    %485 = vmatprep.subr.mxu0 0.0
    %486 = vmatpush1.msra.mxu0 0.0
    %487 = vmatprep.subr.mxu0 0.0
    %488 = vmatpush1.msra.mxu0 0.0
    %489 = vmatprep.subr.mxu0 0.0
    %490 = vmatpush1.msra.mxu0 0.0
    %491 = vmatprep.subr.mxu0 0.0
    %492 = vmatpush1.msra.mxu0 0.0
    %493 = vmatprep.subr.mxu0 0.0
    %494 = vmatpush1.msra.mxu0 0.0
    %495 = vmatprep.subr.mxu0 0.0
    %496 = vmatpush1.msra.mxu0 0.0
    %497 = vmatprep.subr.mxu0 0.0
    %498 = vmatpush1.msra.mxu0 0.0
    %499 = vmatprep.subr.mxu0 0.0
    %500 = vmatpush1.msra.mxu0 0.0
    %501 = vmatprep.subr.mxu0 0.0
    %502 = vmatpush1.msra.mxu0 0.0
    %503 = vmatprep.subr.mxu0 0.0
    %504 = vmatpush1.msra.mxu0 0.0
    %505 = vmatprep.subr.mxu0 0.0
    %506 = vmatpush1.msra.mxu0 %v462
    %507 = vmatprep.subr.mxu0 0.0
    %508 = vmatpush1.msra.mxu0 %v461
    %509 = vmatprep.subr.mxu0 0.0
    %510 = vmatpush1.msra.mxu0 %v460
    %511 = vmatprep.subr.mxu0 0.0
    %512 = vmatpush1.msra.mxu0 %v459
    %513 = vmatprep.subr.mxu0 0.0
    %514 = vmatpush2.msra.mxu0 0.0
    %515 = vmatprep.subr.mxu0 0.0
    %516 = vmatpush2.msra.mxu0 0.0
    %517 = vmatprep.subr.mxu0 0.0
    %518 = vmatpush2.msra.mxu0 0.0
    %519 = vmatprep.subr.mxu0 0.0
    %520 = vmatpush2.msra.mxu0 0.0
    %521 = vmatprep.subr.mxu0 0.0
    %522 = vmatpush2.msra.mxu0 0.0
    %523 = vmatprep.subr.mxu0 0.0
    %524 = vmatpush2.msra.mxu0 0.0
    %525 = vmatprep.subr.mxu0 0.0
    %526 = vmatpush2.msra.mxu0 0.0
    %527 = vmatprep.subr.mxu0 0.0
    %528 = vmatpush2.msra.mxu0 0.0
    %529 = vmatprep.subr.mxu0 0.0
    %530 = vmatpush2.msra.mxu0 0.0
    %531 = vmatprep.subr.mxu0 0.0
    %532 = vmatpush2.msra.mxu0 0.0
    %533 = vmatprep.subr.mxu0 0.0
    %534 = vmatpush2.msra.mxu0 0.0
    %535 = vmatprep.subr.mxu0 0.0
    %536 = vmatpush2.msra.mxu0 0.0
    %537 = vmatprep.subr.mxu0 0.0
    %538 = vmatpush2.msra.mxu0 0.0
    %539 = vmatprep.subr.mxu0 0.0
    %540 = vmatpush2.msra.mxu0 0.0
    %541 = vmatprep.subr.mxu0 0.0
    %542 = vmatpush2.msra.mxu0 0.0
    %543 = vmatprep.subr.mxu0 0.0
    %544 = vmatpush2.msra.mxu0 0.0
    %545 = vmatprep.mubr.f32.mxu0 0.0
    %546 = vmatmul.mubr.f32.gmra.mxu0 %v464
    %v547 = vpop.f32.mrf.mxu0
    %v548 = vadd.f32 0.0, %v547
    %v549 = vpop.f32.mrf.mxu0
    %550 = vmatprep.mubr.f32.mxu0 0.0
    %551 = vmatmul.mubr.f32.gmra.mxu0 %v467
    %v552 = vpop.f32.mrf.mxu0
    %v553 = vadd.f32 0.0, %v552
    %v554 = vpop.f32.mrf.mxu0
    %555 = vmatprep.mubr.f32.mxu0 0.0
    %556 = vmatmul.mubr.f32.gmra.mxu0 %v470
    %v557 = vpop.f32.mrf.mxu0
    %v558 = vpop.f32.mrf.mxu0
    %559 = vmatprep.mubr.f32.mxu0 0.0
    %560 = vmatmul.mubr.f32.gmra.mxu0 %v473
    %v561 = vpop.f32.mrf.mxu0
    %v562 = vpop.f32.mrf.mxu0
    %563 = vmatprep.mubr.f32.mxu0 0.0
    %564 = vmatmul.mubr.f32.gmra.mxu0 %v476
    %v565 = vpop.f32.mrf.mxu0
    %v566 = vadd.f32 0.0, %v565
    %v567 = vpop.f32.mrf.mxu0
    %568 = vmatprep.mubr.f32.mxu0 0.0
    %569 = vmatmul.mubr.f32.gmra.mxu0 %v479
    %v570 = vpop.f32.mrf.mxu0
    %v571 = vadd.f32 0.0, %v570
    %v572 = vpop.f32.mrf.mxu0
    %573 = vdwg.mxu0
    %v574 = vadd.f32 %v448, %v548
    %v575 = vadd.f32 %v449, %v553
    %v576 = vadd.f32 %v450, %v566
    %v577 = vadd.f32 %v451, %v571
    %v578 = vld [vmem:[#allocation2 + $0xa] sm:$0xff]
    %v579 = vld [vmem:[#allocation2 + $0x12] sm:$0xff]
    %v580 = vld [vmem:[#allocation2 + $0x1a] sm:$0xff]
    %v581 = vld [vmem:[#allocation2 + $0x22] sm:$0xff]
    %v582 = vld [vmem:[#allocation2 + $0x2a] sm:$0xff]
    %v583 = vld [vmem:[#allocation2 + $0x32] sm:$0xff]
    %s584 = scalar_lea.vmem [#allocation7], 128
    %v585 = vld [vmem:[%s584] sm:$0xff]
    %v586 = vld [vmem:[%s584 + $0x8] sm:$0xff]
    %v587 = vld [vmem:[%s584 + $0x10] sm:$0xff]
    %v588 = vld [vmem:[%s584 + $0x18] sm:$0xff]
    %v590 = vsel %vm56, %v578, 0
    %v593 = vsel %vm56, %v579, 0
    %v596 = vsel %vm56, %v580, 0
    %v599 = vsel %vm56, %v581, 0
    %v602 = vsel %vm56, %v582, 0
    %v605 = vsel %vm56, %v583, 0
    %607 = vmatprep.subr.mxu0 0.0
    %608 = vmatpush1.msra.mxu0 0.0
    %609 = vmatprep.subr.mxu0 0.0
    %610 = vmatpush1.msra.mxu0 0.0
    %611 = vmatprep.subr.mxu0 0.0
    %612 = vmatpush1.msra.mxu0 0.0
    %613 = vmatprep.subr.mxu0 0.0
    %614 = vmatpush1.msra.mxu0 0.0
    %615 = vmatprep.subr.mxu0 0.0
    %616 = vmatpush1.msra.mxu0 0.0
    %617 = vmatprep.subr.mxu0 0.0
    %618 = vmatpush1.msra.mxu0 0.0
    %619 = vmatprep.subr.mxu0 0.0
    %620 = vmatpush1.msra.mxu0 0.0
    %621 = vmatprep.subr.mxu0 0.0
    %622 = vmatpush1.msra.mxu0 0.0
    %623 = vmatprep.subr.mxu0 0.0
    %624 = vmatpush1.msra.mxu0 0.0
    %625 = vmatprep.subr.mxu0 0.0
    %626 = vmatpush1.msra.mxu0 0.0
    %627 = vmatprep.subr.mxu0 0.0
    %628 = vmatpush1.msra.mxu0 0.0
    %629 = vmatprep.subr.mxu0 0.0
    %630 = vmatpush1.msra.mxu0 0.0
    %631 = vmatprep.subr.mxu0 0.0
    %632 = vmatpush1.msra.mxu0 %v588
    %633 = vmatprep.subr.mxu0 0.0
    %634 = vmatpush1.msra.mxu0 %v587
    %635 = vmatprep.subr.mxu0 0.0
    %636 = vmatpush1.msra.mxu0 %v586
    %637 = vmatprep.subr.mxu0 0.0
    %638 = vmatpush1.msra.mxu0 %v585
    %639 = vmatprep.subr.mxu0 0.0
    %640 = vmatpush2.msra.mxu0 0.0
    %641 = vmatprep.subr.mxu0 0.0
    %642 = vmatpush2.msra.mxu0 0.0
    %643 = vmatprep.subr.mxu0 0.0
    %644 = vmatpush2.msra.mxu0 0.0
    %645 = vmatprep.subr.mxu0 0.0
    %646 = vmatpush2.msra.mxu0 0.0
    %647 = vmatprep.subr.mxu0 0.0
    %648 = vmatpush2.msra.mxu0 0.0
    %649 = vmatprep.subr.mxu0 0.0
    %650 = vmatpush2.msra.mxu0 0.0
    %651 = vmatprep.subr.mxu0 0.0
    %652 = vmatpush2.msra.mxu0 0.0
    %653 = vmatprep.subr.mxu0 0.0
    %654 = vmatpush2.msra.mxu0 0.0
    %655 = vmatprep.subr.mxu0 0.0
    %656 = vmatpush2.msra.mxu0 0.0
    %657 = vmatprep.subr.mxu0 0.0
    %658 = vmatpush2.msra.mxu0 0.0
    %659 = vmatprep.subr.mxu0 0.0
    %660 = vmatpush2.msra.mxu0 0.0
    %661 = vmatprep.subr.mxu0 0.0
    %662 = vmatpush2.msra.mxu0 0.0
    %663 = vmatprep.subr.mxu0 0.0
    %664 = vmatpush2.msra.mxu0 0.0
    %665 = vmatprep.subr.mxu0 0.0
    %666 = vmatpush2.msra.mxu0 0.0
    %667 = vmatprep.subr.mxu0 0.0
    %668 = vmatpush2.msra.mxu0 0.0
    %669 = vmatprep.subr.mxu0 0.0
    %670 = vmatpush2.msra.mxu0 0.0
    %671 = vmatprep.mubr.f32.mxu0 0.0
    %672 = vmatmul.mubr.f32.gmra.mxu0 %v590
    %v673 = vpop.f32.mrf.mxu0
    %v674 = vadd.f32 0.0, %v673
    %v675 = vpop.f32.mrf.mxu0
    %676 = vmatprep.mubr.f32.mxu0 0.0
    %677 = vmatmul.mubr.f32.gmra.mxu0 %v593
    %v678 = vpop.f32.mrf.mxu0
    %v679 = vadd.f32 0.0, %v678
    %v680 = vpop.f32.mrf.mxu0
    %681 = vmatprep.mubr.f32.mxu0 0.0
    %682 = vmatmul.mubr.f32.gmra.mxu0 %v596
    %v683 = vpop.f32.mrf.mxu0
    %v684 = vpop.f32.mrf.mxu0
    %685 = vmatprep.mubr.f32.mxu0 0.0
    %686 = vmatmul.mubr.f32.gmra.mxu0 %v599
    %v687 = vpop.f32.mrf.mxu0
    %v688 = vpop.f32.mrf.mxu0
    %689 = vmatprep.mubr.f32.mxu0 0.0
    %690 = vmatmul.mubr.f32.gmra.mxu0 %v602
    %v691 = vpop.f32.mrf.mxu0
    %v692 = vadd.f32 0.0, %v691
    %v693 = vpop.f32.mrf.mxu0
    %694 = vmatprep.mubr.f32.mxu0 0.0
    %695 = vmatmul.mubr.f32.gmra.mxu0 %v605
    %v696 = vpop.f32.mrf.mxu0
    %v697 = vadd.f32 0.0, %v696
    %v698 = vpop.f32.mrf.mxu0
    %699 = vdwg.mxu0
    %v700 = vadd.f32 %v574, %v674
    %v701 = vadd.f32 %v575, %v679
    %v702 = vadd.f32 %v576, %v692
    %v703 = vadd.f32 %v577, %v697
    %v704 = vld [vmem:[#allocation9] sm:$0x1]
    %v706 = vlaneseq
    %v707 = vshrl.u32 %v706, 7
    %v708 = vsub.s32 0, %v707
    %v709 = vrot.slane %v704, %v708
    %v711 = vadd.f32 %v700, %v709
    %v712 = vadd.f32 %v701, %v709
    %v713 = vadd.f32 %v702, %v709
    %v714 = vadd.f32 %v703, %v709
    %v715 = vtanh.pop %v711
    %v716 = vtanh.pop %v712
    %717 = vst.msk [vmem:[#allocation3 + $0x8] sm:$0xff] %vm56, %v715
    %718 = vst.msk [vmem:[#allocation3 + $0x10] sm:$0xff] %vm56, %v716
    %v719 = vtanh.pop %v713
    %v720 = vtanh.pop %v714
    %721 = vst.msk [vmem:[#allocation3 + $0x28] sm:$0xff] %vm56, %v719
    %722 = vst.msk [vmem:[#allocation3 + $0x30] sm:$0xff] %vm56, %v720
    %v723 = vld [vmem:[#allocation3 + $0x6] sm:$0xff]
    %v724 = vld [vmem:[#allocation3 + $0xe] sm:$0xff]
    %v725 = vld [vmem:[#allocation3 + $0x16] sm:$0xff]
    %v726 = vld [vmem:[#allocation3 + $0x1e] sm:$0xff]
    %v727 = vld [vmem:[#allocation3 + $0x26] sm:$0xff]
    %v728 = vld [vmem:[#allocation3 + $0x2e] sm:$0xff]
    %s729 = scalar_lea.vmem [#allocation7], 160
    %v730 = vld [vmem:[%s729] sm:$0xff]
    %v731 = vld [vmem:[%s729 + $0x8] sm:$0xff]
    %v732 = vld [vmem:[%s729 + $0x10] sm:$0xff]
    %v733 = vld [vmem:[%s729 + $0x18] sm:$0xff]
    %v734 = vld [vmem:[#allocation3 + $0x7] sm:$0xff]
    %v735 = vld [vmem:[#allocation3 + $0xf] sm:$0xff]
    %v736 = vld [vmem:[#allocation3 + $0x17] sm:$0xff]
    %v737 = vld [vmem:[#allocation3 + $0x1f] sm:$0xff]
    %v738 = vld [vmem:[#allocation3 + $0x27] sm:$0xff]
    %v739 = vld [vmem:[#allocation3 + $0x2f] sm:$0xff]
    %s740 = scalar_lea.vmem [#allocation7], 192
    %v741 = vld [vmem:[%s740] sm:$0xff]
    %v742 = vld [vmem:[%s740 + $0x8] sm:$0xff]
    %v743 = vld [vmem:[%s740 + $0x10] sm:$0xff]
    %v744 = vld [vmem:[%s740 + $0x18] sm:$0xff]
    %v746 = vsel %vm56, %v734, 0
    %v749 = vsel %vm56, %v735, 0
    %v752 = vsel %vm56, %v736, 0
    %v755 = vsel %vm56, %v737, 0
    %v758 = vsel %vm56, %v738, 0
    %v761 = vsel %vm56, %v739, 0
    %763 = vmatprep.subr.mxu0 0.0
    %764 = vmatpush1.msra.mxu0 0.0
    %765 = vmatprep.subr.mxu0 0.0
    %766 = vmatpush1.msra.mxu0 0.0
    %767 = vmatprep.subr.mxu0 0.0
    %768 = vmatpush1.msra.mxu0 0.0
    %769 = vmatprep.subr.mxu0 0.0
    %770 = vmatpush1.msra.mxu0 0.0
    %771 = vmatprep.subr.mxu0 0.0
    %772 = vmatpush1.msra.mxu0 0.0
    %773 = vmatprep.subr.mxu0 0.0
    %774 = vmatpush1.msra.mxu0 0.0
    %775 = vmatprep.subr.mxu0 0.0
    %776 = vmatpush1.msra.mxu0 0.0
    %777 = vmatprep.subr.mxu0 0.0
    %778 = vmatpush1.msra.mxu0 0.0
    %779 = vmatprep.subr.mxu0 0.0
    %780 = vmatpush1.msra.mxu0 0.0
    %781 = vmatprep.subr.mxu0 0.0
    %782 = vmatpush1.msra.mxu0 0.0
    %783 = vmatprep.subr.mxu0 0.0
    %784 = vmatpush1.msra.mxu0 0.0
    %785 = vmatprep.subr.mxu0 0.0
    %786 = vmatpush1.msra.mxu0 0.0
    %787 = vmatprep.subr.mxu0 0.0
    %788 = vmatpush1.msra.mxu0 %v744
    %789 = vmatprep.subr.mxu0 0.0
    %790 = vmatpush1.msra.mxu0 %v743
    %791 = vmatprep.subr.mxu0 0.0
    %792 = vmatpush1.msra.mxu0 %v742
    %793 = vmatprep.subr.mxu0 0.0
    %794 = vmatpush1.msra.mxu0 %v741
    %795 = vmatprep.subr.mxu0 0.0
    %796 = vmatpush2.msra.mxu0 0.0
    %797 = vmatprep.subr.mxu0 0.0
    %798 = vmatpush2.msra.mxu0 0.0
    %799 = vmatprep.subr.mxu0 0.0
    %800 = vmatpush2.msra.mxu0 0.0
    %801 = vmatprep.subr.mxu0 0.0
    %802 = vmatpush2.msra.mxu0 0.0
    %803 = vmatprep.subr.mxu0 0.0
    %804 = vmatpush2.msra.mxu0 0.0
    %805 = vmatprep.subr.mxu0 0.0
    %806 = vmatpush2.msra.mxu0 0.0
    %807 = vmatprep.subr.mxu0 0.0
    %808 = vmatpush2.msra.mxu0 0.0
    %809 = vmatprep.subr.mxu0 0.0
    %810 = vmatpush2.msra.mxu0 0.0
    %811 = vmatprep.subr.mxu0 0.0
    %812 = vmatpush2.msra.mxu0 0.0
    %813 = vmatprep.subr.mxu0 0.0
    %814 = vmatpush2.msra.mxu0 0.0
    %815 = vmatprep.subr.mxu0 0.0
    %816 = vmatpush2.msra.mxu0 0.0
    %817 = vmatprep.subr.mxu0 0.0
    %818 = vmatpush2.msra.mxu0 0.0
    %819 = vmatprep.subr.mxu0 0.0
    %820 = vmatpush2.msra.mxu0 0.0
    %821 = vmatprep.subr.mxu0 0.0
    %822 = vmatpush2.msra.mxu0 0.0
    %823 = vmatprep.subr.mxu0 0.0
    %824 = vmatpush2.msra.mxu0 0.0
    %825 = vmatprep.subr.mxu0 0.0
    %826 = vmatpush2.msra.mxu0 0.0
    %827 = vmatprep.mubr.f32.mxu0 0.0
    %828 = vmatmul.mubr.f32.gmra.mxu0 %v746
    %v829 = vpop.f32.mrf.mxu0
    %v830 = vadd.f32 0.0, %v829
    %v831 = vpop.f32.mrf.mxu0
    %832 = vmatprep.mubr.f32.mxu0 0.0
    %833 = vmatmul.mubr.f32.gmra.mxu0 %v749
    %v834 = vpop.f32.mrf.mxu0
    %v835 = vadd.f32 0.0, %v834
    %v836 = vpop.f32.mrf.mxu0
    %837 = vmatprep.mubr.f32.mxu0 0.0
    %838 = vmatmul.mubr.f32.gmra.mxu0 %v752
    %v839 = vpop.f32.mrf.mxu0
    %v840 = vpop.f32.mrf.mxu0
    %841 = vmatprep.mubr.f32.mxu0 0.0
    %842 = vmatmul.mubr.f32.gmra.mxu0 %v755
    %v843 = vpop.f32.mrf.mxu0
    %v844 = vpop.f32.mrf.mxu0
    %845 = vmatprep.mubr.f32.mxu0 0.0
    %846 = vmatmul.mubr.f32.gmra.mxu0 %v758
    %v847 = vpop.f32.mrf.mxu0
    %v848 = vadd.f32 0.0, %v847
    %v849 = vpop.f32.mrf.mxu0
    %850 = vmatprep.mubr.f32.mxu0 0.0
    %851 = vmatmul.mubr.f32.gmra.mxu0 %v761
    %v852 = vpop.f32.mrf.mxu0
    %v853 = vadd.f32 0.0, %v852
    %v854 = vpop.f32.mrf.mxu0
    %855 = vdwg.mxu0
    %v857 = vsel %vm56, %v723, 0
    %v860 = vsel %vm56, %v724, 0
    %v863 = vsel %vm56, %v725, 0
    %v866 = vsel %vm56, %v726, 0
    %v869 = vsel %vm56, %v727, 0
    %v872 = vsel %vm56, %v728, 0
    %874 = vmatprep.subr.mxu0 0.0
    %875 = vmatpush1.msra.mxu0 0.0
    %876 = vmatprep.subr.mxu0 0.0
    %877 = vmatpush1.msra.mxu0 0.0
    %878 = vmatprep.subr.mxu0 0.0
    %879 = vmatpush1.msra.mxu0 0.0
    %880 = vmatprep.subr.mxu0 0.0
    %881 = vmatpush1.msra.mxu0 0.0
    %882 = vmatprep.subr.mxu0 0.0
    %883 = vmatpush1.msra.mxu0 0.0
    %884 = vmatprep.subr.mxu0 0.0
    %885 = vmatpush1.msra.mxu0 0.0
    %886 = vmatprep.subr.mxu0 0.0
    %887 = vmatpush1.msra.mxu0 0.0
    %888 = vmatprep.subr.mxu0 0.0
    %889 = vmatpush1.msra.mxu0 0.0
    %890 = vmatprep.subr.mxu0 0.0
    %891 = vmatpush1.msra.mxu0 0.0
    %892 = vmatprep.subr.mxu0 0.0
    %893 = vmatpush1.msra.mxu0 0.0
    %894 = vmatprep.subr.mxu0 0.0
    %895 = vmatpush1.msra.mxu0 0.0
    %896 = vmatprep.subr.mxu0 0.0
    %897 = vmatpush1.msra.mxu0 0.0
    %898 = vmatprep.subr.mxu0 0.0
    %899 = vmatpush1.msra.mxu0 %v733
    %900 = vmatprep.subr.mxu0 0.0
    %901 = vmatpush1.msra.mxu0 %v732
    %902 = vmatprep.subr.mxu0 0.0
    %903 = vmatpush1.msra.mxu0 %v731
    %904 = vmatprep.subr.mxu0 0.0
    %905 = vmatpush1.msra.mxu0 %v730
    %906 = vmatprep.subr.mxu0 0.0
    %907 = vmatpush2.msra.mxu0 0.0
    %908 = vmatprep.subr.mxu0 0.0
    %909 = vmatpush2.msra.mxu0 0.0
    %910 = vmatprep.subr.mxu0 0.0
    %911 = vmatpush2.msra.mxu0 0.0
    %912 = vmatprep.subr.mxu0 0.0
    %913 = vmatpush2.msra.mxu0 0.0
    %914 = vmatprep.subr.mxu0 0.0
    %915 = vmatpush2.msra.mxu0 0.0
    %916 = vmatprep.subr.mxu0 0.0
    %917 = vmatpush2.msra.mxu0 0.0
    %918 = vmatprep.subr.mxu0 0.0
    %919 = vmatpush2.msra.mxu0 0.0
    %920 = vmatprep.subr.mxu0 0.0
    %921 = vmatpush2.msra.mxu0 0.0
    %922 = vmatprep.subr.mxu0 0.0
    %923 = vmatpush2.msra.mxu0 0.0
    %924 = vmatprep.subr.mxu0 0.0
    %925 = vmatpush2.msra.mxu0 0.0
    %926 = vmatprep.subr.mxu0 0.0
    %927 = vmatpush2.msra.mxu0 0.0
    %928 = vmatprep.subr.mxu0 0.0
    %929 = vmatpush2.msra.mxu0 0.0
    %930 = vmatprep.subr.mxu0 0.0
    %931 = vmatpush2.msra.mxu0 0.0
    %932 = vmatprep.subr.mxu0 0.0
    %933 = vmatpush2.msra.mxu0 0.0
    %934 = vmatprep.subr.mxu0 0.0
    %935 = vmatpush2.msra.mxu0 0.0
    %936 = vmatprep.subr.mxu0 0.0
    %937 = vmatpush2.msra.mxu0 0.0
    %938 = vmatprep.mubr.f32.mxu0 0.0
    %939 = vmatmul.mubr.f32.gmra.mxu0 %v857
    %v940 = vpop.f32.mrf.mxu0
    %v941 = vadd.f32 %v830, %v940
    %v942 = vpop.f32.mrf.mxu0
    %943 = vmatprep.mubr.f32.mxu0 0.0
    %944 = vmatmul.mubr.f32.gmra.mxu0 %v860
    %v945 = vpop.f32.mrf.mxu0
    %v946 = vadd.f32 %v835, %v945
    %v947 = vpop.f32.mrf.mxu0
    %948 = vmatprep.mubr.f32.mxu0 0.0
    %949 = vmatmul.mubr.f32.gmra.mxu0 %v863
    %v950 = vpop.f32.mrf.mxu0
    %v951 = vpop.f32.mrf.mxu0
    %952 = vmatprep.mubr.f32.mxu0 0.0
    %953 = vmatmul.mubr.f32.gmra.mxu0 %v866
    %v954 = vpop.f32.mrf.mxu0
    %v955 = vpop.f32.mrf.mxu0
    %956 = vmatprep.mubr.f32.mxu0 0.0
    %957 = vmatmul.mubr.f32.gmra.mxu0 %v869
    %v958 = vpop.f32.mrf.mxu0
    %v959 = vadd.f32 %v848, %v958
    %v960 = vpop.f32.mrf.mxu0
    %961 = vmatprep.mubr.f32.mxu0 0.0
    %962 = vmatmul.mubr.f32.gmra.mxu0 %v872
    %v963 = vpop.f32.mrf.mxu0
    %v964 = vadd.f32 %v853, %v963
    %v965 = vpop.f32.mrf.mxu0
    %966 = vdwg.mxu0
    %v967 = vld [vmem:[#allocation3 + $0x8] sm:$0xff]
    %v968 = vld [vmem:[#allocation3 + $0x10] sm:$0xff]
    %v969 = vld [vmem:[#allocation3 + $0x18] sm:$0xff]
    %v970 = vld [vmem:[#allocation3 + $0x20] sm:$0xff]
    %v971 = vld [vmem:[#allocation3 + $0x28] sm:$0xff]
    %v972 = vld [vmem:[#allocation3 + $0x30] sm:$0xff]
    %s973 = scalar_lea.vmem [#allocation7], 224
    %v974 = vld [vmem:[%s973] sm:$0xff]
    %v975 = vld [vmem:[%s973 + $0x8] sm:$0xff]
    %v976 = vld [vmem:[%s973 + $0x10] sm:$0xff]
    %v977 = vld [vmem:[%s973 + $0x18] sm:$0xff]
    %v979 = vsel %vm56, %v967, 0
    %v982 = vsel %vm56, %v968, 0
    %v985 = vsel %vm56, %v969, 0
    %v988 = vsel %vm56, %v970, 0
    %v991 = vsel %vm56, %v971, 0
    %v994 = vsel %vm56, %v972, 0
    %996 = vmatprep.subr.mxu0 0.0
    %997 = vmatpush1.msra.mxu0 0.0
    %998 = vmatprep.subr.mxu0 0.0
    %999 = vmatpush1.msra.mxu0 0.0
    %1000 = vmatprep.subr.mxu0 0.0
    %1001 = vmatpush1.msra.mxu0 0.0
    %1002 = vmatprep.subr.mxu0 0.0
    %1003 = vmatpush1.msra.mxu0 0.0
    %1004 = vmatprep.subr.mxu0 0.0
    %1005 = vmatpush1.msra.mxu0 0.0
    %1006 = vmatprep.subr.mxu0 0.0
    %1007 = vmatpush1.msra.mxu0 0.0
    %1008 = vmatprep.subr.mxu0 0.0
    %1009 = vmatpush1.msra.mxu0 0.0
    %1010 = vmatprep.subr.mxu0 0.0
    %1011 = vmatpush1.msra.mxu0 0.0
    %1012 = vmatprep.subr.mxu0 0.0
    %1013 = vmatpush1.msra.mxu0 0.0
    %1014 = vmatprep.subr.mxu0 0.0
    %1015 = vmatpush1.msra.mxu0 0.0
    %1016 = vmatprep.subr.mxu0 0.0
    %1017 = vmatpush1.msra.mxu0 0.0
    %1018 = vmatprep.subr.mxu0 0.0
    %1019 = vmatpush1.msra.mxu0 0.0
    %1020 = vmatprep.subr.mxu0 0.0
    %1021 = vmatpush1.msra.mxu0 %v977
    %1022 = vmatprep.subr.mxu0 0.0
    %1023 = vmatpush1.msra.mxu0 %v976
    %1024 = vmatprep.subr.mxu0 0.0
    %1025 = vmatpush1.msra.mxu0 %v975
    %1026 = vmatprep.subr.mxu0 0.0
    %1027 = vmatpush1.msra.mxu0 %v974
    %1028 = vmatprep.subr.mxu0 0.0
    %1029 = vmatpush2.msra.mxu0 0.0
    %1030 = vmatprep.subr.mxu0 0.0
    %1031 = vmatpush2.msra.mxu0 0.0
    %1032 = vmatprep.subr.mxu0 0.0
    %1033 = vmatpush2.msra.mxu0 0.0
    %1034 = vmatprep.subr.mxu0 0.0
    %1035 = vmatpush2.msra.mxu0 0.0
    %1036 = vmatprep.subr.mxu0 0.0
    %1037 = vmatpush2.msra.mxu0 0.0
    %1038 = vmatprep.subr.mxu0 0.0
    %1039 = vmatpush2.msra.mxu0 0.0
    %1040 = vmatprep.subr.mxu0 0.0
    %1041 = vmatpush2.msra.mxu0 0.0
    %1042 = vmatprep.subr.mxu0 0.0
    %1043 = vmatpush2.msra.mxu0 0.0
    %1044 = vmatprep.subr.mxu0 0.0
    %1045 = vmatpush2.msra.mxu0 0.0
    %1046 = vmatprep.subr.mxu0 0.0
    %1047 = vmatpush2.msra.mxu0 0.0
    %1048 = vmatprep.subr.mxu0 0.0
    %1049 = vmatpush2.msra.mxu0 0.0
    %1050 = vmatprep.subr.mxu0 0.0
    %1051 = vmatpush2.msra.mxu0 0.0
    %1052 = vmatprep.subr.mxu0 0.0
    %1053 = vmatpush2.msra.mxu0 0.0
    %1054 = vmatprep.subr.mxu0 0.0
    %1055 = vmatpush2.msra.mxu0 0.0
    %1056 = vmatprep.subr.mxu0 0.0
    %1057 = vmatpush2.msra.mxu0 0.0
    %1058 = vmatprep.subr.mxu0 0.0
    %1059 = vmatpush2.msra.mxu0 0.0
    %1060 = vmatprep.mubr.f32.mxu0 0.0
    %1061 = vmatmul.mubr.f32.gmra.mxu0 %v979
    %v1062 = vpop.f32.mrf.mxu0
    %v1063 = vadd.f32 0.0, %v1062
    %v1064 = vpop.f32.mrf.mxu0
    %1065 = vmatprep.mubr.f32.mxu0 0.0
    %1066 = vmatmul.mubr.f32.gmra.mxu0 %v982
    %v1067 = vpop.f32.mrf.mxu0
    %v1068 = vadd.f32 0.0, %v1067
    %v1069 = vpop.f32.mrf.mxu0
    %1070 = vmatprep.mubr.f32.mxu0 0.0
    %1071 = vmatmul.mubr.f32.gmra.mxu0 %v985
    %v1072 = vpop.f32.mrf.mxu0
    %v1073 = vpop.f32.mrf.mxu0
    %1074 = vmatprep.mubr.f32.mxu0 0.0
    %1075 = vmatmul.mubr.f32.gmra.mxu0 %v988
    %v1076 = vpop.f32.mrf.mxu0
    %v1077 = vpop.f32.mrf.mxu0
    %1078 = vmatprep.mubr.f32.mxu0 0.0
    %1079 = vmatmul.mubr.f32.gmra.mxu0 %v991
    %v1080 = vpop.f32.mrf.mxu0
    %v1081 = vadd.f32 0.0, %v1080
    %v1082 = vpop.f32.mrf.mxu0
    %1083 = vmatprep.mubr.f32.mxu0 0.0
    %1084 = vmatmul.mubr.f32.gmra.mxu0 %v994
    %v1085 = vpop.f32.mrf.mxu0
    %v1086 = vadd.f32 0.0, %v1085
    %v1087 = vpop.f32.mrf.mxu0
    %1088 = vdwg.mxu0
    %v1089 = vadd.f32 %v941, %v1063
    %v1090 = vadd.f32 %v946, %v1068
    %v1091 = vadd.f32 %v959, %v1081
    %v1092 = vadd.f32 %v964, %v1086
    %v1093 = vld [vmem:[#allocation3 + $0x9] sm:$0xff]
    %v1094 = vld [vmem:[#allocation3 + $0x11] sm:$0xff]
    %v1095 = vld [vmem:[#allocation3 + $0x19] sm:$0xff]
    %v1096 = vld [vmem:[#allocation3 + $0x21] sm:$0xff]
    %v1097 = vld [vmem:[#allocation3 + $0x29] sm:$0xff]
    %v1098 = vld [vmem:[#allocation3 + $0x31] sm:$0xff]
    %s1099 = scalar_lea.vmem [#allocation7], 256
    %v1100 = vld [vmem:[%s1099] sm:$0xff]
    %v1101 = vld [vmem:[%s1099 + $0x8] sm:$0xff]
    %v1102 = vld [vmem:[%s1099 + $0x10] sm:$0xff]
    %v1103 = vld [vmem:[%s1099 + $0x18] sm:$0xff]
    %v1105 = vsel %vm56, %v1093, 0
    %v1108 = vsel %vm56, %v1094, 0
    %v1111 = vsel %vm56, %v1095, 0
    %v1114 = vsel %vm56, %v1096, 0
    %v1117 = vsel %vm56, %v1097, 0
    %v1120 = vsel %vm56, %v1098, 0
    %1122 = vmatprep.subr.mxu0 0.0
    %1123 = vmatpush1.msra.mxu0 0.0
    %1124 = vmatprep.subr.mxu0 0.0
    %1125 = vmatpush1.msra.mxu0 0.0
    %1126 = vmatprep.subr.mxu0 0.0
    %1127 = vmatpush1.msra.mxu0 0.0
    %1128 = vmatprep.subr.mxu0 0.0
    %1129 = vmatpush1.msra.mxu0 0.0
    %1130 = vmatprep.subr.mxu0 0.0
    %1131 = vmatpush1.msra.mxu0 0.0
    %1132 = vmatprep.subr.mxu0 0.0
    %1133 = vmatpush1.msra.mxu0 0.0
    %1134 = vmatprep.subr.mxu0 0.0
    %1135 = vmatpush1.msra.mxu0 0.0
    %1136 = vmatprep.subr.mxu0 0.0
    %1137 = vmatpush1.msra.mxu0 0.0
    %1138 = vmatprep.subr.mxu0 0.0
    %1139 = vmatpush1.msra.mxu0 0.0
    %1140 = vmatprep.subr.mxu0 0.0
    %1141 = vmatpush1.msra.mxu0 0.0
    %1142 = vmatprep.subr.mxu0 0.0
    %1143 = vmatpush1.msra.mxu0 0.0
    %1144 = vmatprep.subr.mxu0 0.0
    %1145 = vmatpush1.msra.mxu0 0.0
    %1146 = vmatprep.subr.mxu0 0.0
    %1147 = vmatpush1.msra.mxu0 %v1103
    %1148 = vmatprep.subr.mxu0 0.0
    %1149 = vmatpush1.msra.mxu0 %v1102
    %1150 = vmatprep.subr.mxu0 0.0
    %1151 = vmatpush1.msra.mxu0 %v1101
    %1152 = vmatprep.subr.mxu0 0.0
    %1153 = vmatpush1.msra.mxu0 %v1100
    %1154 = vmatprep.subr.mxu0 0.0
    %1155 = vmatpush2.msra.mxu0 0.0
    %1156 = vmatprep.subr.mxu0 0.0
    %1157 = vmatpush2.msra.mxu0 0.0
    %1158 = vmatprep.subr.mxu0 0.0
    %1159 = vmatpush2.msra.mxu0 0.0
    %1160 = vmatprep.subr.mxu0 0.0
    %1161 = vmatpush2.msra.mxu0 0.0
    %1162 = vmatprep.subr.mxu0 0.0
    %1163 = vmatpush2.msra.mxu0 0.0
    %1164 = vmatprep.subr.mxu0 0.0
    %1165 = vmatpush2.msra.mxu0 0.0
    %1166 = vmatprep.subr.mxu0 0.0
    %1167 = vmatpush2.msra.mxu0 0.0
    %1168 = vmatprep.subr.mxu0 0.0
    %1169 = vmatpush2.msra.mxu0 0.0
    %1170 = vmatprep.subr.mxu0 0.0
    %1171 = vmatpush2.msra.mxu0 0.0
    %1172 = vmatprep.subr.mxu0 0.0
    %1173 = vmatpush2.msra.mxu0 0.0
    %1174 = vmatprep.subr.mxu0 0.0
    %1175 = vmatpush2.msra.mxu0 0.0
    %1176 = vmatprep.subr.mxu0 0.0
    %1177 = vmatpush2.msra.mxu0 0.0
    %1178 = vmatprep.subr.mxu0 0.0
    %1179 = vmatpush2.msra.mxu0 0.0
    %1180 = vmatprep.subr.mxu0 0.0
    %1181 = vmatpush2.msra.mxu0 0.0
    %1182 = vmatprep.subr.mxu0 0.0
    %1183 = vmatpush2.msra.mxu0 0.0
    %1184 = vmatprep.subr.mxu0 0.0
    %1185 = vmatpush2.msra.mxu0 0.0
    %1186 = vmatprep.mubr.f32.mxu0 0.0
    %1187 = vmatmul.mubr.f32.gmra.mxu0 %v1105
    %v1188 = vpop.f32.mrf.mxu0
    %v1189 = vadd.f32 0.0, %v1188
    %v1190 = vpop.f32.mrf.mxu0
    %1191 = vmatprep.mubr.f32.mxu0 0.0
    %1192 = vmatmul.mubr.f32.gmra.mxu0 %v1108
    %v1193 = vpop.f32.mrf.mxu0
    %v1194 = vadd.f32 0.0, %v1193
    %v1195 = vpop.f32.mrf.mxu0
    %1196 = vmatprep.mubr.f32.mxu0 0.0
    %1197 = vmatmul.mubr.f32.gmra.mxu0 %v1111
    %v1198 = vpop.f32.mrf.mxu0
    %v1199 = vpop.f32.mrf.mxu0
    %1200 = vmatprep.mubr.f32.mxu0 0.0
    %1201 = vmatmul.mubr.f32.gmra.mxu0 %v1114
    %v1202 = vpop.f32.mrf.mxu0
    %v1203 = vpop.f32.mrf.mxu0
    %1204 = vmatprep.mubr.f32.mxu0 0.0
    %1205 = vmatmul.mubr.f32.gmra.mxu0 %v1117
    %v1206 = vpop.f32.mrf.mxu0
    %v1207 = vadd.f32 0.0, %v1206
    %v1208 = vpop.f32.mrf.mxu0
    %1209 = vmatprep.mubr.f32.mxu0 0.0
    %1210 = vmatmul.mubr.f32.gmra.mxu0 %v1120
    %v1211 = vpop.f32.mrf.mxu0
    %v1212 = vadd.f32 0.0, %v1211
    %v1213 = vpop.f32.mrf.mxu0
    %1214 = vdwg.mxu0
    %v1215 = vadd.f32 %v1089, %v1189
    %v1216 = vadd.f32 %v1090, %v1194
    %v1217 = vadd.f32 %v1091, %v1207
    %v1218 = vadd.f32 %v1092, %v1212
    %v1219 = vld [vmem:[#allocation3 + $0xa] sm:$0xff]
    %v1220 = vld [vmem:[#allocation3 + $0x12] sm:$0xff]
    %v1221 = vld [vmem:[#allocation3 + $0x1a] sm:$0xff]
    %v1222 = vld [vmem:[#allocation3 + $0x22] sm:$0xff]
    %v1223 = vld [vmem:[#allocation3 + $0x2a] sm:$0xff]
    %v1224 = vld [vmem:[#allocation3 + $0x32] sm:$0xff]
    %s1225 = scalar_lea.vmem [#allocation7], 288
    %v1226 = vld [vmem:[%s1225] sm:$0xff]
    %v1227 = vld [vmem:[%s1225 + $0x8] sm:$0xff]
    %v1228 = vld [vmem:[%s1225 + $0x10] sm:$0xff]
    %v1229 = vld [vmem:[%s1225 + $0x18] sm:$0xff]
    %v1231 = vsel %vm56, %v1219, 0
    %v1234 = vsel %vm56, %v1220, 0
    %v1237 = vsel %vm56, %v1221, 0
    %v1240 = vsel %vm56, %v1222, 0
    %v1243 = vsel %vm56, %v1223, 0
    %v1246 = vsel %vm56, %v1224, 0
    %1248 = vmatprep.subr.mxu0 0.0
    %1249 = vmatpush1.msra.mxu0 0.0
    %1250 = vmatprep.subr.mxu0 0.0
    %1251 = vmatpush1.msra.mxu0 0.0
    %1252 = vmatprep.subr.mxu0 0.0
    %1253 = vmatpush1.msra.mxu0 0.0
    %1254 = vmatprep.subr.mxu0 0.0
    %1255 = vmatpush1.msra.mxu0 0.0
    %1256 = vmatprep.subr.mxu0 0.0
    %1257 = vmatpush1.msra.mxu0 0.0
    %1258 = vmatprep.subr.mxu0 0.0
    %1259 = vmatpush1.msra.mxu0 0.0
    %1260 = vmatprep.subr.mxu0 0.0
    %1261 = vmatpush1.msra.mxu0 0.0
    %1262 = vmatprep.subr.mxu0 0.0
    %1263 = vmatpush1.msra.mxu0 0.0
    %1264 = vmatprep.subr.mxu0 0.0
    %1265 = vmatpush1.msra.mxu0 0.0
    %1266 = vmatprep.subr.mxu0 0.0
    %1267 = vmatpush1.msra.mxu0 0.0
    %1268 = vmatprep.subr.mxu0 0.0
    %1269 = vmatpush1.msra.mxu0 0.0
    %1270 = vmatprep.subr.mxu0 0.0
    %1271 = vmatpush1.msra.mxu0 0.0
    %1272 = vmatprep.subr.mxu0 0.0
    %1273 = vmatpush1.msra.mxu0 %v1229
    %1274 = vmatprep.subr.mxu0 0.0
    %1275 = vmatpush1.msra.mxu0 %v1228
    %1276 = vmatprep.subr.mxu0 0.0
    %1277 = vmatpush1.msra.mxu0 %v1227
    %1278 = vmatprep.subr.mxu0 0.0
    %1279 = vmatpush1.msra.mxu0 %v1226
    %1280 = vmatprep.subr.mxu0 0.0
    %1281 = vmatpush2.msra.mxu0 0.0
    %1282 = vmatprep.subr.mxu0 0.0
    %1283 = vmatpush2.msra.mxu0 0.0
    %1284 = vmatprep.subr.mxu0 0.0
    %1285 = vmatpush2.msra.mxu0 0.0
    %1286 = vmatprep.subr.mxu0 0.0
    %1287 = vmatpush2.msra.mxu0 0.0
    %1288 = vmatprep.subr.mxu0 0.0
    %1289 = vmatpush2.msra.mxu0 0.0
    %1290 = vmatprep.subr.mxu0 0.0
    %1291 = vmatpush2.msra.mxu0 0.0
    %1292 = vmatprep.subr.mxu0 0.0
    %1293 = vmatpush2.msra.mxu0 0.0
    %1294 = vmatprep.subr.mxu0 0.0
    %1295 = vmatpush2.msra.mxu0 0.0
    %1296 = vmatprep.subr.mxu0 0.0
    %1297 = vmatpush2.msra.mxu0 0.0
    %1298 = vmatprep.subr.mxu0 0.0
    %1299 = vmatpush2.msra.mxu0 0.0
    %1300 = vmatprep.subr.mxu0 0.0
    %1301 = vmatpush2.msra.mxu0 0.0
    %1302 = vmatprep.subr.mxu0 0.0
    %1303 = vmatpush2.msra.mxu0 0.0
    %1304 = vmatprep.subr.mxu0 0.0
    %1305 = vmatpush2.msra.mxu0 0.0
    %1306 = vmatprep.subr.mxu0 0.0
    %1307 = vmatpush2.msra.mxu0 0.0
    %1308 = vmatprep.subr.mxu0 0.0
    %1309 = vmatpush2.msra.mxu0 0.0
    %1310 = vmatprep.subr.mxu0 0.0
    %1311 = vmatpush2.msra.mxu0 0.0
    %1312 = vmatprep.mubr.f32.mxu0 0.0
    %1313 = vmatmul.mubr.f32.gmra.mxu0 %v1231
    %v1314 = vpop.f32.mrf.mxu0
    %v1315 = vadd.f32 0.0, %v1314
    %v1316 = vpop.f32.mrf.mxu0
    %1317 = vmatprep.mubr.f32.mxu0 0.0
    %1318 = vmatmul.mubr.f32.gmra.mxu0 %v1234
    %v1319 = vpop.f32.mrf.mxu0
    %v1320 = vadd.f32 0.0, %v1319
    %v1321 = vpop.f32.mrf.mxu0
    %1322 = vmatprep.mubr.f32.mxu0 0.0
    %1323 = vmatmul.mubr.f32.gmra.mxu0 %v1237
    %v1324 = vpop.f32.mrf.mxu0
    %v1325 = vpop.f32.mrf.mxu0
    %1326 = vmatprep.mubr.f32.mxu0 0.0
    %1327 = vmatmul.mubr.f32.gmra.mxu0 %v1240
    %v1328 = vpop.f32.mrf.mxu0
    %v1329 = vpop.f32.mrf.mxu0
    %1330 = vmatprep.mubr.f32.mxu0 0.0
    %1331 = vmatmul.mubr.f32.gmra.mxu0 %v1243
    %v1332 = vpop.f32.mrf.mxu0
    %v1333 = vadd.f32 0.0, %v1332
    %v1334 = vpop.f32.mrf.mxu0
    %1335 = vmatprep.mubr.f32.mxu0 0.0
    %1336 = vmatmul.mubr.f32.gmra.mxu0 %v1246
    %v1337 = vpop.f32.mrf.mxu0
    %v1338 = vadd.f32 0.0, %v1337
    %v1339 = vpop.f32.mrf.mxu0
    %1340 = vdwg.mxu0
    %v1341 = vadd.f32 %v1215, %v1315
    %v1342 = vadd.f32 %v1216, %v1320
    %v1343 = vadd.f32 %v1217, %v1333
    %v1344 = vadd.f32 %v1218, %v1338
    %s1345 = scalar_lea.vmem [#allocation9], 1
    %v1346 = vld [vmem:[%s1345] sm:$0x1]
    %v1348 = vlaneseq
    %v1349 = vshrl.u32 %v1348, 7
    %v1350 = vsub.s32 0, %v1349
    %v1351 = vrot.slane %v1346, %v1350
    %v1353 = vadd.f32 %v1341, %v1351
    %v1354 = vadd.f32 %v1342, %v1351
    %v1355 = vadd.f32 %v1343, %v1351
    %v1356 = vadd.f32 %v1344, %v1351
    %v1357 = vtanh.pop %v1353
    %v1358 = vtanh.pop %v1354
    %1359 = vst.msk [vmem:[#allocation2 + $0x8] sm:$0xff] %vm56, %v1357
    %1360 = vst.msk [vmem:[#allocation2 + $0x10] sm:$0xff] %vm56, %v1358
    %v1361 = vtanh.pop %v1355
    %v1362 = vtanh.pop %v1356
    %1363 = vst.msk [vmem:[#allocation2 + $0x28] sm:$0xff] %vm56, %v1361
    %1364 = vst.msk [vmem:[#allocation2 + $0x30] sm:$0xff] %vm56, %v1362
    %v1365 = vld [vmem:[#allocation2 + $0x6] sm:$0xff]
    %v1366 = vld [vmem:[#allocation2 + $0xe] sm:$0xff]
    %v1367 = vld [vmem:[#allocation2 + $0x16] sm:$0xff]
    %v1368 = vld [vmem:[#allocation2 + $0x1e] sm:$0xff]
    %v1369 = vld [vmem:[#allocation2 + $0x26] sm:$0xff]
    %v1370 = vld [vmem:[#allocation2 + $0x2e] sm:$0xff]
    %s1371 = scalar_lea.vmem [#allocation7], 320
    %v1372 = vld [vmem:[%s1371] sm:$0xff]
    %v1373 = vld [vmem:[%s1371 + $0x8] sm:$0xff]
    %v1374 = vld [vmem:[%s1371 + $0x10] sm:$0xff]
    %v1375 = vld [vmem:[%s1371 + $0x18] sm:$0xff]
    %v1376 = vld [vmem:[#allocation2 + $0x7] sm:$0xff]
    %v1377 = vld [vmem:[#allocation2 + $0xf] sm:$0xff]
    %v1378 = vld [vmem:[#allocation2 + $0x17] sm:$0xff]
    %v1379 = vld [vmem:[#allocation2 + $0x1f] sm:$0xff]
    %v1380 = vld [vmem:[#allocation2 + $0x27] sm:$0xff]
    %v1381 = vld [vmem:[#allocation2 + $0x2f] sm:$0xff]
    %s1382 = scalar_lea.vmem [#allocation7], 352
    %v1383 = vld [vmem:[%s1382] sm:$0xff]
    %v1384 = vld [vmem:[%s1382 + $0x8] sm:$0xff]
    %v1385 = vld [vmem:[%s1382 + $0x10] sm:$0xff]
    %v1386 = vld [vmem:[%s1382 + $0x18] sm:$0xff]
    %v1388 = vsel %vm56, %v1376, 0
    %v1391 = vsel %vm56, %v1377, 0
    %v1394 = vsel %vm56, %v1378, 0
    %v1397 = vsel %vm56, %v1379, 0
    %v1400 = vsel %vm56, %v1380, 0
    %v1403 = vsel %vm56, %v1381, 0
    %1405 = vmatprep.subr.mxu0 0.0
    %1406 = vmatpush1.msra.mxu0 0.0
    %1407 = vmatprep.subr.mxu0 0.0
    %1408 = vmatpush1.msra.mxu0 0.0
    %1409 = vmatprep.subr.mxu0 0.0
    %1410 = vmatpush1.msra.mxu0 0.0
    %1411 = vmatprep.subr.mxu0 0.0
    %1412 = vmatpush1.msra.mxu0 0.0
    %1413 = vmatprep.subr.mxu0 0.0
    %1414 = vmatpush1.msra.mxu0 0.0
    %1415 = vmatprep.subr.mxu0 0.0
    %1416 = vmatpush1.msra.mxu0 0.0
    %1417 = vmatprep.subr.mxu0 0.0
    %1418 = vmatpush1.msra.mxu0 0.0
    %1419 = vmatprep.subr.mxu0 0.0
    %1420 = vmatpush1.msra.mxu0 0.0
    %1421 = vmatprep.subr.mxu0 0.0
    %1422 = vmatpush1.msra.mxu0 0.0
    %1423 = vmatprep.subr.mxu0 0.0
    %1424 = vmatpush1.msra.mxu0 0.0
    %1425 = vmatprep.subr.mxu0 0.0
    %1426 = vmatpush1.msra.mxu0 0.0
    %1427 = vmatprep.subr.mxu0 0.0
    %1428 = vmatpush1.msra.mxu0 0.0
    %1429 = vmatprep.subr.mxu0 0.0
    %1430 = vmatpush1.msra.mxu0 %v1386
    %1431 = vmatprep.subr.mxu0 0.0
    %1432 = vmatpush1.msra.mxu0 %v1385
    %1433 = vmatprep.subr.mxu0 0.0
    %1434 = vmatpush1.msra.mxu0 %v1384
    %1435 = vmatprep.subr.mxu0 0.0
    %1436 = vmatpush1.msra.mxu0 %v1383
    %1437 = vmatprep.subr.mxu0 0.0
    %1438 = vmatpush2.msra.mxu0 0.0
    %1439 = vmatprep.subr.mxu0 0.0
    %1440 = vmatpush2.msra.mxu0 0.0
    %1441 = vmatprep.subr.mxu0 0.0
    %1442 = vmatpush2.msra.mxu0 0.0
    %1443 = vmatprep.subr.mxu0 0.0
    %1444 = vmatpush2.msra.mxu0 0.0
    %1445 = vmatprep.subr.mxu0 0.0
    %1446 = vmatpush2.msra.mxu0 0.0
    %1447 = vmatprep.subr.mxu0 0.0
    %1448 = vmatpush2.msra.mxu0 0.0
    %1449 = vmatprep.subr.mxu0 0.0
    %1450 = vmatpush2.msra.mxu0 0.0
    %1451 = vmatprep.subr.mxu0 0.0
    %1452 = vmatpush2.msra.mxu0 0.0
    %1453 = vmatprep.subr.mxu0 0.0
    %1454 = vmatpush2.msra.mxu0 0.0
    %1455 = vmatprep.subr.mxu0 0.0
    %1456 = vmatpush2.msra.mxu0 0.0
    %1457 = vmatprep.subr.mxu0 0.0
    %1458 = vmatpush2.msra.mxu0 0.0
    %1459 = vmatprep.subr.mxu0 0.0
    %1460 = vmatpush2.msra.mxu0 0.0
    %1461 = vmatprep.subr.mxu0 0.0
    %1462 = vmatpush2.msra.mxu0 0.0
    %1463 = vmatprep.subr.mxu0 0.0
    %1464 = vmatpush2.msra.mxu0 0.0
    %1465 = vmatprep.subr.mxu0 0.0
    %1466 = vmatpush2.msra.mxu0 0.0
    %1467 = vmatprep.subr.mxu0 0.0
    %1468 = vmatpush2.msra.mxu0 0.0
    %1469 = vmatprep.mubr.f32.mxu0 0.0
    %1470 = vmatmul.mubr.f32.gmra.mxu0 %v1388
    %v1471 = vpop.f32.mrf.mxu0
    %v1472 = vadd.f32 0.0, %v1471
    %v1473 = vpop.f32.mrf.mxu0
    %1474 = vmatprep.mubr.f32.mxu0 0.0
    %1475 = vmatmul.mubr.f32.gmra.mxu0 %v1391
    %v1476 = vpop.f32.mrf.mxu0
    %v1477 = vadd.f32 0.0, %v1476
    %v1478 = vpop.f32.mrf.mxu0
    %1479 = vmatprep.mubr.f32.mxu0 0.0
    %1480 = vmatmul.mubr.f32.gmra.mxu0 %v1394
    %v1481 = vpop.f32.mrf.mxu0
    %v1482 = vpop.f32.mrf.mxu0
    %1483 = vmatprep.mubr.f32.mxu0 0.0
    %1484 = vmatmul.mubr.f32.gmra.mxu0 %v1397
    %v1485 = vpop.f32.mrf.mxu0
    %v1486 = vpop.f32.mrf.mxu0
    %1487 = vmatprep.mubr.f32.mxu0 0.0
    %1488 = vmatmul.mubr.f32.gmra.mxu0 %v1400
    %v1489 = vpop.f32.mrf.mxu0
    %v1490 = vadd.f32 0.0, %v1489
    %v1491 = vpop.f32.mrf.mxu0
    %1492 = vmatprep.mubr.f32.mxu0 0.0
    %1493 = vmatmul.mubr.f32.gmra.mxu0 %v1403
    %v1494 = vpop.f32.mrf.mxu0
    %v1495 = vadd.f32 0.0, %v1494
    %v1496 = vpop.f32.mrf.mxu0
    %1497 = vdwg.mxu0
    %v1499 = vsel %vm56, %v1365, 0
    %v1502 = vsel %vm56, %v1366, 0
    %v1505 = vsel %vm56, %v1367, 0
    %v1508 = vsel %vm56, %v1368, 0
    %v1511 = vsel %vm56, %v1369, 0
    %v1514 = vsel %vm56, %v1370, 0
    %1516 = vmatprep.subr.mxu0 0.0
    %1517 = vmatpush1.msra.mxu0 0.0
    %1518 = vmatprep.subr.mxu0 0.0
    %1519 = vmatpush1.msra.mxu0 0.0
    %1520 = vmatprep.subr.mxu0 0.0
    %1521 = vmatpush1.msra.mxu0 0.0
    %1522 = vmatprep.subr.mxu0 0.0
    %1523 = vmatpush1.msra.mxu0 0.0
    %1524 = vmatprep.subr.mxu0 0.0
    %1525 = vmatpush1.msra.mxu0 0.0
    %1526 = vmatprep.subr.mxu0 0.0
    %1527 = vmatpush1.msra.mxu0 0.0
    %1528 = vmatprep.subr.mxu0 0.0
    %1529 = vmatpush1.msra.mxu0 0.0
    %1530 = vmatprep.subr.mxu0 0.0
    %1531 = vmatpush1.msra.mxu0 0.0
    %1532 = vmatprep.subr.mxu0 0.0
    %1533 = vmatpush1.msra.mxu0 0.0
    %1534 = vmatprep.subr.mxu0 0.0
    %1535 = vmatpush1.msra.mxu0 0.0
    %1536 = vmatprep.subr.mxu0 0.0
    %1537 = vmatpush1.msra.mxu0 0.0
    %1538 = vmatprep.subr.mxu0 0.0
    %1539 = vmatpush1.msra.mxu0 0.0
    %1540 = vmatprep.subr.mxu0 0.0
    %1541 = vmatpush1.msra.mxu0 %v1375
    %1542 = vmatprep.subr.mxu0 0.0
    %1543 = vmatpush1.msra.mxu0 %v1374
    %1544 = vmatprep.subr.mxu0 0.0
    %1545 = vmatpush1.msra.mxu0 %v1373
    %1546 = vmatprep.subr.mxu0 0.0
    %1547 = vmatpush1.msra.mxu0 %v1372
    %1548 = vmatprep.subr.mxu0 0.0
    %1549 = vmatpush2.msra.mxu0 0.0
    %1550 = vmatprep.subr.mxu0 0.0
    %1551 = vmatpush2.msra.mxu0 0.0
    %1552 = vmatprep.subr.mxu0 0.0
    %1553 = vmatpush2.msra.mxu0 0.0
    %1554 = vmatprep.subr.mxu0 0.0
    %1555 = vmatpush2.msra.mxu0 0.0
    %1556 = vmatprep.subr.mxu0 0.0
    %1557 = vmatpush2.msra.mxu0 0.0
    %1558 = vmatprep.subr.mxu0 0.0
    %1559 = vmatpush2.msra.mxu0 0.0
    %1560 = vmatprep.subr.mxu0 0.0
    %1561 = vmatpush2.msra.mxu0 0.0
    %1562 = vmatprep.subr.mxu0 0.0
    %1563 = vmatpush2.msra.mxu0 0.0
    %1564 = vmatprep.subr.mxu0 0.0
    %1565 = vmatpush2.msra.mxu0 0.0
    %1566 = vmatprep.subr.mxu0 0.0
    %1567 = vmatpush2.msra.mxu0 0.0
    %1568 = vmatprep.subr.mxu0 0.0
    %1569 = vmatpush2.msra.mxu0 0.0
    %1570 = vmatprep.subr.mxu0 0.0
    %1571 = vmatpush2.msra.mxu0 0.0
    %1572 = vmatprep.subr.mxu0 0.0
    %1573 = vmatpush2.msra.mxu0 0.0
    %1574 = vmatprep.subr.mxu0 0.0
    %1575 = vmatpush2.msra.mxu0 0.0
    %1576 = vmatprep.subr.mxu0 0.0
    %1577 = vmatpush2.msra.mxu0 0.0
    %1578 = vmatprep.subr.mxu0 0.0
    %1579 = vmatpush2.msra.mxu0 0.0
    %1580 = vmatprep.mubr.f32.mxu0 0.0
    %1581 = vmatmul.mubr.f32.gmra.mxu0 %v1499
    %v1582 = vpop.f32.mrf.mxu0
    %v1583 = vadd.f32 %v1472, %v1582
    %v1584 = vpop.f32.mrf.mxu0
    %1585 = vmatprep.mubr.f32.mxu0 0.0
    %1586 = vmatmul.mubr.f32.gmra.mxu0 %v1502
    %v1587 = vpop.f32.mrf.mxu0
    %v1588 = vadd.f32 %v1477, %v1587
    %v1589 = vpop.f32.mrf.mxu0
    %1590 = vmatprep.mubr.f32.mxu0 0.0
    %1591 = vmatmul.mubr.f32.gmra.mxu0 %v1505
    %v1592 = vpop.f32.mrf.mxu0
    %v1593 = vpop.f32.mrf.mxu0
    %1594 = vmatprep.mubr.f32.mxu0 0.0
    %1595 = vmatmul.mubr.f32.gmra.mxu0 %v1508
    %v1596 = vpop.f32.mrf.mxu0
    %v1597 = vpop.f32.mrf.mxu0
    %1598 = vmatprep.mubr.f32.mxu0 0.0
    %1599 = vmatmul.mubr.f32.gmra.mxu0 %v1511
    %v1600 = vpop.f32.mrf.mxu0
    %v1601 = vadd.f32 %v1490, %v1600
    %v1602 = vpop.f32.mrf.mxu0
    %1603 = vmatprep.mubr.f32.mxu0 0.0
    %1604 = vmatmul.mubr.f32.gmra.mxu0 %v1514
    %v1605 = vpop.f32.mrf.mxu0
    %v1606 = vadd.f32 %v1495, %v1605
    %v1607 = vpop.f32.mrf.mxu0
    %1608 = vdwg.mxu0
    %v1609 = vld [vmem:[#allocation2 + $0x8] sm:$0xff]
    %v1610 = vld [vmem:[#allocation2 + $0x10] sm:$0xff]
    %v1611 = vld [vmem:[#allocation2 + $0x18] sm:$0xff]
    %v1612 = vld [vmem:[#allocation2 + $0x20] sm:$0xff]
    %v1613 = vld [vmem:[#allocation2 + $0x28] sm:$0xff]
    %v1614 = vld [vmem:[#allocation2 + $0x30] sm:$0xff]
    %s1615 = scalar_lea.vmem [#allocation7], 384
    %v1616 = vld [vmem:[%s1615] sm:$0xff]
    %v1617 = vld [vmem:[%s1615 + $0x8] sm:$0xff]
    %v1618 = vld [vmem:[%s1615 + $0x10] sm:$0xff]
    %v1619 = vld [vmem:[%s1615 + $0x18] sm:$0xff]
    %v1621 = vsel %vm56, %v1609, 0
    %v1624 = vsel %vm56, %v1610, 0
    %v1627 = vsel %vm56, %v1611, 0
    %v1630 = vsel %vm56, %v1612, 0
    %v1633 = vsel %vm56, %v1613, 0
    %v1636 = vsel %vm56, %v1614, 0
    %1638 = vmatprep.subr.mxu0 0.0
    %1639 = vmatpush1.msra.mxu0 0.0
    %1640 = vmatprep.subr.mxu0 0.0
    %1641 = vmatpush1.msra.mxu0 0.0
    %1642 = vmatprep.subr.mxu0 0.0
    %1643 = vmatpush1.msra.mxu0 0.0
    %1644 = vmatprep.subr.mxu0 0.0
    %1645 = vmatpush1.msra.mxu0 0.0
    %1646 = vmatprep.subr.mxu0 0.0
    %1647 = vmatpush1.msra.mxu0 0.0
    %1648 = vmatprep.subr.mxu0 0.0
    %1649 = vmatpush1.msra.mxu0 0.0
    %1650 = vmatprep.subr.mxu0 0.0
    %1651 = vmatpush1.msra.mxu0 0.0
    %1652 = vmatprep.subr.mxu0 0.0
    %1653 = vmatpush1.msra.mxu0 0.0
    %1654 = vmatprep.subr.mxu0 0.0
    %1655 = vmatpush1.msra.mxu0 0.0
    %1656 = vmatprep.subr.mxu0 0.0
    %1657 = vmatpush1.msra.mxu0 0.0
    %1658 = vmatprep.subr.mxu0 0.0
    %1659 = vmatpush1.msra.mxu0 0.0
    %1660 = vmatprep.subr.mxu0 0.0
    %1661 = vmatpush1.msra.mxu0 0.0
    %1662 = vmatprep.subr.mxu0 0.0
    %1663 = vmatpush1.msra.mxu0 %v1619
    %1664 = vmatprep.subr.mxu0 0.0
    %1665 = vmatpush1.msra.mxu0 %v1618
    %1666 = vmatprep.subr.mxu0 0.0
    %1667 = vmatpush1.msra.mxu0 %v1617
    %1668 = vmatprep.subr.mxu0 0.0
    %1669 = vmatpush1.msra.mxu0 %v1616
    %1670 = vmatprep.subr.mxu0 0.0
    %1671 = vmatpush2.msra.mxu0 0.0
    %1672 = vmatprep.subr.mxu0 0.0
    %1673 = vmatpush2.msra.mxu0 0.0
    %1674 = vmatprep.subr.mxu0 0.0
    %1675 = vmatpush2.msra.mxu0 0.0
    %1676 = vmatprep.subr.mxu0 0.0
    %1677 = vmatpush2.msra.mxu0 0.0
    %1678 = vmatprep.subr.mxu0 0.0
    %1679 = vmatpush2.msra.mxu0 0.0
    %1680 = vmatprep.subr.mxu0 0.0
    %1681 = vmatpush2.msra.mxu0 0.0
    %1682 = vmatprep.subr.mxu0 0.0
    %1683 = vmatpush2.msra.mxu0 0.0
    %1684 = vmatprep.subr.mxu0 0.0
    %1685 = vmatpush2.msra.mxu0 0.0
    %1686 = vmatprep.subr.mxu0 0.0
    %1687 = vmatpush2.msra.mxu0 0.0
    %1688 = vmatprep.subr.mxu0 0.0
    %1689 = vmatpush2.msra.mxu0 0.0
    %1690 = vmatprep.subr.mxu0 0.0
    %1691 = vmatpush2.msra.mxu0 0.0
    %1692 = vmatprep.subr.mxu0 0.0
    %1693 = vmatpush2.msra.mxu0 0.0
    %1694 = vmatprep.subr.mxu0 0.0
    %1695 = vmatpush2.msra.mxu0 0.0
    %1696 = vmatprep.subr.mxu0 0.0
    %1697 = vmatpush2.msra.mxu0 0.0
    %1698 = vmatprep.subr.mxu0 0.0
    %1699 = vmatpush2.msra.mxu0 0.0
    %1700 = vmatprep.subr.mxu0 0.0
    %1701 = vmatpush2.msra.mxu0 0.0
    %1702 = vmatprep.mubr.f32.mxu0 0.0
    %1703 = vmatmul.mubr.f32.gmra.mxu0 %v1621
    %v1704 = vpop.f32.mrf.mxu0
    %v1705 = vadd.f32 0.0, %v1704
    %v1706 = vpop.f32.mrf.mxu0
    %1707 = vmatprep.mubr.f32.mxu0 0.0
    %1708 = vmatmul.mubr.f32.gmra.mxu0 %v1624
    %v1709 = vpop.f32.mrf.mxu0
    %v1710 = vadd.f32 0.0, %v1709
    %v1711 = vpop.f32.mrf.mxu0
    %1712 = vmatprep.mubr.f32.mxu0 0.0
    %1713 = vmatmul.mubr.f32.gmra.mxu0 %v1627
    %v1714 = vpop.f32.mrf.mxu0
    %v1715 = vpop.f32.mrf.mxu0
    %1716 = vmatprep.mubr.f32.mxu0 0.0
    %1717 = vmatmul.mubr.f32.gmra.mxu0 %v1630
    %v1718 = vpop.f32.mrf.mxu0
    %v1719 = vpop.f32.mrf.mxu0
    %1720 = vmatprep.mubr.f32.mxu0 0.0
    %1721 = vmatmul.mubr.f32.gmra.mxu0 %v1633
    %v1722 = vpop.f32.mrf.mxu0
    %v1723 = vadd.f32 0.0, %v1722
    %v1724 = vpop.f32.mrf.mxu0
    %1725 = vmatprep.mubr.f32.mxu0 0.0
    %1726 = vmatmul.mubr.f32.gmra.mxu0 %v1636
    %v1727 = vpop.f32.mrf.mxu0
    %v1728 = vadd.f32 0.0, %v1727
    %v1729 = vpop.f32.mrf.mxu0
    %1730 = vdwg.mxu0
    %v1731 = vadd.f32 %v1583, %v1705
    %v1732 = vadd.f32 %v1588, %v1710
    %v1733 = vadd.f32 %v1601, %v1723
    %v1734 = vadd.f32 %v1606, %v1728
    %v1735 = vld [vmem:[#allocation2 + $0x9] sm:$0xff]
    %v1736 = vld [vmem:[#allocation2 + $0x11] sm:$0xff]
    %v1737 = vld [vmem:[#allocation2 + $0x19] sm:$0xff]
    %v1738 = vld [vmem:[#allocation2 + $0x21] sm:$0xff]
    %v1739 = vld [vmem:[#allocation2 + $0x29] sm:$0xff]
    %v1740 = vld [vmem:[#allocation2 + $0x31] sm:$0xff]
    %s1741 = scalar_lea.vmem [#allocation7], 416
    %v1742 = vld [vmem:[%s1741] sm:$0xff]
    %v1743 = vld [vmem:[%s1741 + $0x8] sm:$0xff]
    %v1744 = vld [vmem:[%s1741 + $0x10] sm:$0xff]
    %v1745 = vld [vmem:[%s1741 + $0x18] sm:$0xff]
    %v1747 = vsel %vm56, %v1735, 0
    %v1750 = vsel %vm56, %v1736, 0
    %v1753 = vsel %vm56, %v1737, 0
    %v1756 = vsel %vm56, %v1738, 0
    %v1759 = vsel %vm56, %v1739, 0
    %v1762 = vsel %vm56, %v1740, 0
    %1764 = vmatprep.subr.mxu0 0.0
    %1765 = vmatpush1.msra.mxu0 0.0
    %1766 = vmatprep.subr.mxu0 0.0
    %1767 = vmatpush1.msra.mxu0 0.0
    %1768 = vmatprep.subr.mxu0 0.0
    %1769 = vmatpush1.msra.mxu0 0.0
    %1770 = vmatprep.subr.mxu0 0.0
    %1771 = vmatpush1.msra.mxu0 0.0
    %1772 = vmatprep.subr.mxu0 0.0
    %1773 = vmatpush1.msra.mxu0 0.0
    %1774 = vmatprep.subr.mxu0 0.0
    %1775 = vmatpush1.msra.mxu0 0.0
    %1776 = vmatprep.subr.mxu0 0.0
    %1777 = vmatpush1.msra.mxu0 0.0
    %1778 = vmatprep.subr.mxu0 0.0
    %1779 = vmatpush1.msra.mxu0 0.0
    %1780 = vmatprep.subr.mxu0 0.0
    %1781 = vmatpush1.msra.mxu0 0.0
    %1782 = vmatprep.subr.mxu0 0.0
    %1783 = vmatpush1.msra.mxu0 0.0
    %1784 = vmatprep.subr.mxu0 0.0
    %1785 = vmatpush1.msra.mxu0 0.0
    %1786 = vmatprep.subr.mxu0 0.0
    %1787 = vmatpush1.msra.mxu0 0.0
    %1788 = vmatprep.subr.mxu0 0.0
    %1789 = vmatpush1.msra.mxu0 %v1745
    %1790 = vmatprep.subr.mxu0 0.0
    %1791 = vmatpush1.msra.mxu0 %v1744
    %1792 = vmatprep.subr.mxu0 0.0
    %1793 = vmatpush1.msra.mxu0 %v1743
    %1794 = vmatprep.subr.mxu0 0.0
    %1795 = vmatpush1.msra.mxu0 %v1742
    %1796 = vmatprep.subr.mxu0 0.0
    %1797 = vmatpush2.msra.mxu0 0.0
    %1798 = vmatprep.subr.mxu0 0.0
    %1799 = vmatpush2.msra.mxu0 0.0
    %1800 = vmatprep.subr.mxu0 0.0
    %1801 = vmatpush2.msra.mxu0 0.0
    %1802 = vmatprep.subr.mxu0 0.0
    %1803 = vmatpush2.msra.mxu0 0.0
    %1804 = vmatprep.subr.mxu0 0.0
    %1805 = vmatpush2.msra.mxu0 0.0
    %1806 = vmatprep.subr.mxu0 0.0
    %1807 = vmatpush2.msra.mxu0 0.0
    %1808 = vmatprep.subr.mxu0 0.0
    %1809 = vmatpush2.msra.mxu0 0.0
    %1810 = vmatprep.subr.mxu0 0.0
    %1811 = vmatpush2.msra.mxu0 0.0
    %1812 = vmatprep.subr.mxu0 0.0
    %1813 = vmatpush2.msra.mxu0 0.0
    %1814 = vmatprep.subr.mxu0 0.0
    %1815 = vmatpush2.msra.mxu0 0.0
    %1816 = vmatprep.subr.mxu0 0.0
    %1817 = vmatpush2.msra.mxu0 0.0
    %1818 = vmatprep.subr.mxu0 0.0
    %1819 = vmatpush2.msra.mxu0 0.0
    %1820 = vmatprep.subr.mxu0 0.0
    %1821 = vmatpush2.msra.mxu0 0.0
    %1822 = vmatprep.subr.mxu0 0.0
    %1823 = vmatpush2.msra.mxu0 0.0
    %1824 = vmatprep.subr.mxu0 0.0
    %1825 = vmatpush2.msra.mxu0 0.0
    %1826 = vmatprep.subr.mxu0 0.0
    %1827 = vmatpush2.msra.mxu0 0.0
    %1828 = vmatprep.mubr.f32.mxu0 0.0
    %1829 = vmatmul.mubr.f32.gmra.mxu0 %v1747
    %v1830 = vpop.f32.mrf.mxu0
    %v1831 = vadd.f32 0.0, %v1830
    %v1832 = vpop.f32.mrf.mxu0
    %1833 = vmatprep.mubr.f32.mxu0 0.0
    %1834 = vmatmul.mubr.f32.gmra.mxu0 %v1750
    %v1835 = vpop.f32.mrf.mxu0
    %v1836 = vadd.f32 0.0, %v1835
    %v1837 = vpop.f32.mrf.mxu0
    %1838 = vmatprep.mubr.f32.mxu0 0.0
    %1839 = vmatmul.mubr.f32.gmra.mxu0 %v1753
    %v1840 = vpop.f32.mrf.mxu0
    %v1841 = vpop.f32.mrf.mxu0
    %1842 = vmatprep.mubr.f32.mxu0 0.0
    %1843 = vmatmul.mubr.f32.gmra.mxu0 %v1756
    %v1844 = vpop.f32.mrf.mxu0
    %v1845 = vpop.f32.mrf.mxu0
    %1846 = vmatprep.mubr.f32.mxu0 0.0
    %1847 = vmatmul.mubr.f32.gmra.mxu0 %v1759
    %v1848 = vpop.f32.mrf.mxu0
    %v1849 = vadd.f32 0.0, %v1848
    %v1850 = vpop.f32.mrf.mxu0
    %1851 = vmatprep.mubr.f32.mxu0 0.0
    %1852 = vmatmul.mubr.f32.gmra.mxu0 %v1762
    %v1853 = vpop.f32.mrf.mxu0
    %v1854 = vadd.f32 0.0, %v1853
    %v1855 = vpop.f32.mrf.mxu0
    %1856 = vdwg.mxu0
    %v1857 = vadd.f32 %v1731, %v1831
    %v1858 = vadd.f32 %v1732, %v1836
    %v1859 = vadd.f32 %v1733, %v1849
    %v1860 = vadd.f32 %v1734, %v1854
    %v1861 = vld [vmem:[#allocation2 + $0xa] sm:$0xff]
    %v1862 = vld [vmem:[#allocation2 + $0x12] sm:$0xff]
    %v1863 = vld [vmem:[#allocation2 + $0x1a] sm:$0xff]
    %v1864 = vld [vmem:[#allocation2 + $0x22] sm:$0xff]
    %v1865 = vld [vmem:[#allocation2 + $0x2a] sm:$0xff]
    %v1866 = vld [vmem:[#allocation2 + $0x32] sm:$0xff]
    %s1867 = scalar_lea.vmem [#allocation7], 448
    %v1868 = vld [vmem:[%s1867] sm:$0xff]
    %v1869 = vld [vmem:[%s1867 + $0x8] sm:$0xff]
    %v1870 = vld [vmem:[%s1867 + $0x10] sm:$0xff]
    %v1871 = vld [vmem:[%s1867 + $0x18] sm:$0xff]
    %v1873 = vsel %vm56, %v1861, 0
    %v1876 = vsel %vm56, %v1862, 0
    %v1879 = vsel %vm56, %v1863, 0
    %v1882 = vsel %vm56, %v1864, 0
    %v1885 = vsel %vm56, %v1865, 0
    %v1888 = vsel %vm56, %v1866, 0
    %1890 = vmatprep.subr.mxu0 0.0
    %1891 = vmatpush1.msra.mxu0 0.0
    %1892 = vmatprep.subr.mxu0 0.0
    %1893 = vmatpush1.msra.mxu0 0.0
    %1894 = vmatprep.subr.mxu0 0.0
    %1895 = vmatpush1.msra.mxu0 0.0
    %1896 = vmatprep.subr.mxu0 0.0
    %1897 = vmatpush1.msra.mxu0 0.0
    %1898 = vmatprep.subr.mxu0 0.0
    %1899 = vmatpush1.msra.mxu0 0.0
    %1900 = vmatprep.subr.mxu0 0.0
    %1901 = vmatpush1.msra.mxu0 0.0
    %1902 = vmatprep.subr.mxu0 0.0
    %1903 = vmatpush1.msra.mxu0 0.0
    %1904 = vmatprep.subr.mxu0 0.0
    %1905 = vmatpush1.msra.mxu0 0.0
    %1906 = vmatprep.subr.mxu0 0.0
    %1907 = vmatpush1.msra.mxu0 0.0
    %1908 = vmatprep.subr.mxu0 0.0
    %1909 = vmatpush1.msra.mxu0 0.0
    %1910 = vmatprep.subr.mxu0 0.0
    %1911 = vmatpush1.msra.mxu0 0.0
    %1912 = vmatprep.subr.mxu0 0.0
    %1913 = vmatpush1.msra.mxu0 0.0
    %1914 = vmatprep.subr.mxu0 0.0
    %1915 = vmatpush1.msra.mxu0 %v1871
    %1916 = vmatprep.subr.mxu0 0.0
    %1917 = vmatpush1.msra.mxu0 %v1870
    %1918 = vmatprep.subr.mxu0 0.0
    %1919 = vmatpush1.msra.mxu0 %v1869
    %1920 = vmatprep.subr.mxu0 0.0
    %1921 = vmatpush1.msra.mxu0 %v1868
    %1922 = vmatprep.subr.mxu0 0.0
    %1923 = vmatpush2.msra.mxu0 0.0
    %1924 = vmatprep.subr.mxu0 0.0
    %1925 = vmatpush2.msra.mxu0 0.0
    %1926 = vmatprep.subr.mxu0 0.0
    %1927 = vmatpush2.msra.mxu0 0.0
    %1928 = vmatprep.subr.mxu0 0.0
    %1929 = vmatpush2.msra.mxu0 0.0
    %1930 = vmatprep.subr.mxu0 0.0
    %1931 = vmatpush2.msra.mxu0 0.0
    %1932 = vmatprep.subr.mxu0 0.0
    %1933 = vmatpush2.msra.mxu0 0.0
    %1934 = vmatprep.subr.mxu0 0.0
    %1935 = vmatpush2.msra.mxu0 0.0
    %1936 = vmatprep.subr.mxu0 0.0
    %1937 = vmatpush2.msra.mxu0 0.0
    %1938 = vmatprep.subr.mxu0 0.0
    %1939 = vmatpush2.msra.mxu0 0.0
    %1940 = vmatprep.subr.mxu0 0.0
    %1941 = vmatpush2.msra.mxu0 0.0
    %1942 = vmatprep.subr.mxu0 0.0
    %1943 = vmatpush2.msra.mxu0 0.0
    %1944 = vmatprep.subr.mxu0 0.0
    %1945 = vmatpush2.msra.mxu0 0.0
    %1946 = vmatprep.subr.mxu0 0.0
    %1947 = vmatpush2.msra.mxu0 0.0
    %1948 = vmatprep.subr.mxu0 0.0
    %1949 = vmatpush2.msra.mxu0 0.0
    %1950 = vmatprep.subr.mxu0 0.0
    %1951 = vmatpush2.msra.mxu0 0.0
    %1952 = vmatprep.subr.mxu0 0.0
    %1953 = vmatpush2.msra.mxu0 0.0
    %1954 = vmatprep.mubr.f32.mxu0 0.0
    %1955 = vmatmul.mubr.f32.gmra.mxu0 %v1873
    %v1956 = vpop.f32.mrf.mxu0
    %v1957 = vadd.f32 0.0, %v1956
    %v1958 = vpop.f32.mrf.mxu0
    %1959 = vmatprep.mubr.f32.mxu0 0.0
    %1960 = vmatmul.mubr.f32.gmra.mxu0 %v1876
    %v1961 = vpop.f32.mrf.mxu0
    %v1962 = vadd.f32 0.0, %v1961
    %v1963 = vpop.f32.mrf.mxu0
    %1964 = vmatprep.mubr.f32.mxu0 0.0
    %1965 = vmatmul.mubr.f32.gmra.mxu0 %v1879
    %v1966 = vpop.f32.mrf.mxu0
    %v1967 = vpop.f32.mrf.mxu0
    %1968 = vmatprep.mubr.f32.mxu0 0.0
    %1969 = vmatmul.mubr.f32.gmra.mxu0 %v1882
    %v1970 = vpop.f32.mrf.mxu0
    %v1971 = vpop.f32.mrf.mxu0
    %1972 = vmatprep.mubr.f32.mxu0 0.0
    %1973 = vmatmul.mubr.f32.gmra.mxu0 %v1885
    %v1974 = vpop.f32.mrf.mxu0
    %v1975 = vadd.f32 0.0, %v1974
    %v1976 = vpop.f32.mrf.mxu0
    %1977 = vmatprep.mubr.f32.mxu0 0.0
    %1978 = vmatmul.mubr.f32.gmra.mxu0 %v1888
    %v1979 = vpop.f32.mrf.mxu0
    %v1980 = vadd.f32 0.0, %v1979
    %v1981 = vpop.f32.mrf.mxu0
    %1982 = vdwg.mxu0
    %v1983 = vadd.f32 %v1857, %v1957
    %v1984 = vadd.f32 %v1858, %v1962
    %v1985 = vadd.f32 %v1859, %v1975
    %v1986 = vadd.f32 %v1860, %v1980
    %s1987 = scalar_lea.vmem [#allocation9], 2
    %v1988 = vld [vmem:[%s1987] sm:$0x1]
    %v1990 = vlaneseq
    %v1991 = vshrl.u32 %v1990, 7
    %v1992 = vsub.s32 0, %v1991
    %v1993 = vrot.slane %v1988, %v1992
    %v1995 = vadd.f32 %v1983, %v1993
    %v1996 = vadd.f32 %v1984, %v1993
    %v1997 = vadd.f32 %v1985, %v1993
    %v1998 = vadd.f32 %v1986, %v1993
    %v1999 = vtanh.pop %v1995
    %v2000 = vtanh.pop %v1996
    %2001 = vst.msk [vmem:[#allocation3 + $0x8] sm:$0xff] %vm56, %v1999
    %2002 = vst.msk [vmem:[#allocation3 + $0x10] sm:$0xff] %vm56, %v2000
    %v2003 = vtanh.pop %v1997
    %v2004 = vtanh.pop %v1998
    %2005 = vst.msk [vmem:[#allocation3 + $0x28] sm:$0xff] %vm56, %v2003
    %2006 = vst.msk [vmem:[#allocation3 + $0x30] sm:$0xff] %vm56, %v2004
    %v2007 = vld [vmem:[#allocation3 + $0x6] sm:$0xff]
    %v2008 = vld [vmem:[#allocation3 + $0xe] sm:$0xff]
    %v2009 = vld [vmem:[#allocation3 + $0x16] sm:$0xff]
    %v2010 = vld [vmem:[#allocation3 + $0x1e] sm:$0xff]
    %v2011 = vld [vmem:[#allocation3 + $0x26] sm:$0xff]
    %v2012 = vld [vmem:[#allocation3 + $0x2e] sm:$0xff]
    %s2013 = scalar_lea.vmem [#allocation7], 480
    %v2014 = vld [vmem:[%s2013] sm:$0xff]
    %v2015 = vld [vmem:[%s2013 + $0x8] sm:$0xff]
    %v2016 = vld [vmem:[%s2013 + $0x10] sm:$0xff]
    %v2017 = vld [vmem:[%s2013 + $0x18] sm:$0xff]
    %v2018 = vld [vmem:[#allocation3 + $0x7] sm:$0xff]
    %v2019 = vld [vmem:[#allocation3 + $0xf] sm:$0xff]
    %v2020 = vld [vmem:[#allocation3 + $0x17] sm:$0xff]
    %v2021 = vld [vmem:[#allocation3 + $0x1f] sm:$0xff]
    %v2022 = vld [vmem:[#allocation3 + $0x27] sm:$0xff]
    %v2023 = vld [vmem:[#allocation3 + $0x2f] sm:$0xff]
    %s2024 = scalar_lea.vmem [#allocation7], 512
    %v2025 = vld [vmem:[%s2024] sm:$0xff]
    %v2026 = vld [vmem:[%s2024 + $0x8] sm:$0xff]
    %v2027 = vld [vmem:[%s2024 + $0x10] sm:$0xff]
    %v2028 = vld [vmem:[%s2024 + $0x18] sm:$0xff]
    %v2030 = vsel %vm56, %v2018, 0
    %v2033 = vsel %vm56, %v2019, 0
    %v2036 = vsel %vm56, %v2020, 0
    %v2039 = vsel %vm56, %v2021, 0
    %v2042 = vsel %vm56, %v2022, 0
    %v2045 = vsel %vm56, %v2023, 0
    %2047 = vmatprep.subr.mxu0 0.0
    %2048 = vmatpush1.msra.mxu0 0.0
    %2049 = vmatprep.subr.mxu0 0.0
    %2050 = vmatpush1.msra.mxu0 0.0
    %2051 = vmatprep.subr.mxu0 0.0
    %2052 = vmatpush1.msra.mxu0 0.0
    %2053 = vmatprep.subr.mxu0 0.0
    %2054 = vmatpush1.msra.mxu0 0.0
    %2055 = vmatprep.subr.mxu0 0.0
    %2056 = vmatpush1.msra.mxu0 0.0
    %2057 = vmatprep.subr.mxu0 0.0
    %2058 = vmatpush1.msra.mxu0 0.0
    %2059 = vmatprep.subr.mxu0 0.0
    %2060 = vmatpush1.msra.mxu0 0.0
    %2061 = vmatprep.subr.mxu0 0.0
    %2062 = vmatpush1.msra.mxu0 0.0
    %2063 = vmatprep.subr.mxu0 0.0
    %2064 = vmatpush1.msra.mxu0 0.0
    %2065 = vmatprep.subr.mxu0 0.0
    %2066 = vmatpush1.msra.mxu0 0.0
    %2067 = vmatprep.subr.mxu0 0.0
    %2068 = vmatpush1.msra.mxu0 0.0
    %2069 = vmatprep.subr.mxu0 0.0
    %2070 = vmatpush1.msra.mxu0 0.0
    %2071 = vmatprep.subr.mxu0 0.0
    %2072 = vmatpush1.msra.mxu0 %v2028
    %2073 = vmatprep.subr.mxu0 0.0
    %2074 = vmatpush1.msra.mxu0 %v2027
    %2075 = vmatprep.subr.mxu0 0.0
    %2076 = vmatpush1.msra.mxu0 %v2026
    %2077 = vmatprep.subr.mxu0 0.0
    %2078 = vmatpush1.msra.mxu0 %v2025
    %2079 = vmatprep.subr.mxu0 0.0
    %2080 = vmatpush2.msra.mxu0 0.0
    %2081 = vmatprep.subr.mxu0 0.0
    %2082 = vmatpush2.msra.mxu0 0.0
    %2083 = vmatprep.subr.mxu0 0.0
    %2084 = vmatpush2.msra.mxu0 0.0
    %2085 = vmatprep.subr.mxu0 0.0
    %2086 = vmatpush2.msra.mxu0 0.0
    %2087 = vmatprep.subr.mxu0 0.0
    %2088 = vmatpush2.msra.mxu0 0.0
    %2089 = vmatprep.subr.mxu0 0.0
    %2090 = vmatpush2.msra.mxu0 0.0
    %2091 = vmatprep.subr.mxu0 0.0
    %2092 = vmatpush2.msra.mxu0 0.0
    %2093 = vmatprep.subr.mxu0 0.0
    %2094 = vmatpush2.msra.mxu0 0.0
    %2095 = vmatprep.subr.mxu0 0.0
    %2096 = vmatpush2.msra.mxu0 0.0
    %2097 = vmatprep.subr.mxu0 0.0
    %2098 = vmatpush2.msra.mxu0 0.0
    %2099 = vmatprep.subr.mxu0 0.0
    %2100 = vmatpush2.msra.mxu0 0.0
    %2101 = vmatprep.subr.mxu0 0.0
    %2102 = vmatpush2.msra.mxu0 0.0
    %2103 = vmatprep.subr.mxu0 0.0
    %2104 = vmatpush2.msra.mxu0 0.0
    %2105 = vmatprep.subr.mxu0 0.0
    %2106 = vmatpush2.msra.mxu0 0.0
    %2107 = vmatprep.subr.mxu0 0.0
    %2108 = vmatpush2.msra.mxu0 0.0
    %2109 = vmatprep.subr.mxu0 0.0
    %2110 = vmatpush2.msra.mxu0 0.0
    %2111 = vmatprep.mubr.f32.mxu0 0.0
    %2112 = vmatmul.mubr.f32.gmra.mxu0 %v2030
    %v2113 = vpop.f32.mrf.mxu0
    %v2114 = vadd.f32 0.0, %v2113
    %v2115 = vpop.f32.mrf.mxu0
    %2116 = vmatprep.mubr.f32.mxu0 0.0
    %2117 = vmatmul.mubr.f32.gmra.mxu0 %v2033
    %v2118 = vpop.f32.mrf.mxu0
    %v2119 = vadd.f32 0.0, %v2118
    %v2120 = vpop.f32.mrf.mxu0
    %2121 = vmatprep.mubr.f32.mxu0 0.0
    %2122 = vmatmul.mubr.f32.gmra.mxu0 %v2036
    %v2123 = vpop.f32.mrf.mxu0
    %v2124 = vpop.f32.mrf.mxu0
    %2125 = vmatprep.mubr.f32.mxu0 0.0
    %2126 = vmatmul.mubr.f32.gmra.mxu0 %v2039
    %v2127 = vpop.f32.mrf.mxu0
    %v2128 = vpop.f32.mrf.mxu0
    %2129 = vmatprep.mubr.f32.mxu0 0.0
    %2130 = vmatmul.mubr.f32.gmra.mxu0 %v2042
    %v2131 = vpop.f32.mrf.mxu0
    %v2132 = vadd.f32 0.0, %v2131
    %v2133 = vpop.f32.mrf.mxu0
    %2134 = vmatprep.mubr.f32.mxu0 0.0
    %2135 = vmatmul.mubr.f32.gmra.mxu0 %v2045
    %v2136 = vpop.f32.mrf.mxu0
    %v2137 = vadd.f32 0.0, %v2136
    %v2138 = vpop.f32.mrf.mxu0
    %2139 = vdwg.mxu0
    %v2141 = vsel %vm56, %v2007, 0
    %v2144 = vsel %vm56, %v2008, 0
    %v2147 = vsel %vm56, %v2009, 0
    %v2150 = vsel %vm56, %v2010, 0
    %v2153 = vsel %vm56, %v2011, 0
    %v2156 = vsel %vm56, %v2012, 0
    %2158 = vmatprep.subr.mxu0 0.0
    %2159 = vmatpush1.msra.mxu0 0.0
    %2160 = vmatprep.subr.mxu0 0.0
    %2161 = vmatpush1.msra.mxu0 0.0
    %2162 = vmatprep.subr.mxu0 0.0
    %2163 = vmatpush1.msra.mxu0 0.0
    %2164 = vmatprep.subr.mxu0 0.0
    %2165 = vmatpush1.msra.mxu0 0.0
    %2166 = vmatprep.subr.mxu0 0.0
    %2167 = vmatpush1.msra.mxu0 0.0
    %2168 = vmatprep.subr.mxu0 0.0
    %2169 = vmatpush1.msra.mxu0 0.0
    %2170 = vmatprep.subr.mxu0 0.0
    %2171 = vmatpush1.msra.mxu0 0.0
    %2172 = vmatprep.subr.mxu0 0.0
    %2173 = vmatpush1.msra.mxu0 0.0
    %2174 = vmatprep.subr.mxu0 0.0
    %2175 = vmatpush1.msra.mxu0 0.0
    %2176 = vmatprep.subr.mxu0 0.0
    %2177 = vmatpush1.msra.mxu0 0.0
    %2178 = vmatprep.subr.mxu0 0.0
    %2179 = vmatpush1.msra.mxu0 0.0
    %2180 = vmatprep.subr.mxu0 0.0
    %2181 = vmatpush1.msra.mxu0 0.0
    %2182 = vmatprep.subr.mxu0 0.0
    %2183 = vmatpush1.msra.mxu0 %v2017
    %2184 = vmatprep.subr.mxu0 0.0
    %2185 = vmatpush1.msra.mxu0 %v2016
    %2186 = vmatprep.subr.mxu0 0.0
    %2187 = vmatpush1.msra.mxu0 %v2015
    %2188 = vmatprep.subr.mxu0 0.0
    %2189 = vmatpush1.msra.mxu0 %v2014
    %2190 = vmatprep.subr.mxu0 0.0
    %2191 = vmatpush2.msra.mxu0 0.0
    %2192 = vmatprep.subr.mxu0 0.0
    %2193 = vmatpush2.msra.mxu0 0.0
    %2194 = vmatprep.subr.mxu0 0.0
    %2195 = vmatpush2.msra.mxu0 0.0
    %2196 = vmatprep.subr.mxu0 0.0
    %2197 = vmatpush2.msra.mxu0 0.0
    %2198 = vmatprep.subr.mxu0 0.0
    %2199 = vmatpush2.msra.mxu0 0.0
    %2200 = vmatprep.subr.mxu0 0.0
    %2201 = vmatpush2.msra.mxu0 0.0
    %2202 = vmatprep.subr.mxu0 0.0
    %2203 = vmatpush2.msra.mxu0 0.0
    %2204 = vmatprep.subr.mxu0 0.0
    %2205 = vmatpush2.msra.mxu0 0.0
    %2206 = vmatprep.subr.mxu0 0.0
    %2207 = vmatpush2.msra.mxu0 0.0
    %2208 = vmatprep.subr.mxu0 0.0
    %2209 = vmatpush2.msra.mxu0 0.0
    %2210 = vmatprep.subr.mxu0 0.0
    %2211 = vmatpush2.msra.mxu0 0.0
    %2212 = vmatprep.subr.mxu0 0.0
    %2213 = vmatpush2.msra.mxu0 0.0
    %2214 = vmatprep.subr.mxu0 0.0
    %2215 = vmatpush2.msra.mxu0 0.0
    %2216 = vmatprep.subr.mxu0 0.0
    %2217 = vmatpush2.msra.mxu0 0.0
    %2218 = vmatprep.subr.mxu0 0.0
    %2219 = vmatpush2.msra.mxu0 0.0
    %2220 = vmatprep.subr.mxu0 0.0
    %2221 = vmatpush2.msra.mxu0 0.0
    %2222 = vmatprep.mubr.f32.mxu0 0.0
    %2223 = vmatmul.mubr.f32.gmra.mxu0 %v2141
    %v2224 = vpop.f32.mrf.mxu0
    %v2225 = vadd.f32 %v2114, %v2224
    %v2226 = vpop.f32.mrf.mxu0
    %2227 = vmatprep.mubr.f32.mxu0 0.0
    %2228 = vmatmul.mubr.f32.gmra.mxu0 %v2144
    %v2229 = vpop.f32.mrf.mxu0
    %v2230 = vadd.f32 %v2119, %v2229
    %v2231 = vpop.f32.mrf.mxu0
    %2232 = vmatprep.mubr.f32.mxu0 0.0
    %2233 = vmatmul.mubr.f32.gmra.mxu0 %v2147
    %v2234 = vpop.f32.mrf.mxu0
    %v2235 = vpop.f32.mrf.mxu0
    %2236 = vmatprep.mubr.f32.mxu0 0.0
    %2237 = vmatmul.mubr.f32.gmra.mxu0 %v2150
    %v2238 = vpop.f32.mrf.mxu0
    %v2239 = vpop.f32.mrf.mxu0
    %2240 = vmatprep.mubr.f32.mxu0 0.0
    %2241 = vmatmul.mubr.f32.gmra.mxu0 %v2153
    %v2242 = vpop.f32.mrf.mxu0
    %v2243 = vadd.f32 %v2132, %v2242
    %v2244 = vpop.f32.mrf.mxu0
    %2245 = vmatprep.mubr.f32.mxu0 0.0
    %2246 = vmatmul.mubr.f32.gmra.mxu0 %v2156
    %v2247 = vpop.f32.mrf.mxu0
    %v2248 = vadd.f32 %v2137, %v2247
    %v2249 = vpop.f32.mrf.mxu0
    %2250 = vdwg.mxu0
    %v2251 = vld [vmem:[#allocation3 + $0x8] sm:$0xff]
    %v2252 = vld [vmem:[#allocation3 + $0x10] sm:$0xff]
    %v2253 = vld [vmem:[#allocation3 + $0x18] sm:$0xff]
    %v2254 = vld [vmem:[#allocation3 + $0x20] sm:$0xff]
    %v2255 = vld [vmem:[#allocation3 + $0x28] sm:$0xff]
    %v2256 = vld [vmem:[#allocation3 + $0x30] sm:$0xff]
    %s2257 = scalar_lea.vmem [#allocation7], 544
    %v2258 = vld [vmem:[%s2257] sm:$0xff]
    %v2259 = vld [vmem:[%s2257 + $0x8] sm:$0xff]
    %v2260 = vld [vmem:[%s2257 + $0x10] sm:$0xff]
    %v2261 = vld [vmem:[%s2257 + $0x18] sm:$0xff]
    %v2263 = vsel %vm56, %v2251, 0
    %v2266 = vsel %vm56, %v2252, 0
    %v2269 = vsel %vm56, %v2253, 0
    %v2272 = vsel %vm56, %v2254, 0
    %v2275 = vsel %vm56, %v2255, 0
    %v2278 = vsel %vm56, %v2256, 0
    %2280 = vmatprep.subr.mxu0 0.0
    %2281 = vmatpush1.msra.mxu0 0.0
    %2282 = vmatprep.subr.mxu0 0.0
    %2283 = vmatpush1.msra.mxu0 0.0
    %2284 = vmatprep.subr.mxu0 0.0
    %2285 = vmatpush1.msra.mxu0 0.0
    %2286 = vmatprep.subr.mxu0 0.0
    %2287 = vmatpush1.msra.mxu0 0.0
    %2288 = vmatprep.subr.mxu0 0.0
    %2289 = vmatpush1.msra.mxu0 0.0
    %2290 = vmatprep.subr.mxu0 0.0
    %2291 = vmatpush1.msra.mxu0 0.0
    %2292 = vmatprep.subr.mxu0 0.0
    %2293 = vmatpush1.msra.mxu0 0.0
    %2294 = vmatprep.subr.mxu0 0.0
    %2295 = vmatpush1.msra.mxu0 0.0
    %2296 = vmatprep.subr.mxu0 0.0
    %2297 = vmatpush1.msra.mxu0 0.0
    %2298 = vmatprep.subr.mxu0 0.0
    %2299 = vmatpush1.msra.mxu0 0.0
    %2300 = vmatprep.subr.mxu0 0.0
    %2301 = vmatpush1.msra.mxu0 0.0
    %2302 = vmatprep.subr.mxu0 0.0
    %2303 = vmatpush1.msra.mxu0 0.0
    %2304 = vmatprep.subr.mxu0 0.0
    %2305 = vmatpush1.msra.mxu0 %v2261
    %2306 = vmatprep.subr.mxu0 0.0
    %2307 = vmatpush1.msra.mxu0 %v2260
    %2308 = vmatprep.subr.mxu0 0.0
    %2309 = vmatpush1.msra.mxu0 %v2259
    %2310 = vmatprep.subr.mxu0 0.0
    %2311 = vmatpush1.msra.mxu0 %v2258
    %2312 = vmatprep.subr.mxu0 0.0
    %2313 = vmatpush2.msra.mxu0 0.0
    %2314 = vmatprep.subr.mxu0 0.0
    %2315 = vmatpush2.msra.mxu0 0.0
    %2316 = vmatprep.subr.mxu0 0.0
    %2317 = vmatpush2.msra.mxu0 0.0
    %2318 = vmatprep.subr.mxu0 0.0
    %2319 = vmatpush2.msra.mxu0 0.0
    %2320 = vmatprep.subr.mxu0 0.0
    %2321 = vmatpush2.msra.mxu0 0.0
    %2322 = vmatprep.subr.mxu0 0.0
    %2323 = vmatpush2.msra.mxu0 0.0
    %2324 = vmatprep.subr.mxu0 0.0
    %2325 = vmatpush2.msra.mxu0 0.0
    %2326 = vmatprep.subr.mxu0 0.0
    %2327 = vmatpush2.msra.mxu0 0.0
    %2328 = vmatprep.subr.mxu0 0.0
    %2329 = vmatpush2.msra.mxu0 0.0
    %2330 = vmatprep.subr.mxu0 0.0
    %2331 = vmatpush2.msra.mxu0 0.0
    %2332 = vmatprep.subr.mxu0 0.0
    %2333 = vmatpush2.msra.mxu0 0.0
    %2334 = vmatprep.subr.mxu0 0.0
    %2335 = vmatpush2.msra.mxu0 0.0
    %2336 = vmatprep.subr.mxu0 0.0
    %2337 = vmatpush2.msra.mxu0 0.0
    %2338 = vmatprep.subr.mxu0 0.0
    %2339 = vmatpush2.msra.mxu0 0.0
    %2340 = vmatprep.subr.mxu0 0.0
    %2341 = vmatpush2.msra.mxu0 0.0
    %2342 = vmatprep.subr.mxu0 0.0
    %2343 = vmatpush2.msra.mxu0 0.0
    %2344 = vmatprep.mubr.f32.mxu0 0.0
    %2345 = vmatmul.mubr.f32.gmra.mxu0 %v2263
    %v2346 = vpop.f32.mrf.mxu0
    %v2347 = vadd.f32 0.0, %v2346
    %v2348 = vpop.f32.mrf.mxu0
    %2349 = vmatprep.mubr.f32.mxu0 0.0
    %2350 = vmatmul.mubr.f32.gmra.mxu0 %v2266
    %v2351 = vpop.f32.mrf.mxu0
    %v2352 = vadd.f32 0.0, %v2351
    %v2353 = vpop.f32.mrf.mxu0
    %2354 = vmatprep.mubr.f32.mxu0 0.0
    %2355 = vmatmul.mubr.f32.gmra.mxu0 %v2269
    %v2356 = vpop.f32.mrf.mxu0
    %v2357 = vpop.f32.mrf.mxu0
    %2358 = vmatprep.mubr.f32.mxu0 0.0
    %2359 = vmatmul.mubr.f32.gmra.mxu0 %v2272
    %v2360 = vpop.f32.mrf.mxu0
    %v2361 = vpop.f32.mrf.mxu0
    %2362 = vmatprep.mubr.f32.mxu0 0.0
    %2363 = vmatmul.mubr.f32.gmra.mxu0 %v2275
    %v2364 = vpop.f32.mrf.mxu0
    %v2365 = vadd.f32 0.0, %v2364
    %v2366 = vpop.f32.mrf.mxu0
    %2367 = vmatprep.mubr.f32.mxu0 0.0
    %2368 = vmatmul.mubr.f32.gmra.mxu0 %v2278
    %v2369 = vpop.f32.mrf.mxu0
    %v2370 = vadd.f32 0.0, %v2369
    %v2371 = vpop.f32.mrf.mxu0
    %2372 = vdwg.mxu0
    %v2373 = vadd.f32 %v2225, %v2347
    %v2374 = vadd.f32 %v2230, %v2352
    %v2375 = vadd.f32 %v2243, %v2365
    %v2376 = vadd.f32 %v2248, %v2370
    %v2377 = vld [vmem:[#allocation3 + $0x9] sm:$0xff]
    %v2378 = vld [vmem:[#allocation3 + $0x11] sm:$0xff]
    %v2379 = vld [vmem:[#allocation3 + $0x19] sm:$0xff]
    %v2380 = vld [vmem:[#allocation3 + $0x21] sm:$0xff]
    %v2381 = vld [vmem:[#allocation3 + $0x29] sm:$0xff]
    %v2382 = vld [vmem:[#allocation3 + $0x31] sm:$0xff]
    %s2383 = scalar_lea.vmem [#allocation7], 576
    %v2384 = vld [vmem:[%s2383] sm:$0xff]
    %v2385 = vld [vmem:[%s2383 + $0x8] sm:$0xff]
    %v2386 = vld [vmem:[%s2383 + $0x10] sm:$0xff]
    %v2387 = vld [vmem:[%s2383 + $0x18] sm:$0xff]
    %v2389 = vsel %vm56, %v2377, 0
    %v2392 = vsel %vm56, %v2378, 0
    %v2395 = vsel %vm56, %v2379, 0
    %v2398 = vsel %vm56, %v2380, 0
    %v2401 = vsel %vm56, %v2381, 0
    %v2404 = vsel %vm56, %v2382, 0
    %2406 = vmatprep.subr.mxu0 0.0
    %2407 = vmatpush1.msra.mxu0 0.0
    %2408 = vmatprep.subr.mxu0 0.0
    %2409 = vmatpush1.msra.mxu0 0.0
    %2410 = vmatprep.subr.mxu0 0.0
    %2411 = vmatpush1.msra.mxu0 0.0
    %2412 = vmatprep.subr.mxu0 0.0
    %2413 = vmatpush1.msra.mxu0 0.0
    %2414 = vmatprep.subr.mxu0 0.0
    %2415 = vmatpush1.msra.mxu0 0.0
    %2416 = vmatprep.subr.mxu0 0.0
    %2417 = vmatpush1.msra.mxu0 0.0
    %2418 = vmatprep.subr.mxu0 0.0
    %2419 = vmatpush1.msra.mxu0 0.0
    %2420 = vmatprep.subr.mxu0 0.0
    %2421 = vmatpush1.msra.mxu0 0.0
    %2422 = vmatprep.subr.mxu0 0.0
    %2423 = vmatpush1.msra.mxu0 0.0
    %2424 = vmatprep.subr.mxu0 0.0
    %2425 = vmatpush1.msra.mxu0 0.0
    %2426 = vmatprep.subr.mxu0 0.0
    %2427 = vmatpush1.msra.mxu0 0.0
    %2428 = vmatprep.subr.mxu0 0.0
    %2429 = vmatpush1.msra.mxu0 0.0
    %2430 = vmatprep.subr.mxu0 0.0
    %2431 = vmatpush1.msra.mxu0 %v2387
    %2432 = vmatprep.subr.mxu0 0.0
    %2433 = vmatpush1.msra.mxu0 %v2386
    %2434 = vmatprep.subr.mxu0 0.0
    %2435 = vmatpush1.msra.mxu0 %v2385
    %2436 = vmatprep.subr.mxu0 0.0
    %2437 = vmatpush1.msra.mxu0 %v2384
    %2438 = vmatprep.subr.mxu0 0.0
    %2439 = vmatpush2.msra.mxu0 0.0
    %2440 = vmatprep.subr.mxu0 0.0
    %2441 = vmatpush2.msra.mxu0 0.0
    %2442 = vmatprep.subr.mxu0 0.0
    %2443 = vmatpush2.msra.mxu0 0.0
    %2444 = vmatprep.subr.mxu0 0.0
    %2445 = vmatpush2.msra.mxu0 0.0
    %2446 = vmatprep.subr.mxu0 0.0
    %2447 = vmatpush2.msra.mxu0 0.0
    %2448 = vmatprep.subr.mxu0 0.0
    %2449 = vmatpush2.msra.mxu0 0.0
    %2450 = vmatprep.subr.mxu0 0.0
    %2451 = vmatpush2.msra.mxu0 0.0
    %2452 = vmatprep.subr.mxu0 0.0
    %2453 = vmatpush2.msra.mxu0 0.0
    %2454 = vmatprep.subr.mxu0 0.0
    %2455 = vmatpush2.msra.mxu0 0.0
    %2456 = vmatprep.subr.mxu0 0.0
    %2457 = vmatpush2.msra.mxu0 0.0
    %2458 = vmatprep.subr.mxu0 0.0
    %2459 = vmatpush2.msra.mxu0 0.0
    %2460 = vmatprep.subr.mxu0 0.0
    %2461 = vmatpush2.msra.mxu0 0.0
    %2462 = vmatprep.subr.mxu0 0.0
    %2463 = vmatpush2.msra.mxu0 0.0
    %2464 = vmatprep.subr.mxu0 0.0
    %2465 = vmatpush2.msra.mxu0 0.0
    %2466 = vmatprep.subr.mxu0 0.0
    %2467 = vmatpush2.msra.mxu0 0.0
    %2468 = vmatprep.subr.mxu0 0.0
    %2469 = vmatpush2.msra.mxu0 0.0
    %2470 = vmatprep.mubr.f32.mxu0 0.0
    %2471 = vmatmul.mubr.f32.gmra.mxu0 %v2389
    %v2472 = vpop.f32.mrf.mxu0
    %v2473 = vadd.f32 0.0, %v2472
    %v2474 = vpop.f32.mrf.mxu0
    %2475 = vmatprep.mubr.f32.mxu0 0.0
    %2476 = vmatmul.mubr.f32.gmra.mxu0 %v2392
    %v2477 = vpop.f32.mrf.mxu0
    %v2478 = vadd.f32 0.0, %v2477
    %v2479 = vpop.f32.mrf.mxu0
    %2480 = vmatprep.mubr.f32.mxu0 0.0
    %2481 = vmatmul.mubr.f32.gmra.mxu0 %v2395
    %v2482 = vpop.f32.mrf.mxu0
    %v2483 = vpop.f32.mrf.mxu0
    %2484 = vmatprep.mubr.f32.mxu0 0.0
    %2485 = vmatmul.mubr.f32.gmra.mxu0 %v2398
    %v2486 = vpop.f32.mrf.mxu0
    %v2487 = vpop.f32.mrf.mxu0
    %2488 = vmatprep.mubr.f32.mxu0 0.0
    %2489 = vmatmul.mubr.f32.gmra.mxu0 %v2401
    %v2490 = vpop.f32.mrf.mxu0
    %v2491 = vadd.f32 0.0, %v2490
    %v2492 = vpop.f32.mrf.mxu0
    %2493 = vmatprep.mubr.f32.mxu0 0.0
    %2494 = vmatmul.mubr.f32.gmra.mxu0 %v2404
    %v2495 = vpop.f32.mrf.mxu0
    %v2496 = vadd.f32 0.0, %v2495
    %v2497 = vpop.f32.mrf.mxu0
    %2498 = vdwg.mxu0
    %v2499 = vadd.f32 %v2373, %v2473
    %v2500 = vadd.f32 %v2374, %v2478
    %v2501 = vadd.f32 %v2375, %v2491
    %v2502 = vadd.f32 %v2376, %v2496
    %v2503 = vld [vmem:[#allocation3 + $0xa] sm:$0xff]
    %v2504 = vld [vmem:[#allocation3 + $0x12] sm:$0xff]
    %v2505 = vld [vmem:[#allocation3 + $0x1a] sm:$0xff]
    %v2506 = vld [vmem:[#allocation3 + $0x22] sm:$0xff]
    %v2507 = vld [vmem:[#allocation3 + $0x2a] sm:$0xff]
    %v2508 = vld [vmem:[#allocation3 + $0x32] sm:$0xff]
    %s2509 = scalar_lea.vmem [#allocation7], 608
    %v2510 = vld [vmem:[%s2509] sm:$0xff]
    %v2511 = vld [vmem:[%s2509 + $0x8] sm:$0xff]
    %v2512 = vld [vmem:[%s2509 + $0x10] sm:$0xff]
    %v2513 = vld [vmem:[%s2509 + $0x18] sm:$0xff]
    %v2515 = vsel %vm56, %v2503, 0
    %v2518 = vsel %vm56, %v2504, 0
    %v2521 = vsel %vm56, %v2505, 0
    %v2524 = vsel %vm56, %v2506, 0
    %v2527 = vsel %vm56, %v2507, 0
    %v2530 = vsel %vm56, %v2508, 0
    %2532 = vmatprep.subr.mxu0 0.0
    %2533 = vmatpush1.msra.mxu0 0.0
    %2534 = vmatprep.subr.mxu0 0.0
    %2535 = vmatpush1.msra.mxu0 0.0
    %2536 = vmatprep.subr.mxu0 0.0
    %2537 = vmatpush1.msra.mxu0 0.0
    %2538 = vmatprep.subr.mxu0 0.0
    %2539 = vmatpush1.msra.mxu0 0.0
    %2540 = vmatprep.subr.mxu0 0.0
    %2541 = vmatpush1.msra.mxu0 0.0
    %2542 = vmatprep.subr.mxu0 0.0
    %2543 = vmatpush1.msra.mxu0 0.0
    %2544 = vmatprep.subr.mxu0 0.0
    %2545 = vmatpush1.msra.mxu0 0.0
    %2546 = vmatprep.subr.mxu0 0.0
    %2547 = vmatpush1.msra.mxu0 0.0
    %2548 = vmatprep.subr.mxu0 0.0
    %2549 = vmatpush1.msra.mxu0 0.0
    %2550 = vmatprep.subr.mxu0 0.0
    %2551 = vmatpush1.msra.mxu0 0.0
    %2552 = vmatprep.subr.mxu0 0.0
    %2553 = vmatpush1.msra.mxu0 0.0
    %2554 = vmatprep.subr.mxu0 0.0
    %2555 = vmatpush1.msra.mxu0 0.0
    %2556 = vmatprep.subr.mxu0 0.0
    %2557 = vmatpush1.msra.mxu0 %v2513
    %2558 = vmatprep.subr.mxu0 0.0
    %2559 = vmatpush1.msra.mxu0 %v2512
    %2560 = vmatprep.subr.mxu0 0.0
    %2561 = vmatpush1.msra.mxu0 %v2511
    %2562 = vmatprep.subr.mxu0 0.0
    %2563 = vmatpush1.msra.mxu0 %v2510
    %2564 = vmatprep.subr.mxu0 0.0
    %2565 = vmatpush2.msra.mxu0 0.0
    %2566 = vmatprep.subr.mxu0 0.0
    %2567 = vmatpush2.msra.mxu0 0.0
    %2568 = vmatprep.subr.mxu0 0.0
    %2569 = vmatpush2.msra.mxu0 0.0
    %2570 = vmatprep.subr.mxu0 0.0
    %2571 = vmatpush2.msra.mxu0 0.0
    %2572 = vmatprep.subr.mxu0 0.0
    %2573 = vmatpush2.msra.mxu0 0.0
    %2574 = vmatprep.subr.mxu0 0.0
    %2575 = vmatpush2.msra.mxu0 0.0
    %2576 = vmatprep.subr.mxu0 0.0
    %2577 = vmatpush2.msra.mxu0 0.0
    %2578 = vmatprep.subr.mxu0 0.0
    %2579 = vmatpush2.msra.mxu0 0.0
    %2580 = vmatprep.subr.mxu0 0.0
    %2581 = vmatpush2.msra.mxu0 0.0
    %2582 = vmatprep.subr.mxu0 0.0
    %2583 = vmatpush2.msra.mxu0 0.0
    %2584 = vmatprep.subr.mxu0 0.0
    %2585 = vmatpush2.msra.mxu0 0.0
    %2586 = vmatprep.subr.mxu0 0.0
    %2587 = vmatpush2.msra.mxu0 0.0
    %2588 = vmatprep.subr.mxu0 0.0
    %2589 = vmatpush2.msra.mxu0 0.0
    %2590 = vmatprep.subr.mxu0 0.0
    %2591 = vmatpush2.msra.mxu0 0.0
    %2592 = vmatprep.subr.mxu0 0.0
    %2593 = vmatpush2.msra.mxu0 0.0
    %2594 = vmatprep.subr.mxu0 0.0
    %2595 = vmatpush2.msra.mxu0 0.0
    %2596 = vmatprep.mubr.f32.mxu0 0.0
    %2597 = vmatmul.mubr.f32.gmra.mxu0 %v2515
    %v2598 = vpop.f32.mrf.mxu0
    %v2599 = vadd.f32 0.0, %v2598
    %v2600 = vpop.f32.mrf.mxu0
    %2601 = vmatprep.mubr.f32.mxu0 0.0
    %2602 = vmatmul.mubr.f32.gmra.mxu0 %v2518
    %v2603 = vpop.f32.mrf.mxu0
    %v2604 = vadd.f32 0.0, %v2603
    %v2605 = vpop.f32.mrf.mxu0
    %2606 = vmatprep.mubr.f32.mxu0 0.0
    %2607 = vmatmul.mubr.f32.gmra.mxu0 %v2521
    %v2608 = vpop.f32.mrf.mxu0
    %v2609 = vpop.f32.mrf.mxu0
    %2610 = vmatprep.mubr.f32.mxu0 0.0
    %2611 = vmatmul.mubr.f32.gmra.mxu0 %v2524
    %v2612 = vpop.f32.mrf.mxu0
    %v2613 = vpop.f32.mrf.mxu0
    %2614 = vmatprep.mubr.f32.mxu0 0.0
    %2615 = vmatmul.mubr.f32.gmra.mxu0 %v2527
    %v2616 = vpop.f32.mrf.mxu0
    %v2617 = vadd.f32 0.0, %v2616
    %v2618 = vpop.f32.mrf.mxu0
    %2619 = vmatprep.mubr.f32.mxu0 0.0
    %2620 = vmatmul.mubr.f32.gmra.mxu0 %v2530
    %v2621 = vpop.f32.mrf.mxu0
    %v2622 = vadd.f32 0.0, %v2621
    %v2623 = vpop.f32.mrf.mxu0
    %2624 = vdwg.mxu0
    %v2625 = vadd.f32 %v2499, %v2599
    %v2626 = vadd.f32 %v2500, %v2604
    %v2627 = vadd.f32 %v2501, %v2617
    %v2628 = vadd.f32 %v2502, %v2622
    %s2629 = scalar_lea.vmem [#allocation9], 3
    %v2630 = vld [vmem:[%s2629] sm:$0x1]
    %v2632 = vlaneseq
    %v2633 = vshrl.u32 %v2632, 7
    %v2634 = vsub.s32 0, %v2633
    %v2635 = vrot.slane %v2630, %v2634
    %v2637 = vadd.f32 %v2625, %v2635
    %v2638 = vadd.f32 %v2626, %v2635
    %v2639 = vadd.f32 %v2627, %v2635
    %v2640 = vadd.f32 %v2628, %v2635
    %v2641 = vtanh.pop %v2637
    %v2642 = vtanh.pop %v2638
    %2643 = vst.msk [vmem:[#allocation2 + $0x8] sm:$0xff] %vm56, %v2641
    %2644 = vst.msk [vmem:[#allocation2 + $0x10] sm:$0xff] %vm56, %v2642
    %v2645 = vtanh.pop %v2639
    %v2646 = vtanh.pop %v2640
    %2647 = vst.msk [vmem:[#allocation2 + $0x28] sm:$0xff] %vm56, %v2645
    %2648 = vst.msk [vmem:[#allocation2 + $0x30] sm:$0xff] %vm56, %v2646
    %v2649 = vld [vmem:[#allocation2 + $0x6] sm:$0xff]
    %v2650 = vld [vmem:[#allocation2 + $0xe] sm:$0xff]
    %v2651 = vld [vmem:[#allocation2 + $0x16] sm:$0xff]
    %v2652 = vld [vmem:[#allocation2 + $0x1e] sm:$0xff]
    %v2653 = vld [vmem:[#allocation2 + $0x26] sm:$0xff]
    %v2654 = vld [vmem:[#allocation2 + $0x2e] sm:$0xff]
    %s2655 = scalar_lea.vmem [#allocation7], 640
    %v2656 = vld [vmem:[%s2655] sm:$0xff]
    %v2657 = vld [vmem:[%s2655 + $0x8] sm:$0xff]
    %v2658 = vld [vmem:[%s2655 + $0x10] sm:$0xff]
    %v2659 = vld [vmem:[%s2655 + $0x18] sm:$0xff]
    %v2660 = vld [vmem:[#allocation2 + $0x7] sm:$0xff]
    %v2661 = vld [vmem:[#allocation2 + $0xf] sm:$0xff]
    %v2662 = vld [vmem:[#allocation2 + $0x17] sm:$0xff]
    %v2663 = vld [vmem:[#allocation2 + $0x1f] sm:$0xff]
    %v2664 = vld [vmem:[#allocation2 + $0x27] sm:$0xff]
    %v2665 = vld [vmem:[#allocation2 + $0x2f] sm:$0xff]
    %s2666 = scalar_lea.vmem [#allocation7], 672
    %v2667 = vld [vmem:[%s2666] sm:$0xff]
    %v2668 = vld [vmem:[%s2666 + $0x8] sm:$0xff]
    %v2669 = vld [vmem:[%s2666 + $0x10] sm:$0xff]
    %v2670 = vld [vmem:[%s2666 + $0x18] sm:$0xff]
    %v2672 = vsel %vm56, %v2660, 0
    %v2675 = vsel %vm56, %v2661, 0
    %v2678 = vsel %vm56, %v2662, 0
    %v2681 = vsel %vm56, %v2663, 0
    %v2684 = vsel %vm56, %v2664, 0
    %v2687 = vsel %vm56, %v2665, 0
    %2689 = vmatprep.subr.mxu0 0.0
    %2690 = vmatpush1.msra.mxu0 0.0
    %2691 = vmatprep.subr.mxu0 0.0
    %2692 = vmatpush1.msra.mxu0 0.0
    %2693 = vmatprep.subr.mxu0 0.0
    %2694 = vmatpush1.msra.mxu0 0.0
    %2695 = vmatprep.subr.mxu0 0.0
    %2696 = vmatpush1.msra.mxu0 0.0
    %2697 = vmatprep.subr.mxu0 0.0
    %2698 = vmatpush1.msra.mxu0 0.0
    %2699 = vmatprep.subr.mxu0 0.0
    %2700 = vmatpush1.msra.mxu0 0.0
    %2701 = vmatprep.subr.mxu0 0.0
    %2702 = vmatpush1.msra.mxu0 0.0
    %2703 = vmatprep.subr.mxu0 0.0
    %2704 = vmatpush1.msra.mxu0 0.0
    %2705 = vmatprep.subr.mxu0 0.0
    %2706 = vmatpush1.msra.mxu0 0.0
    %2707 = vmatprep.subr.mxu0 0.0
    %2708 = vmatpush1.msra.mxu0 0.0
    %2709 = vmatprep.subr.mxu0 0.0
    %2710 = vmatpush1.msra.mxu0 0.0
    %2711 = vmatprep.subr.mxu0 0.0
    %2712 = vmatpush1.msra.mxu0 0.0
    %2713 = vmatprep.subr.mxu0 0.0
    %2714 = vmatpush1.msra.mxu0 %v2670
    %2715 = vmatprep.subr.mxu0 0.0
    %2716 = vmatpush1.msra.mxu0 %v2669
    %2717 = vmatprep.subr.mxu0 0.0
    %2718 = vmatpush1.msra.mxu0 %v2668
    %2719 = vmatprep.subr.mxu0 0.0
    %2720 = vmatpush1.msra.mxu0 %v2667
    %2721 = vmatprep.subr.mxu0 0.0
    %2722 = vmatpush2.msra.mxu0 0.0
    %2723 = vmatprep.subr.mxu0 0.0
    %2724 = vmatpush2.msra.mxu0 0.0
    %2725 = vmatprep.subr.mxu0 0.0
    %2726 = vmatpush2.msra.mxu0 0.0
    %2727 = vmatprep.subr.mxu0 0.0
    %2728 = vmatpush2.msra.mxu0 0.0
    %2729 = vmatprep.subr.mxu0 0.0
    %2730 = vmatpush2.msra.mxu0 0.0
    %2731 = vmatprep.subr.mxu0 0.0
    %2732 = vmatpush2.msra.mxu0 0.0
    %2733 = vmatprep.subr.mxu0 0.0
    %2734 = vmatpush2.msra.mxu0 0.0
    %2735 = vmatprep.subr.mxu0 0.0
    %2736 = vmatpush2.msra.mxu0 0.0
    %2737 = vmatprep.subr.mxu0 0.0
    %2738 = vmatpush2.msra.mxu0 0.0
    %2739 = vmatprep.subr.mxu0 0.0
    %2740 = vmatpush2.msra.mxu0 0.0
    %2741 = vmatprep.subr.mxu0 0.0
    %2742 = vmatpush2.msra.mxu0 0.0
    %2743 = vmatprep.subr.mxu0 0.0
    %2744 = vmatpush2.msra.mxu0 0.0
    %2745 = vmatprep.subr.mxu0 0.0
    %2746 = vmatpush2.msra.mxu0 0.0
    %2747 = vmatprep.subr.mxu0 0.0
    %2748 = vmatpush2.msra.mxu0 0.0
    %2749 = vmatprep.subr.mxu0 0.0
    %2750 = vmatpush2.msra.mxu0 0.0
    %2751 = vmatprep.subr.mxu0 0.0
    %2752 = vmatpush2.msra.mxu0 0.0
    %2753 = vmatprep.mubr.f32.mxu0 0.0
    %2754 = vmatmul.mubr.f32.gmra.mxu0 %v2672
    %v2755 = vpop.f32.mrf.mxu0
    %v2756 = vadd.f32 0.0, %v2755
    %v2757 = vpop.f32.mrf.mxu0
    %2758 = vmatprep.mubr.f32.mxu0 0.0
    %2759 = vmatmul.mubr.f32.gmra.mxu0 %v2675
    %v2760 = vpop.f32.mrf.mxu0
    %v2761 = vadd.f32 0.0, %v2760
    %v2762 = vpop.f32.mrf.mxu0
    %2763 = vmatprep.mubr.f32.mxu0 0.0
    %2764 = vmatmul.mubr.f32.gmra.mxu0 %v2678
    %v2765 = vpop.f32.mrf.mxu0
    %v2766 = vpop.f32.mrf.mxu0
    %2767 = vmatprep.mubr.f32.mxu0 0.0
    %2768 = vmatmul.mubr.f32.gmra.mxu0 %v2681
    %v2769 = vpop.f32.mrf.mxu0
    %v2770 = vpop.f32.mrf.mxu0
    %2771 = vmatprep.mubr.f32.mxu0 0.0
    %2772 = vmatmul.mubr.f32.gmra.mxu0 %v2684
    %v2773 = vpop.f32.mrf.mxu0
    %v2774 = vadd.f32 0.0, %v2773
    %v2775 = vpop.f32.mrf.mxu0
    %2776 = vmatprep.mubr.f32.mxu0 0.0
    %2777 = vmatmul.mubr.f32.gmra.mxu0 %v2687
    %v2778 = vpop.f32.mrf.mxu0
    %v2779 = vadd.f32 0.0, %v2778
    %v2780 = vpop.f32.mrf.mxu0
    %2781 = vdwg.mxu0
    %v2783 = vsel %vm56, %v2649, 0
    %v2786 = vsel %vm56, %v2650, 0
    %v2789 = vsel %vm56, %v2651, 0
    %v2792 = vsel %vm56, %v2652, 0
    %v2795 = vsel %vm56, %v2653, 0
    %v2798 = vsel %vm56, %v2654, 0
    %2800 = vmatprep.subr.mxu0 0.0
    %2801 = vmatpush1.msra.mxu0 0.0
    %2802 = vmatprep.subr.mxu0 0.0
    %2803 = vmatpush1.msra.mxu0 0.0
    %2804 = vmatprep.subr.mxu0 0.0
    %2805 = vmatpush1.msra.mxu0 0.0
    %2806 = vmatprep.subr.mxu0 0.0
    %2807 = vmatpush1.msra.mxu0 0.0
    %2808 = vmatprep.subr.mxu0 0.0
    %2809 = vmatpush1.msra.mxu0 0.0
    %2810 = vmatprep.subr.mxu0 0.0
    %2811 = vmatpush1.msra.mxu0 0.0
    %2812 = vmatprep.subr.mxu0 0.0
    %2813 = vmatpush1.msra.mxu0 0.0
    %2814 = vmatprep.subr.mxu0 0.0
    %2815 = vmatpush1.msra.mxu0 0.0
    %2816 = vmatprep.subr.mxu0 0.0
    %2817 = vmatpush1.msra.mxu0 0.0
    %2818 = vmatprep.subr.mxu0 0.0
    %2819 = vmatpush1.msra.mxu0 0.0
    %2820 = vmatprep.subr.mxu0 0.0
    %2821 = vmatpush1.msra.mxu0 0.0
    %2822 = vmatprep.subr.mxu0 0.0
    %2823 = vmatpush1.msra.mxu0 0.0
    %2824 = vmatprep.subr.mxu0 0.0
    %2825 = vmatpush1.msra.mxu0 %v2659
    %2826 = vmatprep.subr.mxu0 0.0
    %2827 = vmatpush1.msra.mxu0 %v2658
    %2828 = vmatprep.subr.mxu0 0.0
    %2829 = vmatpush1.msra.mxu0 %v2657
    %2830 = vmatprep.subr.mxu0 0.0
    %2831 = vmatpush1.msra.mxu0 %v2656
    %2832 = vmatprep.subr.mxu0 0.0
    %2833 = vmatpush2.msra.mxu0 0.0
    %2834 = vmatprep.subr.mxu0 0.0
    %2835 = vmatpush2.msra.mxu0 0.0
    %2836 = vmatprep.subr.mxu0 0.0
    %2837 = vmatpush2.msra.mxu0 0.0
    %2838 = vmatprep.subr.mxu0 0.0
    %2839 = vmatpush2.msra.mxu0 0.0
    %2840 = vmatprep.subr.mxu0 0.0
    %2841 = vmatpush2.msra.mxu0 0.0
    %2842 = vmatprep.subr.mxu0 0.0
    %2843 = vmatpush2.msra.mxu0 0.0
    %2844 = vmatprep.subr.mxu0 0.0
    %2845 = vmatpush2.msra.mxu0 0.0
    %2846 = vmatprep.subr.mxu0 0.0
    %2847 = vmatpush2.msra.mxu0 0.0
    %2848 = vmatprep.subr.mxu0 0.0
    %2849 = vmatpush2.msra.mxu0 0.0
    %2850 = vmatprep.subr.mxu0 0.0
    %2851 = vmatpush2.msra.mxu0 0.0
    %2852 = vmatprep.subr.mxu0 0.0
    %2853 = vmatpush2.msra.mxu0 0.0
    %2854 = vmatprep.subr.mxu0 0.0
    %2855 = vmatpush2.msra.mxu0 0.0
    %2856 = vmatprep.subr.mxu0 0.0
    %2857 = vmatpush2.msra.mxu0 0.0
    %2858 = vmatprep.subr.mxu0 0.0
    %2859 = vmatpush2.msra.mxu0 0.0
    %2860 = vmatprep.subr.mxu0 0.0
    %2861 = vmatpush2.msra.mxu0 0.0
    %2862 = vmatprep.subr.mxu0 0.0
    %2863 = vmatpush2.msra.mxu0 0.0
    %2864 = vmatprep.mubr.f32.mxu0 0.0
    %2865 = vmatmul.mubr.f32.gmra.mxu0 %v2783
    %v2866 = vpop.f32.mrf.mxu0
    %v2867 = vadd.f32 %v2756, %v2866
    %v2868 = vpop.f32.mrf.mxu0
    %2869 = vmatprep.mubr.f32.mxu0 0.0
    %2870 = vmatmul.mubr.f32.gmra.mxu0 %v2786
    %v2871 = vpop.f32.mrf.mxu0
    %v2872 = vadd.f32 %v2761, %v2871
    %v2873 = vpop.f32.mrf.mxu0
    %2874 = vmatprep.mubr.f32.mxu0 0.0
    %2875 = vmatmul.mubr.f32.gmra.mxu0 %v2789
    %v2876 = vpop.f32.mrf.mxu0
    %v2877 = vpop.f32.mrf.mxu0
    %2878 = vmatprep.mubr.f32.mxu0 0.0
    %2879 = vmatmul.mubr.f32.gmra.mxu0 %v2792
    %v2880 = vpop.f32.mrf.mxu0
    %v2881 = vpop.f32.mrf.mxu0
    %2882 = vmatprep.mubr.f32.mxu0 0.0
    %2883 = vmatmul.mubr.f32.gmra.mxu0 %v2795
    %v2884 = vpop.f32.mrf.mxu0
    %v2885 = vadd.f32 %v2774, %v2884
    %v2886 = vpop.f32.mrf.mxu0
    %2887 = vmatprep.mubr.f32.mxu0 0.0
    %2888 = vmatmul.mubr.f32.gmra.mxu0 %v2798
    %v2889 = vpop.f32.mrf.mxu0
    %v2890 = vadd.f32 %v2779, %v2889
    %v2891 = vpop.f32.mrf.mxu0
    %2892 = vdwg.mxu0
    %v2893 = vld [vmem:[#allocation2 + $0x8] sm:$0xff]
    %v2894 = vld [vmem:[#allocation2 + $0x10] sm:$0xff]
    %v2895 = vld [vmem:[#allocation2 + $0x18] sm:$0xff]
    %v2896 = vld [vmem:[#allocation2 + $0x20] sm:$0xff]
    %v2897 = vld [vmem:[#allocation2 + $0x28] sm:$0xff]
    %v2898 = vld [vmem:[#allocation2 + $0x30] sm:$0xff]
    %s2899 = scalar_lea.vmem [#allocation7], 704
    %v2900 = vld [vmem:[%s2899] sm:$0xff]
    %v2901 = vld [vmem:[%s2899 + $0x8] sm:$0xff]
    %v2902 = vld [vmem:[%s2899 + $0x10] sm:$0xff]
    %v2903 = vld [vmem:[%s2899 + $0x18] sm:$0xff]
    %v2905 = vsel %vm56, %v2893, 0
    %v2908 = vsel %vm56, %v2894, 0
    %v2911 = vsel %vm56, %v2895, 0
    %v2914 = vsel %vm56, %v2896, 0
    %v2917 = vsel %vm56, %v2897, 0
    %v2920 = vsel %vm56, %v2898, 0
    %2922 = vmatprep.subr.mxu0 0.0
    %2923 = vmatpush1.msra.mxu0 0.0
    %2924 = vmatprep.subr.mxu0 0.0
    %2925 = vmatpush1.msra.mxu0 0.0
    %2926 = vmatprep.subr.mxu0 0.0
    %2927 = vmatpush1.msra.mxu0 0.0
    %2928 = vmatprep.subr.mxu0 0.0
    %2929 = vmatpush1.msra.mxu0 0.0
    %2930 = vmatprep.subr.mxu0 0.0
    %2931 = vmatpush1.msra.mxu0 0.0
    %2932 = vmatprep.subr.mxu0 0.0
    %2933 = vmatpush1.msra.mxu0 0.0
    %2934 = vmatprep.subr.mxu0 0.0
    %2935 = vmatpush1.msra.mxu0 0.0
    %2936 = vmatprep.subr.mxu0 0.0
    %2937 = vmatpush1.msra.mxu0 0.0
    %2938 = vmatprep.subr.mxu0 0.0
    %2939 = vmatpush1.msra.mxu0 0.0
    %2940 = vmatprep.subr.mxu0 0.0
    %2941 = vmatpush1.msra.mxu0 0.0
    %2942 = vmatprep.subr.mxu0 0.0
    %2943 = vmatpush1.msra.mxu0 0.0
    %2944 = vmatprep.subr.mxu0 0.0
    %2945 = vmatpush1.msra.mxu0 0.0
    %2946 = vmatprep.subr.mxu0 0.0
    %2947 = vmatpush1.msra.mxu0 %v2903
    %2948 = vmatprep.subr.mxu0 0.0
    %2949 = vmatpush1.msra.mxu0 %v2902
    %2950 = vmatprep.subr.mxu0 0.0
    %2951 = vmatpush1.msra.mxu0 %v2901
    %2952 = vmatprep.subr.mxu0 0.0
    %2953 = vmatpush1.msra.mxu0 %v2900
    %2954 = vmatprep.subr.mxu0 0.0
    %2955 = vmatpush2.msra.mxu0 0.0
    %2956 = vmatprep.subr.mxu0 0.0
    %2957 = vmatpush2.msra.mxu0 0.0
    %2958 = vmatprep.subr.mxu0 0.0
    %2959 = vmatpush2.msra.mxu0 0.0
    %2960 = vmatprep.subr.mxu0 0.0
    %2961 = vmatpush2.msra.mxu0 0.0
    %2962 = vmatprep.subr.mxu0 0.0
    %2963 = vmatpush2.msra.mxu0 0.0
    %2964 = vmatprep.subr.mxu0 0.0
    %2965 = vmatpush2.msra.mxu0 0.0
    %2966 = vmatprep.subr.mxu0 0.0
    %2967 = vmatpush2.msra.mxu0 0.0
    %2968 = vmatprep.subr.mxu0 0.0
    %2969 = vmatpush2.msra.mxu0 0.0
    %2970 = vmatprep.subr.mxu0 0.0
    %2971 = vmatpush2.msra.mxu0 0.0
    %2972 = vmatprep.subr.mxu0 0.0
    %2973 = vmatpush2.msra.mxu0 0.0
    %2974 = vmatprep.subr.mxu0 0.0
    %2975 = vmatpush2.msra.mxu0 0.0
    %2976 = vmatprep.subr.mxu0 0.0
    %2977 = vmatpush2.msra.mxu0 0.0
    %2978 = vmatprep.subr.mxu0 0.0
    %2979 = vmatpush2.msra.mxu0 0.0
    %2980 = vmatprep.subr.mxu0 0.0
    %2981 = vmatpush2.msra.mxu0 0.0
    %2982 = vmatprep.subr.mxu0 0.0
    %2983 = vmatpush2.msra.mxu0 0.0
    %2984 = vmatprep.subr.mxu0 0.0
    %2985 = vmatpush2.msra.mxu0 0.0
    %2986 = vmatprep.mubr.f32.mxu0 0.0
    %2987 = vmatmul.mubr.f32.gmra.mxu0 %v2905
    %v2988 = vpop.f32.mrf.mxu0
    %v2989 = vadd.f32 0.0, %v2988
    %v2990 = vpop.f32.mrf.mxu0
    %2991 = vmatprep.mubr.f32.mxu0 0.0
    %2992 = vmatmul.mubr.f32.gmra.mxu0 %v2908
    %v2993 = vpop.f32.mrf.mxu0
    %v2994 = vadd.f32 0.0, %v2993
    %v2995 = vpop.f32.mrf.mxu0
    %2996 = vmatprep.mubr.f32.mxu0 0.0
    %2997 = vmatmul.mubr.f32.gmra.mxu0 %v2911
    %v2998 = vpop.f32.mrf.mxu0
    %v2999 = vpop.f32.mrf.mxu0
    %3000 = vmatprep.mubr.f32.mxu0 0.0
    %3001 = vmatmul.mubr.f32.gmra.mxu0 %v2914
    %v3002 = vpop.f32.mrf.mxu0
    %v3003 = vpop.f32.mrf.mxu0
    %3004 = vmatprep.mubr.f32.mxu0 0.0
    %3005 = vmatmul.mubr.f32.gmra.mxu0 %v2917
    %v3006 = vpop.f32.mrf.mxu0
    %v3007 = vadd.f32 0.0, %v3006
    %v3008 = vpop.f32.mrf.mxu0
    %3009 = vmatprep.mubr.f32.mxu0 0.0
    %3010 = vmatmul.mubr.f32.gmra.mxu0 %v2920
    %v3011 = vpop.f32.mrf.mxu0
    %v3012 = vadd.f32 0.0, %v3011
    %v3013 = vpop.f32.mrf.mxu0
    %3014 = vdwg.mxu0
    %v3015 = vadd.f32 %v2867, %v2989
    %v3016 = vadd.f32 %v2872, %v2994
    %v3017 = vadd.f32 %v2885, %v3007
    %v3018 = vadd.f32 %v2890, %v3012
    %v3019 = vld [vmem:[#allocation2 + $0x9] sm:$0xff]
    %v3020 = vld [vmem:[#allocation2 + $0x11] sm:$0xff]
    %v3021 = vld [vmem:[#allocation2 + $0x19] sm:$0xff]
    %v3022 = vld [vmem:[#allocation2 + $0x21] sm:$0xff]
    %v3023 = vld [vmem:[#allocation2 + $0x29] sm:$0xff]
    %v3024 = vld [vmem:[#allocation2 + $0x31] sm:$0xff]
    %s3025 = scalar_lea.vmem [#allocation7], 736
    %v3026 = vld [vmem:[%s3025] sm:$0xff]
    %v3027 = vld [vmem:[%s3025 + $0x8] sm:$0xff]
    %v3028 = vld [vmem:[%s3025 + $0x10] sm:$0xff]
    %v3029 = vld [vmem:[%s3025 + $0x18] sm:$0xff]
    %v3031 = vsel %vm56, %v3019, 0
    %v3034 = vsel %vm56, %v3020, 0
    %v3037 = vsel %vm56, %v3021, 0
    %v3040 = vsel %vm56, %v3022, 0
    %v3043 = vsel %vm56, %v3023, 0
    %v3046 = vsel %vm56, %v3024, 0
    %3048 = vmatprep.subr.mxu0 0.0
    %3049 = vmatpush1.msra.mxu0 0.0
    %3050 = vmatprep.subr.mxu0 0.0
    %3051 = vmatpush1.msra.mxu0 0.0
    %3052 = vmatprep.subr.mxu0 0.0
    %3053 = vmatpush1.msra.mxu0 0.0
    %3054 = vmatprep.subr.mxu0 0.0
    %3055 = vmatpush1.msra.mxu0 0.0
    %3056 = vmatprep.subr.mxu0 0.0
    %3057 = vmatpush1.msra.mxu0 0.0
    %3058 = vmatprep.subr.mxu0 0.0
    %3059 = vmatpush1.msra.mxu0 0.0
    %3060 = vmatprep.subr.mxu0 0.0
    %3061 = vmatpush1.msra.mxu0 0.0
    %3062 = vmatprep.subr.mxu0 0.0
    %3063 = vmatpush1.msra.mxu0 0.0
    %3064 = vmatprep.subr.mxu0 0.0
    %3065 = vmatpush1.msra.mxu0 0.0
    %3066 = vmatprep.subr.mxu0 0.0
    %3067 = vmatpush1.msra.mxu0 0.0
    %3068 = vmatprep.subr.mxu0 0.0
    %3069 = vmatpush1.msra.mxu0 0.0
    %3070 = vmatprep.subr.mxu0 0.0
    %3071 = vmatpush1.msra.mxu0 0.0
    %3072 = vmatprep.subr.mxu0 0.0
    %3073 = vmatpush1.msra.mxu0 %v3029
    %3074 = vmatprep.subr.mxu0 0.0
    %3075 = vmatpush1.msra.mxu0 %v3028
    %3076 = vmatprep.subr.mxu0 0.0
    %3077 = vmatpush1.msra.mxu0 %v3027
    %3078 = vmatprep.subr.mxu0 0.0
    %3079 = vmatpush1.msra.mxu0 %v3026
    %3080 = vmatprep.subr.mxu0 0.0
    %3081 = vmatpush2.msra.mxu0 0.0
    %3082 = vmatprep.subr.mxu0 0.0
    %3083 = vmatpush2.msra.mxu0 0.0
    %3084 = vmatprep.subr.mxu0 0.0
    %3085 = vmatpush2.msra.mxu0 0.0
    %3086 = vmatprep.subr.mxu0 0.0
    %3087 = vmatpush2.msra.mxu0 0.0
    %3088 = vmatprep.subr.mxu0 0.0
    %3089 = vmatpush2.msra.mxu0 0.0
    %3090 = vmatprep.subr.mxu0 0.0
    %3091 = vmatpush2.msra.mxu0 0.0
    %3092 = vmatprep.subr.mxu0 0.0
    %3093 = vmatpush2.msra.mxu0 0.0
    %3094 = vmatprep.subr.mxu0 0.0
    %3095 = vmatpush2.msra.mxu0 0.0
    %3096 = vmatprep.subr.mxu0 0.0
    %3097 = vmatpush2.msra.mxu0 0.0
    %3098 = vmatprep.subr.mxu0 0.0
    %3099 = vmatpush2.msra.mxu0 0.0
    %3100 = vmatprep.subr.mxu0 0.0
    %3101 = vmatpush2.msra.mxu0 0.0
    %3102 = vmatprep.subr.mxu0 0.0
    %3103 = vmatpush2.msra.mxu0 0.0
    %3104 = vmatprep.subr.mxu0 0.0
    %3105 = vmatpush2.msra.mxu0 0.0
    %3106 = vmatprep.subr.mxu0 0.0
    %3107 = vmatpush2.msra.mxu0 0.0
    %3108 = vmatprep.subr.mxu0 0.0
    %3109 = vmatpush2.msra.mxu0 0.0
    %3110 = vmatprep.subr.mxu0 0.0
    %3111 = vmatpush2.msra.mxu0 0.0
    %3112 = vmatprep.mubr.f32.mxu0 0.0
    %3113 = vmatmul.mubr.f32.gmra.mxu0 %v3031
    %v3114 = vpop.f32.mrf.mxu0
    %v3115 = vadd.f32 0.0, %v3114
    %v3116 = vpop.f32.mrf.mxu0
    %3117 = vmatprep.mubr.f32.mxu0 0.0
    %3118 = vmatmul.mubr.f32.gmra.mxu0 %v3034
    %v3119 = vpop.f32.mrf.mxu0
    %v3120 = vadd.f32 0.0, %v3119
    %v3121 = vpop.f32.mrf.mxu0
    %3122 = vmatprep.mubr.f32.mxu0 0.0
    %3123 = vmatmul.mubr.f32.gmra.mxu0 %v3037
    %v3124 = vpop.f32.mrf.mxu0
    %v3125 = vpop.f32.mrf.mxu0
    %3126 = vmatprep.mubr.f32.mxu0 0.0
    %3127 = vmatmul.mubr.f32.gmra.mxu0 %v3040
    %v3128 = vpop.f32.mrf.mxu0
    %v3129 = vpop.f32.mrf.mxu0
    %3130 = vmatprep.mubr.f32.mxu0 0.0
    %3131 = vmatmul.mubr.f32.gmra.mxu0 %v3043
    %v3132 = vpop.f32.mrf.mxu0
    %v3133 = vadd.f32 0.0, %v3132
    %v3134 = vpop.f32.mrf.mxu0
    %3135 = vmatprep.mubr.f32.mxu0 0.0
    %3136 = vmatmul.mubr.f32.gmra.mxu0 %v3046
    %v3137 = vpop.f32.mrf.mxu0
    %v3138 = vadd.f32 0.0, %v3137
    %v3139 = vpop.f32.mrf.mxu0
    %3140 = vdwg.mxu0
    %v3141 = vadd.f32 %v3015, %v3115
    %v3142 = vadd.f32 %v3016, %v3120
    %v3143 = vadd.f32 %v3017, %v3133
    %v3144 = vadd.f32 %v3018, %v3138
    %v3145 = vld [vmem:[#allocation2 + $0xa] sm:$0xff]
    %v3146 = vld [vmem:[#allocation2 + $0x12] sm:$0xff]
    %v3147 = vld [vmem:[#allocation2 + $0x1a] sm:$0xff]
    %v3148 = vld [vmem:[#allocation2 + $0x22] sm:$0xff]
    %v3149 = vld [vmem:[#allocation2 + $0x2a] sm:$0xff]
    %v3150 = vld [vmem:[#allocation2 + $0x32] sm:$0xff]
    %s3151 = scalar_lea.vmem [#allocation7], 768
    %v3152 = vld [vmem:[%s3151] sm:$0xff]
    %v3153 = vld [vmem:[%s3151 + $0x8] sm:$0xff]
    %v3154 = vld [vmem:[%s3151 + $0x10] sm:$0xff]
    %v3155 = vld [vmem:[%s3151 + $0x18] sm:$0xff]
    %v3157 = vsel %vm56, %v3145, 0
    %v3160 = vsel %vm56, %v3146, 0
    %v3163 = vsel %vm56, %v3147, 0
    %v3166 = vsel %vm56, %v3148, 0
    %v3169 = vsel %vm56, %v3149, 0
    %v3172 = vsel %vm56, %v3150, 0
    %3174 = vmatprep.subr.mxu0 0.0
    %3175 = vmatpush1.msra.mxu0 0.0
    %3176 = vmatprep.subr.mxu0 0.0
    %3177 = vmatpush1.msra.mxu0 0.0
    %3178 = vmatprep.subr.mxu0 0.0
    %3179 = vmatpush1.msra.mxu0 0.0
    %3180 = vmatprep.subr.mxu0 0.0
    %3181 = vmatpush1.msra.mxu0 0.0
    %3182 = vmatprep.subr.mxu0 0.0
    %3183 = vmatpush1.msra.mxu0 0.0
    %3184 = vmatprep.subr.mxu0 0.0
    %3185 = vmatpush1.msra.mxu0 0.0
    %3186 = vmatprep.subr.mxu0 0.0
    %3187 = vmatpush1.msra.mxu0 0.0
    %3188 = vmatprep.subr.mxu0 0.0
    %3189 = vmatpush1.msra.mxu0 0.0
    %3190 = vmatprep.subr.mxu0 0.0
    %3191 = vmatpush1.msra.mxu0 0.0
    %3192 = vmatprep.subr.mxu0 0.0
    %3193 = vmatpush1.msra.mxu0 0.0
    %3194 = vmatprep.subr.mxu0 0.0
    %3195 = vmatpush1.msra.mxu0 0.0
    %3196 = vmatprep.subr.mxu0 0.0
    %3197 = vmatpush1.msra.mxu0 0.0
    %3198 = vmatprep.subr.mxu0 0.0
    %3199 = vmatpush1.msra.mxu0 %v3155
    %3200 = vmatprep.subr.mxu0 0.0
    %3201 = vmatpush1.msra.mxu0 %v3154
    %3202 = vmatprep.subr.mxu0 0.0
    %3203 = vmatpush1.msra.mxu0 %v3153
    %3204 = vmatprep.subr.mxu0 0.0
    %3205 = vmatpush1.msra.mxu0 %v3152
    %3206 = vmatprep.subr.mxu0 0.0
    %3207 = vmatpush2.msra.mxu0 0.0
    %3208 = vmatprep.subr.mxu0 0.0
    %3209 = vmatpush2.msra.mxu0 0.0
    %3210 = vmatprep.subr.mxu0 0.0
    %3211 = vmatpush2.msra.mxu0 0.0
    %3212 = vmatprep.subr.mxu0 0.0
    %3213 = vmatpush2.msra.mxu0 0.0
    %3214 = vmatprep.subr.mxu0 0.0
    %3215 = vmatpush2.msra.mxu0 0.0
    %3216 = vmatprep.subr.mxu0 0.0
    %3217 = vmatpush2.msra.mxu0 0.0
    %3218 = vmatprep.subr.mxu0 0.0
    %3219 = vmatpush2.msra.mxu0 0.0
    %3220 = vmatprep.subr.mxu0 0.0
    %3221 = vmatpush2.msra.mxu0 0.0
    %3222 = vmatprep.subr.mxu0 0.0
    %3223 = vmatpush2.msra.mxu0 0.0
    %3224 = vmatprep.subr.mxu0 0.0
    %3225 = vmatpush2.msra.mxu0 0.0
    %3226 = vmatprep.subr.mxu0 0.0
    %3227 = vmatpush2.msra.mxu0 0.0
    %3228 = vmatprep.subr.mxu0 0.0
    %3229 = vmatpush2.msra.mxu0 0.0
    %3230 = vmatprep.subr.mxu0 0.0
    %3231 = vmatpush2.msra.mxu0 0.0
    %3232 = vmatprep.subr.mxu0 0.0
    %3233 = vmatpush2.msra.mxu0 0.0
    %3234 = vmatprep.subr.mxu0 0.0
    %3235 = vmatpush2.msra.mxu0 0.0
    %3236 = vmatprep.subr.mxu0 0.0
    %3237 = vmatpush2.msra.mxu0 0.0
    %3238 = vmatprep.mubr.f32.mxu0 0.0
    %3239 = vmatmul.mubr.f32.gmra.mxu0 %v3157
    %v3240 = vpop.f32.mrf.mxu0
    %v3241 = vadd.f32 0.0, %v3240
    %v3242 = vpop.f32.mrf.mxu0
    %3243 = vmatprep.mubr.f32.mxu0 0.0
    %3244 = vmatmul.mubr.f32.gmra.mxu0 %v3160
    %v3245 = vpop.f32.mrf.mxu0
    %v3246 = vadd.f32 0.0, %v3245
    %v3247 = vpop.f32.mrf.mxu0
    %3248 = vmatprep.mubr.f32.mxu0 0.0
    %3249 = vmatmul.mubr.f32.gmra.mxu0 %v3163
    %v3250 = vpop.f32.mrf.mxu0
    %v3251 = vpop.f32.mrf.mxu0
    %3252 = vmatprep.mubr.f32.mxu0 0.0
    %3253 = vmatmul.mubr.f32.gmra.mxu0 %v3166
    %v3254 = vpop.f32.mrf.mxu0
    %v3255 = vpop.f32.mrf.mxu0
    %3256 = vmatprep.mubr.f32.mxu0 0.0
    %3257 = vmatmul.mubr.f32.gmra.mxu0 %v3169
    %v3258 = vpop.f32.mrf.mxu0
    %v3259 = vadd.f32 0.0, %v3258
    %v3260 = vpop.f32.mrf.mxu0
    %3261 = vmatprep.mubr.f32.mxu0 0.0
    %3262 = vmatmul.mubr.f32.gmra.mxu0 %v3172
    %v3263 = vpop.f32.mrf.mxu0
    %v3264 = vadd.f32 0.0, %v3263
    %v3265 = vpop.f32.mrf.mxu0
    %3266 = vdwg.mxu0
    %v3267 = vadd.f32 %v3141, %v3241
    %v3268 = vadd.f32 %v3142, %v3246
    %v3269 = vadd.f32 %v3143, %v3259
    %v3270 = vadd.f32 %v3144, %v3264
    %s3271 = scalar_lea.vmem [#allocation9], 4
    %v3272 = vld [vmem:[%s3271] sm:$0x1]
    %v3274 = vlaneseq
    %v3275 = vshrl.u32 %v3274, 7
    %v3276 = vsub.s32 0, %v3275
    %v3277 = vrot.slane %v3272, %v3276
    %v3279 = vadd.f32 %v3267, %v3277
    %v3280 = vadd.f32 %v3268, %v3277
    %v3281 = vadd.f32 %v3269, %v3277
    %v3282 = vadd.f32 %v3270, %v3277
    %3283 = vst.msk [vmem:[#allocation10] sm:$0xff] %vm75, %v3279
    %3284 = vst.msk [vmem:[#allocation10 + $0x8] sm:$0xff] %vm75, %v3280
    %s3285 = scalar_lea.vmem [#allocation10], 16
    %3286 = vst.msk [vmem:[%s3285] sm:$0xff] %vm75, %v3281
    %3287 = vst.msk [vmem:[%s3285 + $0x8] sm:$0xff] %vm75, %v3282
    // Predicated region
    $region26: #{tpu_custom_call.1} parent=1 // pred_check
      _
    $region27: #{tpu_custom_call.1} parent=1 // pred_check_branch
      %3289 = sbr.rel (0) target = $region29
    $region28: #{tpu_custom_call.1} parent=1 // pred_region
      %s3291 = ssub.s32 512, 512
      %3292 = vsyncadd [#allocation6], %s3291
      %s3293 = sshll.u32 [#allocation10], 4
      %s3294 = int_to_ptr.vmem [resolvable:$true] %s3293
      %3299 = dma.vmem_to_hbm [thread:$0]  %s3294, 512, %s3, [#allocation6], 128, 128, 8
    $region29: #{tpu_custom_call.1} parent=1 // pred_fallthru
      _
    // Predicated region
    $region30: #{tpu_custom_call.1} parent=1 // pred_check
      _
    $region31: #{tpu_custom_call.1} parent=1 // pred_check_branch
      %3301 = sbr.rel (0) target = $region33
    $region32: #{tpu_custom_call.1} parent=1 // pred_region
      %3302 = dma.done [#allocation6], 512
    $region33: #{tpu_custom_call.1} parent=1 // pred_fallthru
      _
    %3303 = vsyncpa [#allocation5], 1
    %3304 = vsyncpa [#allocation8], 1
    %3305 = vsyncpa [#allocation6], 1

</llo_original>
